<compile_context>
chip_gen: v5e
topology: v5e:2x2
jax: 0.10.0
libtpu: 0.0.40
codegen_flags: <defaults>
</compile_context>

<pallas_src>
import math
from functools import partial

import jax
import jax.numpy as jnp
from jax import lax
from jax.experimental import pallas as pl
from jax.experimental.pallas import tpu as pltpu

_VMEM_LIMIT = 48 * 1024 * 1024   # safe on v7x (64 MiB physical VMEM)


# ----------------------------------------------------------------------------
# in-kernel helpers (traced inside the Pallas kernels)
# ----------------------------------------------------------------------------
def _layer_norm(x, g, b, eps):
    mu = jnp.mean(x, axis=-1, keepdims=True)
    var = jnp.mean((x - mu) ** 2, axis=-1, keepdims=True)
    return (x - mu) * lax.rsqrt(var + eps) * g + b


def _gelu(x):
    # TODO(synk): BERT uses exact erf-GELU; tanh approximation used here.
    c = math.sqrt(2.0 / math.pi)
    return 0.5 * x * (1.0 + jnp.tanh(c * (x + 0.044715 * x * x * x)))


def _const_spec(shape):
    """Full-array block with constant index -> stays resident in VMEM."""
    nd = len(shape)
    return pl.BlockSpec(tuple(shape), lambda *_args: (0,) * nd)


# ----------------------------------------------------------------------------
# tiling helpers
# ----------------------------------------------------------------------------
def _row_tiling(n, max_tile=512):
    """Return (padded_n, row_tile); pads rows instead of degrading to 1 block."""
    if n <= max_tile:
        pad_n = ((n + 7) // 8) * 8
        return pad_n, pad_n
    pad_n = ((n + max_tile - 1) // max_tile) * max_tile
    return pad_n, max_tile


def _time_tile(s, max_t=32):
    """Largest divisor of s that is <= max_t and (8-aligned or == s)."""
    for t in range(min(s, max_t), 0, -1):
        if s % t == 0 and (t % 8 == 0 or t == s):
            return t
    return s


def _lstm_batch_tile(b):
    # Two batch chunks for megacore (v7x) when the batch is large enough.
    if b >= 16 and b % 2 == 0:
        return b // 2
    return b


def _attn_batch_tile(b, s, target_rows=256):
    tb = max(1, min(b, target_rows // max(s, 1)))
    while b % tb:
        tb -= 1
    return tb


# ----------------------------------------------------------------------------
# Kernel 1: cate_proj + folded BN + cont_embed + comb_proj + LSTM layer-0
#           input projection.  Row-tiled over the flattened (B*S) rows.
# ----------------------------------------------------------------------------
def input_proj_kernel(cate_ref, cont_ref, bns_ref, bnb_ref,
                      wc_ref, bc_ref, g1_ref, b1_ref,
                      wn_ref, bn_ref, g2_ref, b2_ref,
                      wca_ref, wcb_ref, bcomb_ref, g3_ref, b3_ref,
                      wih0_ref, bg0_ref, out_ref):
    # cate_proj = LN(Linear(cate_emb))
    cate_h = _layer_norm(
        jnp.dot(cate_ref[...], wc_ref[...], preferred_element_type=jnp.float32)
        + bc_ref[...], g1_ref[...], b1_ref[...], 1e-5)

    # cont_bn (batch stats folded into scale/shift) + cont_embed
    cont_n = cont_ref[...] * bns_ref[...] + bnb_ref[...]
    cont_h = _layer_norm(
        jnp.dot(cont_n.astype(jnp.bfloat16), wn_ref[...],
                preferred_element_type=jnp.float32) + bn_ref[...],
        g2_ref[...], b2_ref[...], 1e-5)

    # comb_proj = LN(Linear(ReLU(concat([cate_h, cont_h]))))
    # with the (2H, H) weight split into two (H, H) halves -> no lane concat.
    comb = (jnp.dot(jnp.maximum(cate_h, 0.0).astype(jnp.bfloat16), wca_ref[...],
                    preferred_element_type=jnp.float32)
            + jnp.dot(jnp.maximum(cont_h, 0.0).astype(jnp.bfloat16), wcb_ref[...],
                      preferred_element_type=jnp.float32)
            + bcomb_ref[...])
    seq = _layer_norm(comb, g3_ref[...], b3_ref[...], 1e-5)

    # LSTM layer-0 input projection (x @ W_ih0 + b0) hoisted out of recurrence.
    out_ref[...] = (jnp.dot(seq.astype(jnp.bfloat16), wih0_ref[...],
                            preferred_element_type=jnp.float32)
                    + bg0_ref[...]).astype(out_ref.dtype)


def input_proj(cate_flat, cont_flat, bn_scale, bn_shift, p):
    N, Fc = cate_flat.shape
    Fn = cont_flat.shape[1]
    H = p["ln3_g"].shape[1]
    n_pad, TM = _row_tiling(N)
    if n_pad > N:
        cate_flat = jnp.concatenate(
            [cate_flat, jnp.zeros((n_pad - N, Fc), cate_flat.dtype)], axis=0)
        cont_flat = jnp.concatenate(
            [cont_flat, jnp.zeros((n_pad - N, Fn), cont_flat.dtype)], axis=0)

    w_comb_a = p["w_comb"][:H]
    w_comb_b = p["w_comb"][H:]
    const_args = [bn_scale, bn_shift,
                  p["w_cate"], p["b_cate"], p["ln1_g"], p["ln1_b"],
                  p["w_cont"], p["b_cont"], p["ln2_g"], p["ln2_b"],
                  w_comb_a, w_comb_b, p["b_comb"], p["ln3_g"], p["ln3_b"],
                  p["w_ih"][0], p["b_lstm"][0]]
    out = pl.pallas_call(
        input_proj_kernel,
        out_shape=jax.ShapeDtypeStruct((n_pad, 4 * H), jnp.bfloat16),
        grid=(n_pad // TM,),
        in_specs=[pl.BlockSpec((TM, Fc), lambda i: (i, 0)),
                  pl.BlockSpec((TM, Fn), lambda i: (i, 0))]
                 + [_const_spec(a.shape) for a in const_args],
        out_specs=pl.BlockSpec((TM, 4 * H), lambda i: (i, 0)),
        compiler_params=pltpu.CompilerParams(
            dimension_semantics=("parallel",),
            vmem_limit_bytes=_VMEM_LIMIT),
    )(cate_flat, cont_flat, *const_args)
    return out[:N]


# ----------------------------------------------------------------------------
# Kernel 2: multi-layer LSTM, chunked over time (grid=(B//TB, S//T)),
#           h/c carried in VMEM scratch, output written batch-major (B, S, H).
#           Layer-0 input projection arrives precomputed as bf16 gates0.
# ----------------------------------------------------------------------------
def lstm_kernel(g0_ref, whh0_ref, wstk_ref, brest_ref, out_ref, h_sc, c_sc,
                *, n_layers, hidden, t_chunk):
    @pl.when(pl.program_id(1) == 0)
    def _():
        h_sc[...] = jnp.zeros_like(h_sc)
        c_sc[...] = jnp.zeros_like(c_sc)

    H = hidden
    whh0 = whh0_ref[...]          # (H, 4H) bf16
    wstk = wstk_ref[...]          # (max(L-1,1), 2H, 4H) bf16
    brest = brest_ref[...]        # (max(L-1,1), 1, 4H) f32

    for tl in range(t_chunk):                         # static, unrolled chunk
        g0_t = g0_ref[:, tl:tl + 1, :][:, 0, :].astype(jnp.float32)   # (TB, 4H)
        x_in = None
        for l in range(n_layers):                     # static, small
            h_prev = h_sc[l]
            c_prev = c_sc[l]
            if l == 0:
                # input projection (incl. bias) precomputed in input_proj
                gates = g0_t + jnp.dot(h_prev.astype(jnp.bfloat16), whh0,
                                       preferred_element_type=jnp.float32)
            else:
                xa = jnp.concatenate([x_in, h_prev], axis=-1).astype(jnp.bfloat16)
                gates = (jnp.dot(xa, wstk[l - 1],
                                 preferred_element_type=jnp.float32)
                         + brest[l - 1])
            # gate order i, f, g, o
            i_g = jax.nn.sigmoid(gates[:, 0 * H:1 * H])
            f_g = jax.nn.sigmoid(gates[:, 1 * H:2 * H])
            g_g = jnp.tanh(gates[:, 2 * H:3 * H])
            o_g = jax.nn.sigmoid(gates[:, 3 * H:4 * H])
            c_new = f_g * c_prev + i_g * g_g
            h_new = o_g * jnp.tanh(c_new)
            h_sc[l] = h_new
            c_sc[l] = c_new
            x_in = h_new
        out_ref[:, tl:tl + 1, :] = x_in[:, None, :].astype(out_ref.dtype)


def lstm_forward(gates0, p, n_layers, hidden):
    B, S, G = gates0.shape
    H = hidden
    TB = _lstm_batch_tile(B)
    T = _time_tile(S)

    if n_layers > 1:
        # stacked [W_ih; W_hh] for layers >= 1 -> single matmul per step
        w_stack = jnp.concatenate([p["w_ih"][1:], p["w_hh"][1:]], axis=1)
        b_rest = p["b_lstm"][1:]
    else:
        w_stack = jnp.zeros((1, 2 * H, 4 * H), jnp.bfloat16)   # never read
        b_rest = jnp.zeros((1, 1, 4 * H), jnp.float32)
    w_hh0 = p["w_hh"][0]

    return pl.pallas_call(
        partial(lstm_kernel, n_layers=n_layers, hidden=H, t_chunk=T),
        out_shape=jax.ShapeDtypeStruct((B, S, H), jnp.float32),
        grid=(B // TB, S // T),
        in_specs=[pl.BlockSpec((TB, T, G), lambda b, t: (b, t, 0)),
                  _const_spec(w_hh0.shape),
                  _const_spec(w_stack.shape),
                  _const_spec(b_rest.shape)],
        out_specs=pl.BlockSpec((TB, T, H), lambda b, t: (b, t, 0)),
        scratch_shapes=[pltpu.VMEM((n_layers, TB, H), jnp.float32),
                        pltpu.VMEM((n_layers, TB, H), jnp.float32)],
        compiler_params=pltpu.CompilerParams(
            dimension_semantics=("parallel", "arbitrary"),   # batch ||, time seq
            vmem_limit_bytes=_VMEM_LIMIT),
    )(gates0, w_hh0, w_stack, b_rest)


# ----------------------------------------------------------------------------
# Kernel 3: one BertLayer (self-attn + FFN, residual LayerNorms) + final fc.
#           TB batch rows per grid step; dense matmuls on (TB*S, H) rows;
#           per-head contexts written into a VMEM scratch (no lane concat);
#           lane-dense (TB, 1, S) output block.
# ----------------------------------------------------------------------------
def attn_fc_kernel(x_ref, mask_ref,
                   wqkv_ref, bqkv_ref, wao_ref, bao_ref, gA_ref, bA_ref,
                   wi_ref, bi_ref, wo_ref, bo_ref, gB_ref, bB_ref,
                   wfc_ref, bfc_ref, out_ref, ctx_sc,
                   *, n_heads, head_dim, tb, seq):
    H = n_heads * head_dim
    x3 = x_ref[...]                                   # (TB, S, H) f32
    x2 = x3.reshape(tb * seq, H)
    mask_bias = (1.0 - mask_ref[...]) * -10000.0      # (TB, 1, S)

    # fused QKV on the flattened rows (big MXU M-dimension)
    qkv = jnp.dot(x2.astype(jnp.bfloat16), wqkv_ref[...],
                  preferred_element_type=jnp.float32) + bqkv_ref[...]
    q = qkv[:, 0 * H:1 * H].reshape(tb, seq, H)
    k = qkv[:, 1 * H:2 * H].reshape(tb, seq, H)
    v = qkv[:, 2 * H:3 * H].reshape(tb, seq, H)

    scale = 1.0 / math.sqrt(head_dim)
    for h in range(n_heads):                          # static, small
        sl = slice(h * head_dim, (h + 1) * head_dim)
        qh = q[:, :, sl].astype(jnp.bfloat16)
        kh = k[:, :, sl].astype(jnp.bfloat16)
        vh = v[:, :, sl].astype(jnp.bfloat16)
        scores = jnp.einsum('bqd,bkd->bqk', qh, kh,
                            preferred_element_type=jnp.float32) * scale
        scores = scores + mask_bias                   # broadcast over query rows
        m = jnp.max(scores, axis=-1, keepdims=True)
        e = jnp.exp(scores - m)
        probs = e * pl.reciprocal(jnp.sum(e, axis=-1, keepdims=True), approx=True)
        ctx_sc[:, :, sl] = jnp.einsum('bqk,bkd->bqd', probs.astype(jnp.bfloat16),
                                      vh, preferred_element_type=jnp.float32)
    ctx = ctx_sc[...].reshape(tb * seq, H)

    attn_out = jnp.dot(ctx.astype(jnp.bfloat16), wao_ref[...],
                       preferred_element_type=jnp.float32) + bao_ref[...]
    h1 = _layer_norm(attn_out + x2, gA_ref[...], bA_ref[...], 1e-12)

    inter = _gelu(jnp.dot(h1.astype(jnp.bfloat16), wi_ref[...],
                          preferred_element_type=jnp.float32) + bi_ref[...])
    ffn = jnp.dot(inter.astype(jnp.bfloat16), wo_ref[...],
                  preferred_element_type=jnp.float32) + bo_ref[...]
    h2 = _layer_norm(ffn + h1, gB_ref[...], bB_ref[...], 1e-12)

    # final fc (H -> 1) as VPU multiply + lane reduction -> lane-dense (TB,1,S)
    logits = jnp.sum(h2.reshape(tb, seq, H) * wfc_ref[...], axis=-1) + bfc_ref[...]
    out_ref[...] = logits[:, None, :].astype(out_ref.dtype)


def attn_fc_forward(x_bsh, mask_b1s, p, n_heads):
    B, S, H = x_bsh.shape
    head_dim = H // n_heads
    TB = _attn_batch_tile(B, S)
    const_args = [p["w_qkv"], p["b_qkv"], p["w_ao"], p["b_ao"],
                  p["lnA_g"], p["lnA_b"],
                  p["w_i"], p["b_i"], p["w_o"], p["b_o"],
                  p["lnB_g"], p["lnB_b"],
                  p["w_fc"], p["b_fc"]]
    out = pl.pallas_call(
        partial(attn_fc_kernel, n_heads=n_heads, head_dim=head_dim,
                tb=TB, seq=S),
        out_shape=jax.ShapeDtypeStruct((B, 1, S), jnp.float32),
        grid=(B // TB,),
        in_specs=[pl.BlockSpec((TB, S, H), lambda b: (b, 0, 0)),
                  pl.BlockSpec((TB, 1, S), lambda b: (b, 0, 0))]
                 + [_const_spec(a.shape) for a in const_args],
        out_specs=pl.BlockSpec((TB, 1, S), lambda b: (b, 0, 0)),
        scratch_shapes=[pltpu.VMEM((TB, S, H), jnp.float32)],
        compiler_params=pltpu.CompilerParams(
            dimension_semantics=("parallel",),
            vmem_limit_bytes=_VMEM_LIMIT),
    )(x_bsh, mask_b1s, *const_args)
    return out.reshape(B, S)


# ----------------------------------------------------------------------------
# Full forward (glue in plain JAX, hot paths in Pallas; batch-major throughout,
# no HBM transposes of activations between kernels)
# ----------------------------------------------------------------------------
def lstmattn_forward(cate_x, cont_x, mask, p, *, n_layers, n_heads):
    B, S, n_cate = cate_x.shape
    H = p["ln3_g"].shape[1]

    # embedding gather (plain XLA) + batch-major row flattening
    cate_emb = jnp.take(p["emb_table"], cate_x, axis=0)           # (B,S,n_cate,E)
    cate_flat = cate_emb.reshape(B * S, -1).astype(jnp.bfloat16)  # (B*S, n_cate*E)
    cont_flat = cont_x.reshape(B * S, -1)

    # BatchNorm1d with batch statistics over all B*S rows, folded into a
    # per-feature scale/shift so row tiling keeps exact numerics.
    mu = jnp.mean(cont_flat, axis=0, keepdims=True)
    var = jnp.mean((cont_flat - mu) ** 2, axis=0, keepdims=True)
    bn_scale = p["bn_g"] * lax.rsqrt(var + 1e-5)
    bn_shift = p["bn_b"] - mu * bn_scale

    gates0 = input_proj(cate_flat, cont_flat, bn_scale, bn_shift, p)  # (B*S,4H) bf16
    gates0 = gates0.reshape(B, S, 4 * H)

    lstm_out = lstm_forward(gates0, p, n_layers, H)                   # (B, S, H)

    mask_b1s = mask.astype(jnp.float32).reshape(B, 1, S)
    return attn_fc_forward(lstm_out, mask_b1s, p, n_heads)            # (B, S)


# ----------------------------------------------------------------------------
# Deterministic parameter init + example run
# ----------------------------------------------------------------------------
def init_params(key, *, offset, E, H, n_cate, n_cont, n_layers):
    bf16 = jnp.bfloat16

    def nrm(k, shape, scale=0.02, dtype=jnp.float32):
        return (scale * jax.random.normal(k, shape, jnp.float32)).astype(dtype)

    def ones(s):
        return jnp.ones(s, jnp.float32)

    def zeros(s):
        return jnp.zeros(s, jnp.float32)

    keys = jax.random.split(key, 40)
    ki = iter(keys)
    emb = nrm(next(ki), (offset, E), 0.05)
    emb = emb.at[0].set(0.0)                                        # padding_idx=0

    p = dict(
        emb_table=emb,
        # cate_proj : Linear(n_cate*E, H) + LayerNorm(H)
        w_cate=nrm(next(ki), (n_cate * E, H), dtype=bf16), b_cate=nrm(next(ki), (1, H)),
        ln1_g=ones((1, H)), ln1_b=zeros((1, H)),
        # cont_bn : BatchNorm1d(n_cont)
        bn_g=ones((1, n_cont)), bn_b=zeros((1, n_cont)),
        # cont_embed : Linear(n_cont, H) + LayerNorm(H)
        w_cont=nrm(next(ki), (n_cont, H), dtype=bf16), b_cont=nrm(next(ki), (1, H)),
        ln2_g=ones((1, H)), ln2_b=zeros((1, H)),
        # comb_proj : Linear(2H, H) + LayerNorm(H)   (split into halves in wrapper)
        w_comb=nrm(next(ki), (2 * H, H), dtype=bf16), b_comb=nrm(next(ki), (1, H)),
        ln3_g=ones((1, H)), ln3_b=zeros((1, H)),
        # LSTM (gate order i,f,g,o ; bias = b_ih + b_hh folded)
        w_ih=nrm(next(ki), (n_layers, H, 4 * H), dtype=bf16),
        w_hh=nrm(next(ki), (n_layers, H, 4 * H), dtype=bf16),
        b_lstm=nrm(next(ki), (n_layers, 1, 4 * H)),
        # Bert self-attention (Q,K,V fused into one weight)
        w_qkv=nrm(next(ki), (H, 3 * H), dtype=bf16), b_qkv=nrm(next(ki), (1, 3 * H)),
        w_ao=nrm(next(ki), (H, H), dtype=bf16), b_ao=nrm(next(ki), (1, H)),
        lnA_g=ones((1, H)), lnA_b=zeros((1, H)),
        # Bert FFN (intermediate_size == H)
        w_i=nrm(next(ki), (H, H), dtype=bf16), b_i=nrm(next(ki), (1, H)),
        w_o=nrm(next(ki), (H, H), dtype=bf16), b_o=nrm(next(ki), (1, H)),
        lnB_g=ones((1, H)), lnB_b=zeros((1, H)),
        # final fc (sigmoid defined on the module but never applied in forward)
        w_fc=nrm(next(ki), (1, H)), b_fc=nrm(next(ki), (1, 1)),
    )
    return p


if __name__ == "__main__":
    B, S = 2, 8
    H, E = 32, 16
    n_cate, n_cont = 3, 2
    n_layers, n_heads = 2, 4
    offset = 100

    key = jax.random.PRNGKey(0)
    k_param, k_cate, k_cont = jax.random.split(key, 3)

    params = init_params(k_param, offset=offset, E=E, H=H,
                         n_cate=n_cate, n_cont=n_cont, n_layers=n_layers)

    cate_x = jax.random.randint(k_cate, (B, S, n_cate), 1, offset, dtype=jnp.int32)
    cont_x = jax.random.normal(k_cont, (B, S, n_cont), jnp.float32)
    mask = jnp.concatenate(
        [jnp.ones((1, S), jnp.float32),
         jnp.concatenate([jnp.ones((1, 5), jnp.float32),
                          jnp.zeros((1, S - 5), jnp.float32)], axis=1)], axis=0)

    fwd = jax.jit(partial(lstmattn_forward, n_layers=n_layers, n_heads=n_heads))
    out = fwd(cate_x, cont_x, mask, params)
    jax.block_until_ready(out)
    assert out.shape == (B, S)
    print("KERNEL_OK")
</pallas_src>

<mosaic_0001>
module attributes {stable_mosaic.version = 11 : i64} {
  func.func @input_proj_kernel(%arg0: i32, %arg1: memref<16x48xbf16, #tpu.memory_space<vmem>>, %arg2: memref<16x2xf32, #tpu.memory_space<vmem>>, %arg3: memref<1x2xf32, #tpu.memory_space<vmem>>, %arg4: memref<1x2xf32, #tpu.memory_space<vmem>>, %arg5: memref<48x32xbf16, #tpu.memory_space<vmem>>, %arg6: memref<1x32xf32, #tpu.memory_space<vmem>>, %arg7: memref<1x32xf32, #tpu.memory_space<vmem>>, %arg8: memref<1x32xf32, #tpu.memory_space<vmem>>, %arg9: memref<2x32xbf16, #tpu.memory_space<vmem>>, %arg10: memref<1x32xf32, #tpu.memory_space<vmem>>, %arg11: memref<1x32xf32, #tpu.memory_space<vmem>>, %arg12: memref<1x32xf32, #tpu.memory_space<vmem>>, %arg13: memref<32x32xbf16, #tpu.memory_space<vmem>>, %arg14: memref<32x32xbf16, #tpu.memory_space<vmem>>, %arg15: memref<1x32xf32, #tpu.memory_space<vmem>>, %arg16: memref<1x32xf32, #tpu.memory_space<vmem>>, %arg17: memref<1x32xf32, #tpu.memory_space<vmem>>, %arg18: memref<32x128xbf16, #tpu.memory_space<vmem>>, %arg19: memref<1x128xf32, #tpu.memory_space<vmem>>, %arg20: memref<16x128xbf16, #tpu.memory_space<vmem>>) attributes {dimension_semantics = [#tpu.dimension_semantics<parallel>], iteration_bounds = array<i64: 1>, scalar_prefetch = 0 : i64, scratch_operands = 0 : i64, tpu.core_type = #tpu.core_type<tc>, window_params = [{transform_indices = @transform_0, window_bounds = array<i64: 16, 48>}, {transform_indices = @transform_1, window_bounds = array<i64: 16, 2>}, {pipeline_mode = #tpu.pipeline_mode<synchronous>, transform_indices = @transform_2, window_bounds = array<i64: 1, 2>}, {pipeline_mode = #tpu.pipeline_mode<synchronous>, transform_indices = @transform_3, window_bounds = array<i64: 1, 2>}, {pipeline_mode = #tpu.pipeline_mode<synchronous>, transform_indices = @transform_4, window_bounds = array<i64: 48, 32>}, {pipeline_mode = #tpu.pipeline_mode<synchronous>, transform_indices = @transform_5, window_bounds = array<i64: 1, 32>}, {pipeline_mode = #tpu.pipeline_mode<synchronous>, transform_indices = @transform_6, window_bounds = array<i64: 1, 32>}, {pipeline_mode = #tpu.pipeline_mode<synchronous>, transform_indices = @transform_7, window_bounds = array<i64: 1, 32>}, {pipeline_mode = #tpu.pipeline_mode<synchronous>, transform_indices = @transform_8, window_bounds = array<i64: 2, 32>}, {pipeline_mode = #tpu.pipeline_mode<synchronous>, transform_indices = @transform_9, window_bounds = array<i64: 1, 32>}, {pipeline_mode = #tpu.pipeline_mode<synchronous>, transform_indices = @transform_10, window_bounds = array<i64: 1, 32>}, {pipeline_mode = #tpu.pipeline_mode<synchronous>, transform_indices = @transform_11, window_bounds = array<i64: 1, 32>}, {pipeline_mode = #tpu.pipeline_mode<synchronous>, transform_indices = @transform_12, window_bounds = array<i64: 32, 32>}, {pipeline_mode = #tpu.pipeline_mode<synchronous>, transform_indices = @transform_13, window_bounds = array<i64: 32, 32>}, {pipeline_mode = #tpu.pipeline_mode<synchronous>, transform_indices = @transform_14, window_bounds = array<i64: 1, 32>}, {pipeline_mode = #tpu.pipeline_mode<synchronous>, transform_indices = @transform_15, window_bounds = array<i64: 1, 32>}, {pipeline_mode = #tpu.pipeline_mode<synchronous>, transform_indices = @transform_16, window_bounds = array<i64: 1, 32>}, {pipeline_mode = #tpu.pipeline_mode<synchronous>, transform_indices = @transform_17, window_bounds = array<i64: 32, 128>}, {pipeline_mode = #tpu.pipeline_mode<synchronous>, transform_indices = @transform_18, window_bounds = array<i64: 1, 128>}, {transform_indices = @transform_19, window_bounds = array<i64: 16, 128>}]} {
    %c0 = arith.constant 0 : index
    %c0_0 = arith.constant 0 : index
    %0 = vector.load %arg1[%c0, %c0_0] : memref<16x48xbf16, #tpu.memory_space<vmem>>, vector<16x48xbf16>
    %c0_1 = arith.constant 0 : index
    %c0_2 = arith.constant 0 : index
    %1 = vector.load %arg5[%c0_1, %c0_2] : memref<48x32xbf16, #tpu.memory_space<vmem>>, vector<48x32xbf16>
    %cst = arith.constant dense<0.000000e+00> : vector<16x32xf32>
    %2 = tpu.matmul %0, %1, %cst {dimension_numbers = #tpu.dot_dimension_numbers<[1], [0], [0], [1], [0, 0, 1, 1], [], []>} : vector<16x48xbf16>, vector<48x32xbf16>, vector<16x32xf32> -> vector<16x32xf32>
    %c0_3 = arith.constant 0 : index
    %c0_4 = arith.constant 0 : index
    %3 = vector.load %arg6[%c0_3, %c0_4] : memref<1x32xf32, #tpu.memory_space<vmem>>, vector<1x32xf32>
    %4 = vector.broadcast %3 : vector<1x32xf32> to vector<16x32xf32>
    %5 = arith.addf %2, %4 : vector<16x32xf32>
    %c0_5 = arith.constant 0 : index
    %c0_6 = arith.constant 0 : index
    %6 = vector.load %arg7[%c0_5, %c0_6] : memref<1x32xf32, #tpu.memory_space<vmem>>, vector<1x32xf32>
    %c0_7 = arith.constant 0 : index
    %c0_8 = arith.constant 0 : index
    %7 = vector.load %arg8[%c0_7, %c0_8] : memref<1x32xf32, #tpu.memory_space<vmem>>, vector<1x32xf32>
    %cst_9 = arith.constant dense<0.000000e+00> : vector<16xf32>
    %8 = vector.multi_reduction <add>, %5, %cst_9 [1] : vector<16x32xf32> to vector<16xf32>
    %9 = vector.shape_cast %8 : vector<16xf32> to vector<16x1xf32>
    %cst_10 = arith.constant 3.200000e+01 : f32
    %10 = vector.broadcast %cst_10 : f32 to vector<16x1xf32>
    %11 = arith.divf %9, %10 : vector<16x1xf32>
    %12 = vector.broadcast %11 : vector<16x1xf32> to vector<16x32xf32>
    %13 = arith.subf %5, %12 : vector<16x32xf32>
    %14 = arith.mulf %13, %13 : vector<16x32xf32>
    %cst_11 = arith.constant dense<0.000000e+00> : vector<16xf32>
    %15 = vector.multi_reduction <add>, %14, %cst_11 [1] : vector<16x32xf32> to vector<16xf32>
    %16 = vector.shape_cast %15 : vector<16xf32> to vector<16x1xf32>
    %cst_12 = arith.constant 3.200000e+01 : f32
    %17 = vector.broadcast %cst_12 : f32 to vector<16x1xf32>
    %18 = arith.divf %16, %17 : vector<16x1xf32>
    %19 = vector.broadcast %11 : vector<16x1xf32> to vector<16x32xf32>
    %20 = arith.subf %5, %19 : vector<16x32xf32>
    %cst_13 = arith.constant 9.99999974E-6 : f32
    %21 = vector.broadcast %cst_13 : f32 to vector<16x1xf32>
    %22 = arith.addf %18, %21 : vector<16x1xf32>
    %23 = math.rsqrt %22 : vector<16x1xf32>
    %24 = vector.broadcast %23 : vector<16x1xf32> to vector<16x32xf32>
    %25 = arith.mulf %20, %24 : vector<16x32xf32>
    %26 = vector.broadcast %6 : vector<1x32xf32> to vector<16x32xf32>
    %27 = arith.mulf %25, %26 : vector<16x32xf32>
    %28 = vector.broadcast %7 : vector<1x32xf32> to vector<16x32xf32>
    %29 = arith.addf %27, %28 : vector<16x32xf32>
    %c0_14 = arith.constant 0 : index
    %c0_15 = arith.constant 0 : index
    %30 = vector.load %arg2[%c0_14, %c0_15] : memref<16x2xf32, #tpu.memory_space<vmem>>, vector<16x2xf32>
    %c0_16 = arith.constant 0 : index
    %c0_17 = arith.constant 0 : index
    %31 = vector.load %arg3[%c0_16, %c0_17] : memref<1x2xf32, #tpu.memory_space<vmem>>, vector<1x2xf32>
    %32 = vector.broadcast %31 : vector<1x2xf32> to vector<16x2xf32>
    %33 = arith.mulf %30, %32 : vector<16x2xf32>
    %c0_18 = arith.constant 0 : index
    %c0_19 = arith.constant 0 : index
    %34 = vector.load %arg4[%c0_18, %c0_19] : memref<1x2xf32, #tpu.memory_space<vmem>>, vector<1x2xf32>
    %35 = vector.broadcast %34 : vector<1x2xf32> to vector<16x2xf32>
    %36 = arith.addf %33, %35 : vector<16x2xf32>
    %37 = arith.truncf %36 : vector<16x2xf32> to vector<16x2xbf16>
    %c0_20 = arith.constant 0 : index
    %c0_21 = arith.constant 0 : index
    %38 = vector.load %arg9[%c0_20, %c0_21] : memref<2x32xbf16, #tpu.memory_space<vmem>>, vector<2x32xbf16>
    %cst_22 = arith.constant dense<0.000000e+00> : vector<16x32xf32>
    %39 = tpu.matmul %37, %38, %cst_22 {dimension_numbers = #tpu.dot_dimension_numbers<[1], [0], [0], [1], [0, 0, 1, 1], [], []>} : vector<16x2xbf16>, vector<2x32xbf16>, vector<16x32xf32> -> vector<16x32xf32>
    %c0_23 = arith.constant 0 : index
    %c0_24 = arith.constant 0 : index
    %40 = vector.load %arg10[%c0_23, %c0_24] : memref<1x32xf32, #tpu.memory_space<vmem>>, vector<1x32xf32>
    %41 = vector.broadcast %40 : vector<1x32xf32> to vector<16x32xf32>
    %42 = arith.addf %39, %41 : vector<16x32xf32>
    %c0_25 = arith.constant 0 : index
    %c0_26 = arith.constant 0 : index
    %43 = vector.load %arg11[%c0_25, %c0_26] : memref<1x32xf32, #tpu.memory_space<vmem>>, vector<1x32xf32>
    %c0_27 = arith.constant 0 : index
    %c0_28 = arith.constant 0 : index
    %44 = vector.load %arg12[%c0_27, %c0_28] : memref<1x32xf32, #tpu.memory_space<vmem>>, vector<1x32xf32>
    %cst_29 = arith.constant dense<0.000000e+00> : vector<16xf32>
    %45 = vector.multi_reduction <add>, %42, %cst_29 [1] : vector<16x32xf32> to vector<16xf32>
    %46 = vector.shape_cast %45 : vector<16xf32> to vector<16x1xf32>
    %cst_30 = arith.constant 3.200000e+01 : f32
    %47 = vector.broadcast %cst_30 : f32 to vector<16x1xf32>
    %48 = arith.divf %46, %47 : vector<16x1xf32>
    %49 = vector.broadcast %48 : vector<16x1xf32> to vector<16x32xf32>
    %50 = arith.subf %42, %49 : vector<16x32xf32>
    %51 = arith.mulf %50, %50 : vector<16x32xf32>
    %cst_31 = arith.constant dense<0.000000e+00> : vector<16xf32>
    %52 = vector.multi_reduction <add>, %51, %cst_31 [1] : vector<16x32xf32> to vector<16xf32>
    %53 = vector.shape_cast %52 : vector<16xf32> to vector<16x1xf32>
    %cst_32 = arith.constant 3.200000e+01 : f32
    %54 = vector.broadcast %cst_32 : f32 to vector<16x1xf32>
    %55 = arith.divf %53, %54 : vector<16x1xf32>
    %56 = vector.broadcast %48 : vector<16x1xf32> to vector<16x32xf32>
    %57 = arith.subf %42, %56 : vector<16x32xf32>
    %cst_33 = arith.constant 9.99999974E-6 : f32
    %58 = vector.broadcast %cst_33 : f32 to vector<16x1xf32>
    %59 = arith.addf %55, %58 : vector<16x1xf32>
    %60 = math.rsqrt %59 : vector<16x1xf32>
    %61 = vector.broadcast %60 : vector<16x1xf32> to vector<16x32xf32>
    %62 = arith.mulf %57, %61 : vector<16x32xf32>
    %63 = vector.broadcast %43 : vector<1x32xf32> to vector<16x32xf32>
    %64 = arith.mulf %62, %63 : vector<16x32xf32>
    %65 = vector.broadcast %44 : vector<1x32xf32> to vector<16x32xf32>
    %66 = arith.addf %64, %65 : vector<16x32xf32>
    %cst_34 = arith.constant 0.000000e+00 : f32
    %67 = vector.broadcast %cst_34 : f32 to vector<16x32xf32>
    %68 = arith.maximumf %29, %67 : vector<16x32xf32>
    %69 = arith.truncf %68 : vector<16x32xf32> to vector<16x32xbf16>
    %c0_35 = arith.constant 0 : index
    %c0_36 = arith.constant 0 : index
    %70 = vector.load %arg13[%c0_35, %c0_36] : memref<32x32xbf16, #tpu.memory_space<vmem>>, vector<32x32xbf16>
    %cst_37 = arith.constant dense<0.000000e+00> : vector<16x32xf32>
    %71 = tpu.matmul %69, %70, %cst_37 {dimension_numbers = #tpu.dot_dimension_numbers<[1], [0], [0], [1], [0, 0, 1, 1], [], []>} : vector<16x32xbf16>, vector<32x32xbf16>, vector<16x32xf32> -> vector<16x32xf32>
    %cst_38 = arith.constant 0.000000e+00 : f32
    %72 = vector.broadcast %cst_38 : f32 to vector<16x32xf32>
    %73 = arith.maximumf %66, %72 : vector<16x32xf32>
    %74 = arith.truncf %73 : vector<16x32xf32> to vector<16x32xbf16>
    %c0_39 = arith.constant 0 : index
    %c0_40 = arith.constant 0 : index
    %75 = vector.load %arg14[%c0_39, %c0_40] : memref<32x32xbf16, #tpu.memory_space<vmem>>, vector<32x32xbf16>
    %cst_41 = arith.constant dense<0.000000e+00> : vector<16x32xf32>
    %76 = tpu.matmul %74, %75, %cst_41 {dimension_numbers = #tpu.dot_dimension_numbers<[1], [0], [0], [1], [0, 0, 1, 1], [], []>} : vector<16x32xbf16>, vector<32x32xbf16>, vector<16x32xf32> -> vector<16x32xf32>
    %77 = arith.addf %71, %76 : vector<16x32xf32>
    %c0_42 = arith.constant 0 : index
    %c0_43 = arith.constant 0 : index
    %78 = vector.load %arg15[%c0_42, %c0_43] : memref<1x32xf32, #tpu.memory_space<vmem>>, vector<1x32xf32>
    %79 = vector.broadcast %78 : vector<1x32xf32> to vector<16x32xf32>
    %80 = arith.addf %77, %79 : vector<16x32xf32>
    %c0_44 = arith.constant 0 : index
    %c0_45 = arith.constant 0 : index
    %81 = vector.load %arg16[%c0_44, %c0_45] : memref<1x32xf32, #tpu.memory_space<vmem>>, vector<1x32xf32>
    %c0_46 = arith.constant 0 : index
    %c0_47 = arith.constant 0 : index
    %82 = vector.load %arg17[%c0_46, %c0_47] : memref<1x32xf32, #tpu.memory_space<vmem>>, vector<1x32xf32>
    %cst_48 = arith.constant dense<0.000000e+00> : vector<16xf32>
    %83 = vector.multi_reduction <add>, %80, %cst_48 [1] : vector<16x32xf32> to vector<16xf32>
    %84 = vector.shape_cast %83 : vector<16xf32> to vector<16x1xf32>
    %cst_49 = arith.constant 3.200000e+01 : f32
    %85 = vector.broadcast %cst_49 : f32 to vector<16x1xf32>
    %86 = arith.divf %84, %85 : vector<16x1xf32>
    %87 = vector.broadcast %86 : vector<16x1xf32> to vector<16x32xf32>
    %88 = arith.subf %80, %87 : vector<16x32xf32>
    %89 = arith.mulf %88, %88 : vector<16x32xf32>
    %cst_50 = arith.constant dense<0.000000e+00> : vector<16xf32>
    %90 = vector.multi_reduction <add>, %89, %cst_50 [1] : vector<16x32xf32> to vector<16xf32>
    %91 = vector.shape_cast %90 : vector<16xf32> to vector<16x1xf32>
    %cst_51 = arith.constant 3.200000e+01 : f32
    %92 = vector.broadcast %cst_51 : f32 to vector<16x1xf32>
    %93 = arith.divf %91, %92 : vector<16x1xf32>
    %94 = vector.broadcast %86 : vector<16x1xf32> to vector<16x32xf32>
    %95 = arith.subf %80, %94 : vector<16x32xf32>
    %cst_52 = arith.constant 9.99999974E-6 : f32
    %96 = vector.broadcast %cst_52 : f32 to vector<16x1xf32>
    %97 = arith.addf %93, %96 : vector<16x1xf32>
    %98 = math.rsqrt %97 : vector<16x1xf32>
    %99 = vector.broadcast %98 : vector<16x1xf32> to vector<16x32xf32>
    %100 = arith.mulf %95, %99 : vector<16x32xf32>
    %101 = vector.broadcast %81 : vector<1x32xf32> to vector<16x32xf32>
    %102 = arith.mulf %100, %101 : vector<16x32xf32>
    %103 = vector.broadcast %82 : vector<1x32xf32> to vector<16x32xf32>
    %104 = arith.addf %102, %103 : vector<16x32xf32>
    %105 = arith.truncf %104 : vector<16x32xf32> to vector<16x32xbf16>
    %c0_53 = arith.constant 0 : index
    %c0_54 = arith.constant 0 : index
    %106 = vector.load %arg18[%c0_53, %c0_54] : memref<32x128xbf16, #tpu.memory_space<vmem>>, vector<32x128xbf16>
    %cst_55 = arith.constant dense<0.000000e+00> : vector<16x128xf32>
    %107 = tpu.matmul %105, %106, %cst_55 {dimension_numbers = #tpu.dot_dimension_numbers<[1], [0], [0], [1], [0, 0, 1, 1], [], []>} : vector<16x32xbf16>, vector<32x128xbf16>, vector<16x128xf32> -> vector<16x128xf32>
    %c0_56 = arith.constant 0 : index
    %c0_57 = arith.constant 0 : index
    %108 = vector.load %arg19[%c0_56, %c0_57] : memref<1x128xf32, #tpu.memory_space<vmem>>, vector<1x128xf32>
    %109 = vector.broadcast %108 : vector<1x128xf32> to vector<16x128xf32>
    %110 = arith.addf %107, %109 : vector<16x128xf32>
    %111 = arith.truncf %110 : vector<16x128xf32> to vector<16x128xbf16>
    %c0_58 = arith.constant 0 : index
    %c0_59 = arith.constant 0 : index
    %112 = vector.load %arg20[%c0_58, %c0_59] : memref<16x128xbf16, #tpu.memory_space<vmem>>, vector<16x128xbf16>
    tpu.vector_store %arg20[%c0_58, %c0_59], %111 {strides = array<i32>} : memref<16x128xbf16, #tpu.memory_space<vmem>>, vector<16x128xbf16>,
    return
  }
  func.func @transform_0(%arg0: i32) -> (i32, i32) {
    %c0_i32 = arith.constant 0 : i32
    %c0_i32_0 = arith.constant 0 : i32
    return %arg0, %c0_i32 : i32, i32
  }
  func.func @transform_1(%arg0: i32) -> (i32, i32) {
    %c0_i32 = arith.constant 0 : i32
    %c0_i32_0 = arith.constant 0 : i32
    return %arg0, %c0_i32 : i32, i32
  }
  func.func @transform_2(%arg0: i32) -> (i32, i32) {
    %c0_i32 = arith.constant 0 : i32
    %c0_i32_0 = arith.constant 0 : i32
    %c0_i32_1 = arith.constant 0 : i32
    return %c0_i32, %c0_i32_0 : i32, i32
  }
  func.func @transform_3(%arg0: i32) -> (i32, i32) {
    %c0_i32 = arith.constant 0 : i32
    %c0_i32_0 = arith.constant 0 : i32
    %c0_i32_1 = arith.constant 0 : i32
    return %c0_i32, %c0_i32_0 : i32, i32
  }
  func.func @transform_4(%arg0: i32) -> (i32, i32) {
    %c0_i32 = arith.constant 0 : i32
    %c0_i32_0 = arith.constant 0 : i32
    %c0_i32_1 = arith.constant 0 : i32
    return %c0_i32, %c0_i32_0 : i32, i32
  }
  func.func @transform_5(%arg0: i32) -> (i32, i32) {
    %c0_i32 = arith.constant 0 : i32
    %c0_i32_0 = arith.constant 0 : i32
    %c0_i32_1 = arith.constant 0 : i32
    return %c0_i32, %c0_i32_0 : i32, i32
  }
  func.func @transform_6(%arg0: i32) -> (i32, i32) {
    %c0_i32 = arith.constant 0 : i32
    %c0_i32_0 = arith.constant 0 : i32
    %c0_i32_1 = arith.constant 0 : i32
    return %c0_i32, %c0_i32_0 : i32, i32
  }
  func.func @transform_7(%arg0: i32) -> (i32, i32) {
    %c0_i32 = arith.constant 0 : i32
    %c0_i32_0 = arith.constant 0 : i32
    %c0_i32_1 = arith.constant 0 : i32
    return %c0_i32, %c0_i32_0 : i32, i32
  }
  func.func @transform_8(%arg0: i32) -> (i32, i32) {
    %c0_i32 = arith.constant 0 : i32
    %c0_i32_0 = arith.constant 0 : i32
    %c0_i32_1 = arith.constant 0 : i32
    return %c0_i32, %c0_i32_0 : i32, i32
  }
  func.func @transform_9(%arg0: i32) -> (i32, i32) {
    %c0_i32 = arith.constant 0 : i32
    %c0_i32_0 = arith.constant 0 : i32
    %c0_i32_1 = arith.constant 0 : i32
    return %c0_i32, %c0_i32_0 : i32, i32
  }
  func.func @transform_10(%arg0: i32) -> (i32, i32) {
    %c0_i32 = arith.constant 0 : i32
    %c0_i32_0 = arith.constant 0 : i32
    %c0_i32_1 = arith.constant 0 : i32
    return %c0_i32, %c0_i32_0 : i32, i32
  }
  func.func @transform_11(%arg0: i32) -> (i32, i32) {
    %c0_i32 = arith.constant 0 : i32
    %c0_i32_0 = arith.constant 0 : i32
    %c0_i32_1 = arith.constant 0 : i32
    return %c0_i32, %c0_i32_0 : i32, i32
  }
  func.func @transform_12(%arg0: i32) -> (i32, i32) {
    %c0_i32 = arith.constant 0 : i32
    %c0_i32_0 = arith.constant 0 : i32
    %c0_i32_1 = arith.constant 0 : i32
    return %c0_i32, %c0_i32_0 : i32, i32
  }
  func.func @transform_13(%arg0: i32) -> (i32, i32) {
    %c0_i32 = arith.constant 0 : i32
    %c0_i32_0 = arith.constant 0 : i32
    %c0_i32_1 = arith.constant 0 : i32
    return %c0_i32, %c0_i32_0 : i32, i32
  }
  func.func @transform_14(%arg0: i32) -> (i32, i32) {
    %c0_i32 = arith.constant 0 : i32
    %c0_i32_0 = arith.constant 0 : i32
    %c0_i32_1 = arith.constant 0 : i32
    return %c0_i32, %c0_i32_0 : i32, i32
  }
  func.func @transform_15(%arg0: i32) -> (i32, i32) {
    %c0_i32 = arith.constant 0 : i32
    %c0_i32_0 = arith.constant 0 : i32
    %c0_i32_1 = arith.constant 0 : i32
    return %c0_i32, %c0_i32_0 : i32, i32
  }
  func.func @transform_16(%arg0: i32) -> (i32, i32) {
    %c0_i32 = arith.constant 0 : i32
    %c0_i32_0 = arith.constant 0 : i32
    %c0_i32_1 = arith.constant 0 : i32
    return %c0_i32, %c0_i32_0 : i32, i32
  }
  func.func @transform_17(%arg0: i32) -> (i32, i32) {
    %c0_i32 = arith.constant 0 : i32
    %c0_i32_0 = arith.constant 0 : i32
    %c0_i32_1 = arith.constant 0 : i32
    return %c0_i32, %c0_i32_0 : i32, i32
  }
  func.func @transform_18(%arg0: i32) -> (i32, i32) {
    %c0_i32 = arith.constant 0 : i32
    %c0_i32_0 = arith.constant 0 : i32
    %c0_i32_1 = arith.constant 0 : i32
    return %c0_i32, %c0_i32_0 : i32, i32
  }
  func.func @transform_19(%arg0: i32) -> (i32, i32) {
    %c0_i32 = arith.constant 0 : i32
    %c0_i32_0 = arith.constant 0 : i32
    return %arg0, %c0_i32 : i32, i32
  }
}

module attributes {stable_mosaic.version = 11 : i64} {
  func.func @attn_fc_kernel(%arg0: i32, %arg1: memref<2x8x32xf32, #tpu.memory_space<vmem>>, %arg2: memref<2x1x8xf32, #tpu.memory_space<vmem>>, %arg3: memref<32x96xbf16, #tpu.memory_space<vmem>>, %arg4: memref<1x96xf32, #tpu.memory_space<vmem>>, %arg5: memref<32x32xbf16, #tpu.memory_space<vmem>>, %arg6: memref<1x32xf32, #tpu.memory_space<vmem>>, %arg7: memref<1x32xf32, #tpu.memory_space<vmem>>, %arg8: memref<1x32xf32, #tpu.memory_space<vmem>>, %arg9: memref<32x32xbf16, #tpu.memory_space<vmem>>, %arg10: memref<1x32xf32, #tpu.memory_space<vmem>>, %arg11: memref<32x32xbf16, #tpu.memory_space<vmem>>, %arg12: memref<1x32xf32, #tpu.memory_space<vmem>>, %arg13: memref<1x32xf32, #tpu.memory_space<vmem>>, %arg14: memref<1x32xf32, #tpu.memory_space<vmem>>, %arg15: memref<1x32xf32, #tpu.memory_space<vmem>>, %arg16: memref<1x1xf32, #tpu.memory_space<vmem>>, %arg17: memref<2x1x8xf32, #tpu.memory_space<vmem>>, %arg18: memref<2x8x32xf32, #tpu.memory_space<vmem>>) attributes {dimension_semantics = [#tpu.dimension_semantics<parallel>], iteration_bounds = array<i64: 1>, scalar_prefetch = 0 : i64, scratch_operands = 1 : i64, tpu.core_type = #tpu.core_type<tc>, window_params = [{transform_indices = @transform_0, window_bounds = array<i64: 2, 8, 32>}, {transform_indices = @transform_1, window_bounds = array<i64: 2, 1, 8>}, {pipeline_mode = #tpu.pipeline_mode<synchronous>, transform_indices = @transform_2, window_bounds = array<i64: 32, 96>}, {pipeline_mode = #tpu.pipeline_mode<synchronous>, transform_indices = @transform_3, window_bounds = array<i64: 1, 96>}, {pipeline_mode = #tpu.pipeline_mode<synchronous>, transform_indices = @transform_4, window_bounds = array<i64: 32, 32>}, {pipeline_mode = #tpu.pipeline_mode<synchronous>, transform_indices = @transform_5, window_bounds = array<i64: 1, 32>}, {pipeline_mode = #tpu.pipeline_mode<synchronous>, transform_indices = @transform_6, window_bounds = array<i64: 1, 32>}, {pipeline_mode = #tpu.pipeline_mode<synchronous>, transform_indices = @transform_7, window_bounds = array<i64: 1, 32>}, {pipeline_mode = #tpu.pipeline_mode<synchronous>, transform_indices = @transform_8, window_bounds = array<i64: 32, 32>}, {pipeline_mode = #tpu.pipeline_mode<synchronous>, transform_indices = @transform_9, window_bounds = array<i64: 1, 32>}, {pipeline_mode = #tpu.pipeline_mode<synchronous>, transform_indices = @transform_10, window_bounds = array<i64: 32, 32>}, {pipeline_mode = #tpu.pipeline_mode<synchronous>, transform_indices = @transform_11, window_bounds = array<i64: 1, 32>}, {pipeline_mode = #tpu.pipeline_mode<synchronous>, transform_indices = @transform_12, window_bounds = array<i64: 1, 32>}, {pipeline_mode = #tpu.pipeline_mode<synchronous>, transform_indices = @transform_13, window_bounds = array<i64: 1, 32>}, {pipeline_mode = #tpu.pipeline_mode<synchronous>, transform_indices = @transform_14, window_bounds = array<i64: 1, 32>}, {pipeline_mode = #tpu.pipeline_mode<synchronous>, transform_indices = @transform_15, window_bounds = array<i64: 1, 1>}, {transform_indices = @transform_16, window_bounds = array<i64: 2, 1, 8>}]} {
    %c0 = arith.constant 0 : index
    %c0_0 = arith.constant 0 : index
    %c0_1 = arith.constant 0 : index
    %0 = vector.load %arg1[%c0, %c0_0, %c0_1] : memref<2x8x32xf32, #tpu.memory_space<vmem>>, vector<2x8x32xf32>
    %1 = vector.shape_cast %0 : vector<2x8x32xf32> to vector<16x32xf32>
    %c0_2 = arith.constant 0 : index
    %c0_3 = arith.constant 0 : index
    %c0_4 = arith.constant 0 : index
    %2 = vector.load %arg2[%c0_2, %c0_3, %c0_4] : memref<2x1x8xf32, #tpu.memory_space<vmem>>, vector<2x1x8xf32>
    %cst = arith.constant 1.000000e+00 : f32
    %3 = vector.broadcast %cst : f32 to vector<2x1x8xf32>
    %4 = arith.subf %3, %2 : vector<2x1x8xf32>
    %cst_5 = arith.constant -1.000000e+04 : f32
    %5 = vector.broadcast %cst_5 : f32 to vector<2x1x8xf32>
    %6 = arith.mulf %4, %5 : vector<2x1x8xf32>
    %7 = arith.truncf %1 : vector<16x32xf32> to vector<16x32xbf16>
    %c0_6 = arith.constant 0 : index
    %c0_7 = arith.constant 0 : index
    %8 = vector.load %arg3[%c0_6, %c0_7] : memref<32x96xbf16, #tpu.memory_space<vmem>>, vector<32x96xbf16>
    %cst_8 = arith.constant dense<0.000000e+00> : vector<16x96xf32>
    %9 = tpu.matmul %7, %8, %cst_8 {dimension_numbers = #tpu.dot_dimension_numbers<[1], [0], [0], [1], [0, 0, 1, 1], [], []>} : vector<16x32xbf16>, vector<32x96xbf16>, vector<16x96xf32> -> vector<16x96xf32>
    %c0_9 = arith.constant 0 : index
    %c0_10 = arith.constant 0 : index
    %10 = vector.load %arg4[%c0_9, %c0_10] : memref<1x96xf32, #tpu.memory_space<vmem>>, vector<1x96xf32>
    %11 = vector.broadcast %10 : vector<1x96xf32> to vector<16x96xf32>
    %12 = arith.addf %9, %11 : vector<16x96xf32>
    %13 = vector.extract_strided_slice %12 {offsets = [0, 0], sizes = [16, 32], strides = [1, 1]} : vector<16x96xf32> to vector<16x32xf32>
    %14 = vector.shape_cast %13 : vector<16x32xf32> to vector<2x8x32xf32>
    %15 = vector.extract_strided_slice %12 {offsets = [0, 32], sizes = [16, 32], strides = [1, 1]} : vector<16x96xf32> to vector<16x32xf32>
    %16 = vector.shape_cast %15 : vector<16x32xf32> to vector<2x8x32xf32>
    %17 = vector.extract_strided_slice %12 {offsets = [0, 64], sizes = [16, 32], strides = [1, 1]} : vector<16x96xf32> to vector<16x32xf32>
    %18 = vector.shape_cast %17 : vector<16x32xf32> to vector<2x8x32xf32>
    %19 = vector.extract_strided_slice %14 {offsets = [0, 0, 0], sizes = [2, 8, 8], strides = [1, 1, 1]} : vector<2x8x32xf32> to vector<2x8x8xf32>
    %20 = arith.truncf %19 : vector<2x8x8xf32> to vector<2x8x8xbf16>
    %21 = vector.extract_strided_slice %16 {offsets = [0, 0, 0], sizes = [2, 8, 8], strides = [1, 1, 1]} : vector<2x8x32xf32> to vector<2x8x8xf32>
    %22 = arith.truncf %21 : vector<2x8x8xf32> to vector<2x8x8xbf16>
    %23 = vector.extract_strided_slice %18 {offsets = [0, 0, 0], sizes = [2, 8, 8], strides = [1, 1, 1]} : vector<2x8x32xf32> to vector<2x8x8xf32>
    %24 = arith.truncf %23 : vector<2x8x8xf32> to vector<2x8x8xbf16>
    "tpu.trace_start"() <{level = 10 : i32, message = "bqd,bkd->bqk"}> : () -> ()
    %cst_11 = arith.constant dense<0.000000e+00> : vector<2x8x8xf32>
    %25 = tpu.matmul %20, %22, %cst_11 {dimension_numbers = #tpu.dot_dimension_numbers<[2], [2], [1], [1], [0, 0, 0, 1, 1, 1], [0], [0]>} : vector<2x8x8xbf16>, vector<2x8x8xbf16>, vector<2x8x8xf32> -> vector<2x8x8xf32>
    "tpu.trace_stop"() : () -> ()
    %cst_12 = arith.constant 0.353553385 : f32
    %26 = vector.broadcast %cst_12 : f32 to vector<2x8x8xf32>
    %27 = arith.mulf %25, %26 : vector<2x8x8xf32>
    %28 = vector.broadcast %6 : vector<2x1x8xf32> to vector<2x8x8xf32>
    %29 = arith.addf %27, %28 : vector<2x8x8xf32>
    %cst_13 = arith.constant dense<0xFF800000> : vector<2x8xf32>
    %30 = vector.multi_reduction <maximumf>, %29, %cst_13 [2] : vector<2x8x8xf32> to vector<2x8xf32>
    %31 = vector.shape_cast %30 : vector<2x8xf32> to vector<2x8x1xf32>
    %32 = vector.broadcast %31 : vector<2x8x1xf32> to vector<2x8x8xf32>
    %33 = arith.subf %29, %32 : vector<2x8x8xf32>
    %34 = math.exp %33 : vector<2x8x8xf32>
    %cst_14 = arith.constant dense<0.000000e+00> : vector<2x8xf32>
    %35 = vector.multi_reduction <add>, %34, %cst_14 [2] : vector<2x8x8xf32> to vector<2x8xf32>
    %36 = vector.shape_cast %35 : vector<2x8xf32> to vector<2x8x1xf32>
    %37 = tpu.reciprocal %36 {approx = true} : vector<2x8x1xf32> -> vector<2x8x1xf32>
    %38 = vector.broadcast %37 : vector<2x8x1xf32> to vector<2x8x8xf32>
    %39 = arith.mulf %34, %38 : vector<2x8x8xf32>
    %40 = arith.truncf %39 : vector<2x8x8xf32> to vector<2x8x8xbf16>
    "tpu.trace_start"() <{level = 10 : i32, message = "bqk,bkd->bqd"}> : () -> ()
    %cst_15 = arith.constant dense<0.000000e+00> : vector<2x8x8xf32>
    %41 = tpu.matmul %40, %24, %cst_15 {dimension_numbers = #tpu.dot_dimension_numbers<[2], [1], [1], [2], [0, 0, 0, 1, 1, 2], [0], [0]>} : vector<2x8x8xbf16>, vector<2x8x8xbf16>, vector<2x8x8xf32> -> vector<2x8x8xf32>
    "tpu.trace_stop"() : () -> ()
    %c0_16 = arith.constant 0 : index
    %c0_17 = arith.constant 0 : index
    %c0_18 = arith.constant 0 : index
    %42 = vector.load %arg18[%c0_16, %c0_17, %c0_18] : memref<2x8x32xf32, #tpu.memory_space<vmem>>, vector<2x8x8xf32>
    tpu.vector_store %arg18[%c0_16, %c0_17, %c0_18], %41 {strides = array<i32>} : memref<2x8x32xf32, #tpu.memory_space<vmem>>, vector<2x8x8xf32>,
    %43 = vector.extract_strided_slice %14 {offsets = [0, 0, 8], sizes = [2, 8, 8], strides = [1, 1, 1]} : vector<2x8x32xf32> to vector<2x8x8xf32>
    %44 = arith.truncf %43 : vector<2x8x8xf32> to vector<2x8x8xbf16>
    %45 = vector.extract_strided_slice %16 {offsets = [0, 0, 8], sizes = [2, 8, 8], strides = [1, 1, 1]} : vector<2x8x32xf32> to vector<2x8x8xf32>
    %46 = arith.truncf %45 : vector<2x8x8xf32> to vector<2x8x8xbf16>
    %47 = vector.extract_strided_slice %18 {offsets = [0, 0, 8], sizes = [2, 8, 8], strides = [1, 1, 1]} : vector<2x8x32xf32> to vector<2x8x8xf32>
    %48 = arith.truncf %47 : vector<2x8x8xf32> to vector<2x8x8xbf16>
    "tpu.trace_start"() <{level = 10 : i32, message = "bqd,bkd->bqk"}> : () -> ()
    %cst_19 = arith.constant dense<0.000000e+00> : vector<2x8x8xf32>
    %49 = tpu.matmul %44, %46, %cst_19 {dimension_numbers = #tpu.dot_dimension_numbers<[2], [2], [1], [1], [0, 0, 0, 1, 1, 1], [0], [0]>} : vector<2x8x8xbf16>, vector<2x8x8xbf16>, vector<2x8x8xf32> -> vector<2x8x8xf32>
    "tpu.trace_stop"() : () -> ()
    %cst_20 = arith.constant 0.353553385 : f32
    %50 = vector.broadcast %cst_20 : f32 to vector<2x8x8xf32>
    %51 = arith.mulf %49, %50 : vector<2x8x8xf32>
    %52 = vector.broadcast %6 : vector<2x1x8xf32> to vector<2x8x8xf32>
    %53 = arith.addf %51, %52 : vector<2x8x8xf32>
    %cst_21 = arith.constant dense<0xFF800000> : vector<2x8xf32>
    %54 = vector.multi_reduction <maximumf>, %53, %cst_21 [2] : vector<2x8x8xf32> to vector<2x8xf32>
    %55 = vector.shape_cast %54 : vector<2x8xf32> to vector<2x8x1xf32>
    %56 = vector.broadcast %55 : vector<2x8x1xf32> to vector<2x8x8xf32>
    %57 = arith.subf %53, %56 : vector<2x8x8xf32>
    %58 = math.exp %57 : vector<2x8x8xf32>
    %cst_22 = arith.constant dense<0.000000e+00> : vector<2x8xf32>
    %59 = vector.multi_reduction <add>, %58, %cst_22 [2] : vector<2x8x8xf32> to vector<2x8xf32>
    %60 = vector.shape_cast %59 : vector<2x8xf32> to vector<2x8x1xf32>
    %61 = tpu.reciprocal %60 {approx = true} : vector<2x8x1xf32> -> vector<2x8x1xf32>
    %62 = vector.broadcast %61 : vector<2x8x1xf32> to vector<2x8x8xf32>
    %63 = arith.mulf %58, %62 : vector<2x8x8xf32>
    %64 = arith.truncf %63 : vector<2x8x8xf32> to vector<2x8x8xbf16>
    "tpu.trace_start"() <{level = 10 : i32, message = "bqk,bkd->bqd"}> : () -> ()
    %cst_23 = arith.constant dense<0.000000e+00> : vector<2x8x8xf32>
    %65 = tpu.matmul %64, %48, %cst_23 {dimension_numbers = #tpu.dot_dimension_numbers<[2], [1], [1], [2], [0, 0, 0, 1, 1, 2], [0], [0]>} : vector<2x8x8xbf16>, vector<2x8x8xbf16>, vector<2x8x8xf32> -> vector<2x8x8xf32>
    "tpu.trace_stop"() : () -> ()
    %c0_24 = arith.constant 0 : index
    %c0_25 = arith.constant 0 : index
    %c8 = arith.constant 8 : index
    %66 = vector.load %arg18[%c0_24, %c0_25, %c8] : memref<2x8x32xf32, #tpu.memory_space<vmem>>, vector<2x8x8xf32>
    tpu.vector_store %arg18[%c0_24, %c0_25, %c8], %65 {strides = array<i32>} : memref<2x8x32xf32, #tpu.memory_space<vmem>>, vector<2x8x8xf32>,
    %67 = vector.extract_strided_slice %14 {offsets = [0, 0, 16], sizes = [2, 8, 8], strides = [1, 1, 1]} : vector<2x8x32xf32> to vector<2x8x8xf32>
    %68 = arith.truncf %67 : vector<2x8x8xf32> to vector<2x8x8xbf16>
    %69 = vector.extract_strided_slice %16 {offsets = [0, 0, 16], sizes = [2, 8, 8], strides = [1, 1, 1]} : vector<2x8x32xf32> to vector<2x8x8xf32>
    %70 = arith.truncf %69 : vector<2x8x8xf32> to vector<2x8x8xbf16>
    %71 = vector.extract_strided_slice %18 {offsets = [0, 0, 16], sizes = [2, 8, 8], strides = [1, 1, 1]} : vector<2x8x32xf32> to vector<2x8x8xf32>
    %72 = arith.truncf %71 : vector<2x8x8xf32> to vector<2x8x8xbf16>
    "tpu.trace_start"() <{level = 10 : i32, message = "bqd,bkd->bqk"}> : () -> ()
    %cst_26 = arith.constant dense<0.000000e+00> : vector<2x8x8xf32>
    %73 = tpu.matmul %68, %70, %cst_26 {dimension_numbers = #tpu.dot_dimension_numbers<[2], [2], [1], [1], [0, 0, 0, 1, 1, 1], [0], [0]>} : vector<2x8x8xbf16>, vector<2x8x8xbf16>, vector<2x8x8xf32> -> vector<2x8x8xf32>
    "tpu.trace_stop"() : () -> ()
    %cst_27 = arith.constant 0.353553385 : f32
    %74 = vector.broadcast %cst_27 : f32 to vector<2x8x8xf32>
    %75 = arith.mulf %73, %74 : vector<2x8x8xf32>
    %76 = vector.broadcast %6 : vector<2x1x8xf32> to vector<2x8x8xf32>
    %77 = arith.addf %75, %76 : vector<2x8x8xf32>
    %cst_28 = arith.constant dense<0xFF800000> : vector<2x8xf32>
    %78 = vector.multi_reduction <maximumf>, %77, %cst_28 [2] : vector<2x8x8xf32> to vector<2x8xf32>
    %79 = vector.shape_cast %78 : vector<2x8xf32> to vector<2x8x1xf32>
    %80 = vector.broadcast %79 : vector<2x8x1xf32> to vector<2x8x8xf32>
    %81 = arith.subf %77, %80 : vector<2x8x8xf32>
    %82 = math.exp %81 : vector<2x8x8xf32>
    %cst_29 = arith.constant dense<0.000000e+00> : vector<2x8xf32>
    %83 = vector.multi_reduction <add>, %82, %cst_29 [2] : vector<2x8x8xf32> to vector<2x8xf32>
    %84 = vector.shape_cast %83 : vector<2x8xf32> to vector<2x8x1xf32>
    %85 = tpu.reciprocal %84 {approx = true} : vector<2x8x1xf32> -> vector<2x8x1xf32>
    %86 = vector.broadcast %85 : vector<2x8x1xf32> to vector<2x8x8xf32>
    %87 = arith.mulf %82, %86 : vector<2x8x8xf32>
    %88 = arith.truncf %87 : vector<2x8x8xf32> to vector<2x8x8xbf16>
    "tpu.trace_start"() <{level = 10 : i32, message = "bqk,bkd->bqd"}> : () -> ()
    %cst_30 = arith.constant dense<0.000000e+00> : vector<2x8x8xf32>
    %89 = tpu.matmul %88, %72, %cst_30 {dimension_numbers = #tpu.dot_dimension_numbers<[2], [1], [1], [2], [0, 0, 0, 1, 1, 2], [0], [0]>} : vector<2x8x8xbf16>, vector<2x8x8xbf16>, vector<2x8x8xf32> -> vector<2x8x8xf32>
    "tpu.trace_stop"() : () -> ()
    %c0_31 = arith.constant 0 : index
    %c0_32 = arith.constant 0 : index
    %c16 = arith.constant 16 : index
    %90 = vector.load %arg18[%c0_31, %c0_32, %c16] : memref<2x8x32xf32, #tpu.memory_space<vmem>>, vector<2x8x8xf32>
    tpu.vector_store %arg18[%c0_31, %c0_32, %c16], %89 {strides = array<i32>} : memref<2x8x32xf32, #tpu.memory_space<vmem>>, vector<2x8x8xf32>,
    %91 = vector.extract_strided_slice %14 {offsets = [0, 0, 24], sizes = [2, 8, 8], strides = [1, 1, 1]} : vector<2x8x32xf32> to vector<2x8x8xf32>
    %92 = arith.truncf %91 : vector<2x8x8xf32> to vector<2x8x8xbf16>
    %93 = vector.extract_strided_slice %16 {offsets = [0, 0, 24], sizes = [2, 8, 8], strides = [1, 1, 1]} : vector<2x8x32xf32> to vector<2x8x8xf32>
    %94 = arith.truncf %93 : vector<2x8x8xf32> to vector<2x8x8xbf16>
    %95 = vector.extract_strided_slice %18 {offsets = [0, 0, 24], sizes = [2, 8, 8], strides = [1, 1, 1]} : vector<2x8x32xf32> to vector<2x8x8xf32>
    %96 = arith.truncf %95 : vector<2x8x8xf32> to vector<2x8x8xbf16>
    "tpu.trace_start"() <{level = 10 : i32, message = "bqd,bkd->bqk"}> : () -> ()
    %cst_33 = arith.constant dense<0.000000e+00> : vector<2x8x8xf32>
    %97 = tpu.matmul %92, %94, %cst_33 {dimension_numbers = #tpu.dot_dimension_numbers<[2], [2], [1], [1], [0, 0, 0, 1, 1, 1], [0], [0]>} : vector<2x8x8xbf16>, vector<2x8x8xbf16>, vector<2x8x8xf32> -> vector<2x8x8xf32>
    "tpu.trace_stop"() : () -> ()
    %cst_34 = arith.constant 0.353553385 : f32
    %98 = vector.broadcast %cst_34 : f32 to vector<2x8x8xf32>
    %99 = arith.mulf %97, %98 : vector<2x8x8xf32>
    %100 = vector.broadcast %6 : vector<2x1x8xf32> to vector<2x8x8xf32>
    %101 = arith.addf %99, %100 : vector<2x8x8xf32>
    %cst_35 = arith.constant dense<0xFF800000> : vector<2x8xf32>
    %102 = vector.multi_reduction <maximumf>, %101, %cst_35 [2] : vector<2x8x8xf32> to vector<2x8xf32>
    %103 = vector.shape_cast %102 : vector<2x8xf32> to vector<2x8x1xf32>
    %104 = vector.broadcast %103 : vector<2x8x1xf32> to vector<2x8x8xf32>
    %105 = arith.subf %101, %104 : vector<2x8x8xf32>
    %106 = math.exp %105 : vector<2x8x8xf32>
    %cst_36 = arith.constant dense<0.000000e+00> : vector<2x8xf32>
    %107 = vector.multi_reduction <add>, %106, %cst_36 [2] : vector<2x8x8xf32> to vector<2x8xf32>
    %108 = vector.shape_cast %107 : vector<2x8xf32> to vector<2x8x1xf32>
    %109 = tpu.reciprocal %108 {approx = true} : vector<2x8x1xf32> -> vector<2x8x1xf32>
    %110 = vector.broadcast %109 : vector<2x8x1xf32> to vector<2x8x8xf32>
    %111 = arith.mulf %106, %110 : vector<2x8x8xf32>
    %112 = arith.truncf %111 : vector<2x8x8xf32> to vector<2x8x8xbf16>
    "tpu.trace_start"() <{level = 10 : i32, message = "bqk,bkd->bqd"}> : () -> ()
    %cst_37 = arith.constant dense<0.000000e+00> : vector<2x8x8xf32>
    %113 = tpu.matmul %112, %96, %cst_37 {dimension_numbers = #tpu.dot_dimension_numbers<[2], [1], [1], [2], [0, 0, 0, 1, 1, 2], [0], [0]>} : vector<2x8x8xbf16>, vector<2x8x8xbf16>, vector<2x8x8xf32> -> vector<2x8x8xf32>
    "tpu.trace_stop"() : () -> ()
    %c0_38 = arith.constant 0 : index
    %c0_39 = arith.constant 0 : index
    %c24 = arith.constant 24 : index
    %114 = vector.load %arg18[%c0_38, %c0_39, %c24] : memref<2x8x32xf32, #tpu.memory_space<vmem>>, vector<2x8x8xf32>
    tpu.vector_store %arg18[%c0_38, %c0_39, %c24], %113 {strides = array<i32>} : memref<2x8x32xf32, #tpu.memory_space<vmem>>, vector<2x8x8xf32>,
    %c0_40 = arith.constant 0 : index
    %c0_41 = arith.constant 0 : index
    %c0_42 = arith.constant 0 : index
    %115 = vector.load %arg18[%c0_40, %c0_41, %c0_42] : memref<2x8x32xf32, #tpu.memory_space<vmem>>, vector<2x8x32xf32>
    %116 = vector.shape_cast %115 : vector<2x8x32xf32> to vector<16x32xf32>
    %117 = arith.truncf %116 : vector<16x32xf32> to vector<16x32xbf16>
    %c0_43 = arith.constant 0 : index
    %c0_44 = arith.constant 0 : index
    %118 = vector.load %arg5[%c0_43, %c0_44] : memref<32x32xbf16, #tpu.memory_space<vmem>>, vector<32x32xbf16>
    %cst_45 = arith.constant dense<0.000000e+00> : vector<16x32xf32>
    %119 = tpu.matmul %117, %118, %cst_45 {dimension_numbers = #tpu.dot_dimension_numbers<[1], [0], [0], [1], [0, 0, 1, 1], [], []>} : vector<16x32xbf16>, vector<32x32xbf16>, vector<16x32xf32> -> vector<16x32xf32>
    %c0_46 = arith.constant 0 : index
    %c0_47 = arith.constant 0 : index
    %120 = vector.load %arg6[%c0_46, %c0_47] : memref<1x32xf32, #tpu.memory_space<vmem>>, vector<1x32xf32>
    %121 = vector.broadcast %120 : vector<1x32xf32> to vector<16x32xf32>
    %122 = arith.addf %119, %121 : vector<16x32xf32>
    %123 = arith.addf %122, %1 : vector<16x32xf32>
    %c0_48 = arith.constant 0 : index
    %c0_49 = arith.constant 0 : index
    %124 = vector.load %arg7[%c0_48, %c0_49] : memref<1x32xf32, #tpu.memory_space<vmem>>, vector<1x32xf32>
    %c0_50 = arith.constant 0 : index
    %c0_51 = arith.constant 0 : index
    %125 = vector.load %arg8[%c0_50, %c0_51] : memref<1x32xf32, #tpu.memory_space<vmem>>, vector<1x32xf32>
    %cst_52 = arith.constant dense<0.000000e+00> : vector<16xf32>
    %126 = vector.multi_reduction <add>, %123, %cst_52 [1] : vector<16x32xf32> to vector<16xf32>
    %127 = vector.shape_cast %126 : vector<16xf32> to vector<16x1xf32>
    %cst_53 = arith.constant 3.200000e+01 : f32
    %128 = vector.broadcast %cst_53 : f32 to vector<16x1xf32>
    %129 = arith.divf %127, %128 : vector<16x1xf32>
    %130 = vector.broadcast %129 : vector<16x1xf32> to vector<16x32xf32>
    %131 = arith.subf %123, %130 : vector<16x32xf32>
    %132 = arith.mulf %131, %131 : vector<16x32xf32>
    %cst_54 = arith.constant dense<0.000000e+00> : vector<16xf32>
    %133 = vector.multi_reduction <add>, %132, %cst_54 [1] : vector<16x32xf32> to vector<16xf32>
    %134 = vector.shape_cast %133 : vector<16xf32> to vector<16x1xf32>
    %cst_55 = arith.constant 3.200000e+01 : f32
    %135 = vector.broadcast %cst_55 : f32 to vector<16x1xf32>
    %136 = arith.divf %134, %135 : vector<16x1xf32>
    %137 = vector.broadcast %129 : vector<16x1xf32> to vector<16x32xf32>
    %138 = arith.subf %123, %137 : vector<16x32xf32>
    %cst_56 = arith.constant 9.99999996E-13 : f32
    %139 = vector.broadcast %cst_56 : f32 to vector<16x1xf32>
    %140 = arith.addf %136, %139 : vector<16x1xf32>
    %141 = math.rsqrt %140 : vector<16x1xf32>
    %142 = vector.broadcast %141 : vector<16x1xf32> to vector<16x32xf32>
    %143 = arith.mulf %138, %142 : vector<16x32xf32>
    %144 = vector.broadcast %124 : vector<1x32xf32> to vector<16x32xf32>
    %145 = arith.mulf %143, %144 : vector<16x32xf32>
    %146 = vector.broadcast %125 : vector<1x32xf32> to vector<16x32xf32>
    %147 = arith.addf %145, %146 : vector<16x32xf32>
    %148 = arith.truncf %147 : vector<16x32xf32> to vector<16x32xbf16>
    %c0_57 = arith.constant 0 : index
    %c0_58 = arith.constant 0 : index
    %149 = vector.load %arg9[%c0_57, %c0_58] : memref<32x32xbf16, #tpu.memory_space<vmem>>, vector<32x32xbf16>
    %cst_59 = arith.constant dense<0.000000e+00> : vector<16x32xf32>
    %150 = tpu.matmul %148, %149, %cst_59 {dimension_numbers = #tpu.dot_dimension_numbers<[1], [0], [0], [1], [0, 0, 1, 1], [], []>} : vector<16x32xbf16>, vector<32x32xbf16>, vector<16x32xf32> -> vector<16x32xf32>
    %c0_60 = arith.constant 0 : index
    %c0_61 = arith.constant 0 : index
    %151 = vector.load %arg10[%c0_60, %c0_61] : memref<1x32xf32, #tpu.memory_space<vmem>>, vector<1x32xf32>
    %152 = vector.broadcast %151 : vector<1x32xf32> to vector<16x32xf32>
    %153 = arith.addf %150, %152 : vector<16x32xf32>
    %cst_62 = arith.constant 5.000000e-01 : f32
    %154 = vector.broadcast %cst_62 : f32 to vector<16x32xf32>
    %155 = arith.mulf %154, %153 : vector<16x32xf32>
    %cst_63 = arith.constant 4.471500e-02 : f32
    %156 = vector.broadcast %cst_63 : f32 to vector<16x32xf32>
    %157 = arith.mulf %156, %153 : vector<16x32xf32>
    %158 = arith.mulf %157, %153 : vector<16x32xf32>
    %159 = arith.mulf %158, %153 : vector<16x32xf32>
    %160 = arith.addf %153, %159 : vector<16x32xf32>
    %cst_64 = arith.constant 0.797884583 : f32
    %161 = vector.broadcast %cst_64 : f32 to vector<16x32xf32>
    %162 = arith.mulf %161, %160 : vector<16x32xf32>
    %163 = math.tanh %162 : vector<16x32xf32>
    %cst_65 = arith.constant 1.000000e+00 : f32
    %164 = vector.broadcast %cst_65 : f32 to vector<16x32xf32>
    %165 = arith.addf %164, %163 : vector<16x32xf32>
    %166 = arith.mulf %155, %165 : vector<16x32xf32>
    %167 = arith.truncf %166 : vector<16x32xf32> to vector<16x32xbf16>
    %c0_66 = arith.constant 0 : index
    %c0_67 = arith.constant 0 : index
    %168 = vector.load %arg11[%c0_66, %c0_67] : memref<32x32xbf16, #tpu.memory_space<vmem>>, vector<32x32xbf16>
    %cst_68 = arith.constant dense<0.000000e+00> : vector<16x32xf32>
    %169 = tpu.matmul %167, %168, %cst_68 {dimension_numbers = #tpu.dot_dimension_numbers<[1], [0], [0], [1], [0, 0, 1, 1], [], []>} : vector<16x32xbf16>, vector<32x32xbf16>, vector<16x32xf32> -> vector<16x32xf32>
    %c0_69 = arith.constant 0 : index
    %c0_70 = arith.constant 0 : index
    %170 = vector.load %arg12[%c0_69, %c0_70] : memref<1x32xf32, #tpu.memory_space<vmem>>, vector<1x32xf32>
    %171 = vector.broadcast %170 : vector<1x32xf32> to vector<16x32xf32>
    %172 = arith.addf %169, %171 : vector<16x32xf32>
    %173 = arith.addf %172, %147 : vector<16x32xf32>
    %c0_71 = arith.constant 0 : index
    %c0_72 = arith.constant 0 : index
    %174 = vector.load %arg13[%c0_71, %c0_72] : memref<1x32xf32, #tpu.memory_space<vmem>>, vector<1x32xf32>
    %c0_73 = arith.constant 0 : index
    %c0_74 = arith.constant 0 : index
    %175 = vector.load %arg14[%c0_73, %c0_74] : memref<1x32xf32, #tpu.memory_space<vmem>>, vector<1x32xf32>
    %cst_75 = arith.constant dense<0.000000e+00> : vector<16xf32>
    %176 = vector.multi_reduction <add>, %173, %cst_75 [1] : vector<16x32xf32> to vector<16xf32>
    %177 = vector.shape_cast %176 : vector<16xf32> to vector<16x1xf32>
    %cst_76 = arith.constant 3.200000e+01 : f32
    %178 = vector.broadcast %cst_76 : f32 to vector<16x1xf32>
    %179 = arith.divf %177, %178 : vector<16x1xf32>
    %180 = vector.broadcast %179 : vector<16x1xf32> to vector<16x32xf32>
    %181 = arith.subf %173, %180 : vector<16x32xf32>
    %182 = arith.mulf %181, %181 : vector<16x32xf32>
    %cst_77 = arith.constant dense<0.000000e+00> : vector<16xf32>
    %183 = vector.multi_reduction <add>, %182, %cst_77 [1] : vector<16x32xf32> to vector<16xf32>
    %184 = vector.shape_cast %183 : vector<16xf32> to vector<16x1xf32>
    %cst_78 = arith.constant 3.200000e+01 : f32
    %185 = vector.broadcast %cst_78 : f32 to vector<16x1xf32>
    %186 = arith.divf %184, %185 : vector<16x1xf32>
    %187 = vector.broadcast %179 : vector<16x1xf32> to vector<16x32xf32>
    %188 = arith.subf %173, %187 : vector<16x32xf32>
    %cst_79 = arith.constant 9.99999996E-13 : f32
    %189 = vector.broadcast %cst_79 : f32 to vector<16x1xf32>
    %190 = arith.addf %186, %189 : vector<16x1xf32>
    %191 = math.rsqrt %190 : vector<16x1xf32>
    %192 = vector.broadcast %191 : vector<16x1xf32> to vector<16x32xf32>
    %193 = arith.mulf %188, %192 : vector<16x32xf32>
    %194 = vector.broadcast %174 : vector<1x32xf32> to vector<16x32xf32>
    %195 = arith.mulf %193, %194 : vector<16x32xf32>
    %196 = vector.broadcast %175 : vector<1x32xf32> to vector<16x32xf32>
    %197 = arith.addf %195, %196 : vector<16x32xf32>
    %198 = vector.shape_cast %197 : vector<16x32xf32> to vector<2x8x32xf32>
    %c0_80 = arith.constant 0 : index
    %c0_81 = arith.constant 0 : index
    %199 = vector.load %arg15[%c0_80, %c0_81] : memref<1x32xf32, #tpu.memory_space<vmem>>, vector<1x32xf32>
    %200 = vector.shape_cast %199 : vector<1x32xf32> to vector<1x1x32xf32>
    %201 = vector.broadcast %200 : vector<1x1x32xf32> to vector<2x8x32xf32>
    %202 = arith.mulf %198, %201 : vector<2x8x32xf32>
    %cst_82 = arith.constant dense<0.000000e+00> : vector<2x8xf32>
    %203 = vector.multi_reduction <add>, %202, %cst_82 [2] : vector<2x8x32xf32> to vector<2x8xf32>
    %c0_83 = arith.constant 0 : index
    %c0_84 = arith.constant 0 : index
    %204 = vector.load %arg16[%c0_83, %c0_84] : memref<1x1xf32, #tpu.memory_space<vmem>>, vector<1x1xf32>
    %205 = vector.broadcast %204 : vector<1x1xf32> to vector<2x8xf32>
    %206 = arith.addf %203, %205 : vector<2x8xf32>
    %207 = vector.shape_cast %206 : vector<2x8xf32> to vector<2x1x8xf32>
    %c0_85 = arith.constant 0 : index
    %c0_86 = arith.constant 0 : index
    %c0_87 = arith.constant 0 : index
    %208 = vector.load %arg17[%c0_85, %c0_86, %c0_87] : memref<2x1x8xf32, #tpu.memory_space<vmem>>, vector<2x1x8xf32>
    tpu.vector_store %arg17[%c0_85, %c0_86, %c0_87], %207 {strides = array<i32>} : memref<2x1x8xf32, #tpu.memory_space<vmem>>, vector<2x1x8xf32>,
    return
  }
  func.func @transform_0(%arg0: i32) -> (i32, i32, i32) {
    %c0_i32 = arith.constant 0 : i32
    %c0_i32_0 = arith.constant 0 : i32
    %c0_i32_1 = arith.constant 0 : i32
    return %arg0, %c0_i32, %c0_i32_0 : i32, i32, i32
  }
  func.func @transform_1(%arg0: i32) -> (i32, i32, i32) {
    %c0_i32 = arith.constant 0 : i32
    %c0_i32_0 = arith.constant 0 : i32
    %c0_i32_1 = arith.constant 0 : i32
    return %arg0, %c0_i32, %c0_i32_0 : i32, i32, i32
  }
  func.func @transform_2(%arg0: i32) -> (i32, i32) {
    %c0_i32 = arith.constant 0 : i32
    %c0_i32_0 = arith.constant 0 : i32
    %c0_i32_1 = arith.constant 0 : i32
    return %c0_i32, %c0_i32_0 : i32, i32
  }
  func.func @transform_3(%arg0: i32) -> (i32, i32) {
    %c0_i32 = arith.constant 0 : i32
    %c0_i32_0 = arith.constant 0 : i32
    %c0_i32_1 = arith.constant 0 : i32
    return %c0_i32, %c0_i32_0 : i32, i32
  }
  func.func @transform_4(%arg0: i32) -> (i32, i32) {
    %c0_i32 = arith.constant 0 : i32
    %c0_i32_0 = arith.constant 0 : i32
    %c0_i32_1 = arith.constant 0 : i32
    return %c0_i32, %c0_i32_0 : i32, i32
  }
  func.func @transform_5(%arg0: i32) -> (i32, i32) {
    %c0_i32 = arith.constant 0 : i32
    %c0_i32_0 = arith.constant 0 : i32
    %c0_i32_1 = arith.constant 0 : i32
    return %c0_i32, %c0_i32_0 : i32, i32
  }
  func.func @transform_6(%arg0: i32) -> (i32, i32) {
    %c0_i32 = arith.constant 0 : i32
    %c0_i32_0 = arith.constant 0 : i32
    %c0_i32_1 = arith.constant 0 : i32
    return %c0_i32, %c0_i32_0 : i32, i32
  }
  func.func @transform_7(%arg0: i32) -> (i32, i32) {
    %c0_i32 = arith.constant 0 : i32
    %c0_i32_0 = arith.constant 0 : i32
    %c0_i32_1 = arith.constant 0 : i32
    return %c0_i32, %c0_i32_0 : i32, i32
  }
  func.func @transform_8(%arg0: i32) -> (i32, i32) {
    %c0_i32 = arith.constant 0 : i32
    %c0_i32_0 = arith.constant 0 : i32
    %c0_i32_1 = arith.constant 0 : i32
    return %c0_i32, %c0_i32_0 : i32, i32
  }
  func.func @transform_9(%arg0: i32) -> (i32, i32) {
    %c0_i32 = arith.constant 0 : i32
    %c0_i32_0 = arith.constant 0 : i32
    %c0_i32_1 = arith.constant 0 : i32
    return %c0_i32, %c0_i32_0 : i32, i32
  }
  func.func @transform_10(%arg0: i32) -> (i32, i32) {
    %c0_i32 = arith.constant 0 : i32
    %c0_i32_0 = arith.constant 0 : i32
    %c0_i32_1 = arith.constant 0 : i32
    return %c0_i32, %c0_i32_0 : i32, i32
  }
  func.func @transform_11(%arg0: i32) -> (i32, i32) {
    %c0_i32 = arith.constant 0 : i32
    %c0_i32_0 = arith.constant 0 : i32
    %c0_i32_1 = arith.constant 0 : i32
    return %c0_i32, %c0_i32_0 : i32, i32
  }
  func.func @transform_12(%arg0: i32) -> (i32, i32) {
    %c0_i32 = arith.constant 0 : i32
    %c0_i32_0 = arith.constant 0 : i32
    %c0_i32_1 = arith.constant 0 : i32
    return %c0_i32, %c0_i32_0 : i32, i32
  }
  func.func @transform_13(%arg0: i32) -> (i32, i32) {
    %c0_i32 = arith.constant 0 : i32
    %c0_i32_0 = arith.constant 0 : i32
    %c0_i32_1 = arith.constant 0 : i32
    return %c0_i32, %c0_i32_0 : i32, i32
  }
  func.func @transform_14(%arg0: i32) -> (i32, i32) {
    %c0_i32 = arith.constant 0 : i32
    %c0_i32_0 = arith.constant 0 : i32
    %c0_i32_1 = arith.constant 0 : i32
    return %c0_i32, %c0_i32_0 : i32, i32
  }
  func.func @transform_15(%arg0: i32) -> (i32, i32) {
    %c0_i32 = arith.constant 0 : i32
    %c0_i32_0 = arith.constant 0 : i32
    %c0_i32_1 = arith.constant 0 : i32
    return %c0_i32, %c0_i32_0 : i32, i32
  }
  func.func @transform_16(%arg0: i32) -> (i32, i32, i32) {
    %c0_i32 = arith.constant 0 : i32
    %c0_i32_0 = arith.constant 0 : i32
    %c0_i32_1 = arith.constant 0 : i32
    return %arg0, %c0_i32, %c0_i32_0 : i32, i32, i32
  }
}

module attributes {stable_mosaic.version = 11 : i64} {
  func.func @lstm_kernel(%arg0: i32, %arg1: i32, %arg2: memref<2x8x128xbf16, #tpu.memory_space<vmem>>, %arg3: memref<32x128xbf16, #tpu.memory_space<vmem>>, %arg4: memref<1x64x128xbf16, #tpu.memory_space<vmem>>, %arg5: memref<1x1x128xf32, #tpu.memory_space<vmem>>, %arg6: memref<2x8x32xf32, #tpu.memory_space<vmem>>, %arg7: memref<2x2x32xf32, #tpu.memory_space<vmem>>, %arg8: memref<2x2x32xf32, #tpu.memory_space<vmem>>) attributes {dimension_semantics = [#tpu.dimension_semantics<parallel>, #tpu.dimension_semantics<arbitrary>], iteration_bounds = array<i64: 1, 1>, scalar_prefetch = 0 : i64, scratch_operands = 2 : i64, tpu.core_type = #tpu.core_type<tc>, window_params = [{transform_indices = @transform_0, window_bounds = array<i64: 2, 8, 128>}, {pipeline_mode = #tpu.pipeline_mode<synchronous>, transform_indices = @transform_1, window_bounds = array<i64: 32, 128>}, {pipeline_mode = #tpu.pipeline_mode<synchronous>, transform_indices = @transform_2, window_bounds = array<i64: 1, 64, 128>}, {pipeline_mode = #tpu.pipeline_mode<synchronous>, transform_indices = @transform_3, window_bounds = array<i64: 1, 1, 128>}, {transform_indices = @transform_4, window_bounds = array<i64: 2, 8, 32>}]} {
    %c0_i32 = arith.constant 0 : i32
    %0 = arith.cmpi eq, %arg1, %c0_i32 : i32
    %1 = arith.extui %0 : i1 to i32
    %c0_i32_0 = arith.constant 0 : i32
    %2 = arith.cmpi ne, %1, %c0_i32_0 : i32
    scf.if %2 {
      %cst_304 = arith.constant 0.000000e+00 : f32
      %686 = vector.broadcast %cst_304 : f32 to vector<2x2x32xf32>
      %c0_305 = arith.constant 0 : index
      %c0_306 = arith.constant 0 : index
      %c0_307 = arith.constant 0 : index
      %687 = vector.load %arg7[%c0_305, %c0_306, %c0_307] : memref<2x2x32xf32, #tpu.memory_space<vmem>>, vector<2x2x32xf32>
      tpu.vector_store %arg7[%c0_305, %c0_306, %c0_307], %686 {strides = array<i32>} : memref<2x2x32xf32, #tpu.memory_space<vmem>>, vector<2x2x32xf32>,
      %cst_308 = arith.constant 0.000000e+00 : f32
      %688 = vector.broadcast %cst_308 : f32 to vector<2x2x32xf32>
      %c0_309 = arith.constant 0 : index
      %c0_310 = arith.constant 0 : index
      %c0_311 = arith.constant 0 : index
      %689 = vector.load %arg8[%c0_309, %c0_310, %c0_311] : memref<2x2x32xf32, #tpu.memory_space<vmem>>, vector<2x2x32xf32>
      tpu.vector_store %arg8[%c0_309, %c0_310, %c0_311], %688 {strides = array<i32>} : memref<2x2x32xf32, #tpu.memory_space<vmem>>, vector<2x2x32xf32>,
    } else {
    }
    %c0 = arith.constant 0 : index
    %c0_1 = arith.constant 0 : index
    %3 = vector.load %arg3[%c0, %c0_1] : memref<32x128xbf16, #tpu.memory_space<vmem>>, vector<32x128xbf16>
    %c0_2 = arith.constant 0 : index
    %c0_3 = arith.constant 0 : index
    %c0_4 = arith.constant 0 : index
    %4 = vector.load %arg4[%c0_2, %c0_3, %c0_4] : memref<1x64x128xbf16, #tpu.memory_space<vmem>>, vector<1x64x128xbf16>
    %c0_5 = arith.constant 0 : index
    %c0_6 = arith.constant 0 : index
    %c0_7 = arith.constant 0 : index
    %5 = vector.load %arg5[%c0_5, %c0_6, %c0_7] : memref<1x1x128xf32, #tpu.memory_space<vmem>>, vector<1x1x128xf32>
    %c0_8 = arith.constant 0 : index
    %c0_9 = arith.constant 0 : index
    %c0_10 = arith.constant 0 : index
    %6 = vector.load %arg2[%c0_8, %c0_9, %c0_10] : memref<2x8x128xbf16, #tpu.memory_space<vmem>>, vector<2x1x128xbf16>
    %7 = vector.shape_cast %6 : vector<2x1x128xbf16> to vector<2x128xbf16>
    %8 = arith.extf %7 : vector<2x128xbf16> to vector<2x128xf32>
    %c0_11 = arith.constant 0 : index
    %c0_12 = arith.constant 0 : index
    %c0_13 = arith.constant 0 : index
    %9 = vector.load %arg7[%c0_11, %c0_12, %c0_13] : memref<2x2x32xf32, #tpu.memory_space<vmem>>, vector<1x2x32xf32>
    %10 = vector.shape_cast %9 : vector<1x2x32xf32> to vector<2x32xf32>
    %c0_14 = arith.constant 0 : index
    %c0_15 = arith.constant 0 : index
    %c0_16 = arith.constant 0 : index
    %11 = vector.load %arg8[%c0_14, %c0_15, %c0_16] : memref<2x2x32xf32, #tpu.memory_space<vmem>>, vector<1x2x32xf32>
    %12 = vector.shape_cast %11 : vector<1x2x32xf32> to vector<2x32xf32>
    %13 = arith.truncf %10 : vector<2x32xf32> to vector<2x32xbf16>
    %cst = arith.constant dense<0.000000e+00> : vector<2x128xf32>
    %14 = tpu.matmul %13, %3, %cst {dimension_numbers = #tpu.dot_dimension_numbers<[1], [0], [0], [1], [0, 0, 1, 1], [], []>} : vector<2x32xbf16>, vector<32x128xbf16>, vector<2x128xf32> -> vector<2x128xf32>
    %15 = arith.addf %8, %14 : vector<2x128xf32>
    %16 = vector.extract_strided_slice %15 {offsets = [0, 0], sizes = [2, 32], strides = [1, 1]} : vector<2x128xf32> to vector<2x32xf32>
    %17 = arith.negf %16 : vector<2x32xf32>
    %18 = math.exp %17 : vector<2x32xf32>
    %cst_17 = arith.constant 1.000000e+00 : f32
    %19 = vector.broadcast %cst_17 : f32 to vector<2x32xf32>
    %20 = arith.addf %19, %18 : vector<2x32xf32>
    %21 = arith.divf %19, %20 : vector<2x32xf32>
    %22 = vector.extract_strided_slice %15 {offsets = [0, 32], sizes = [2, 32], strides = [1, 1]} : vector<2x128xf32> to vector<2x32xf32>
    %23 = arith.negf %22 : vector<2x32xf32>
    %24 = math.exp %23 : vector<2x32xf32>
    %cst_18 = arith.constant 1.000000e+00 : f32
    %25 = vector.broadcast %cst_18 : f32 to vector<2x32xf32>
    %26 = arith.addf %25, %24 : vector<2x32xf32>
    %27 = arith.divf %25, %26 : vector<2x32xf32>
    %28 = vector.extract_strided_slice %15 {offsets = [0, 64], sizes = [2, 32], strides = [1, 1]} : vector<2x128xf32> to vector<2x32xf32>
    %29 = math.tanh %28 : vector<2x32xf32>
    %30 = vector.extract_strided_slice %15 {offsets = [0, 96], sizes = [2, 32], strides = [1, 1]} : vector<2x128xf32> to vector<2x32xf32>
    %31 = arith.negf %30 : vector<2x32xf32>
    %32 = math.exp %31 : vector<2x32xf32>
    %cst_19 = arith.constant 1.000000e+00 : f32
    %33 = vector.broadcast %cst_19 : f32 to vector<2x32xf32>
    %34 = arith.addf %33, %32 : vector<2x32xf32>
    %35 = arith.divf %33, %34 : vector<2x32xf32>
    %36 = arith.mulf %27, %12 : vector<2x32xf32>
    %37 = arith.mulf %21, %29 : vector<2x32xf32>
    %38 = arith.addf %36, %37 : vector<2x32xf32>
    %39 = math.tanh %38 : vector<2x32xf32>
    %40 = arith.mulf %35, %39 : vector<2x32xf32>
    %c0_20 = arith.constant 0 : index
    %c0_21 = arith.constant 0 : index
    %c0_22 = arith.constant 0 : index
    %41 = vector.load %arg7[%c0_20, %c0_21, %c0_22] : memref<2x2x32xf32, #tpu.memory_space<vmem>>, vector<1x2x32xf32>
    %42 = vector.shape_cast %41 : vector<1x2x32xf32> to vector<2x32xf32>
    %43 = vector.shape_cast %40 : vector<2x32xf32> to vector<1x2x32xf32>
    tpu.vector_store %arg7[%c0_20, %c0_21, %c0_22], %43 {strides = array<i32>} : memref<2x2x32xf32, #tpu.memory_space<vmem>>, vector<1x2x32xf32>,
    %c0_23 = arith.constant 0 : index
    %c0_24 = arith.constant 0 : index
    %c0_25 = arith.constant 0 : index
    %44 = vector.load %arg8[%c0_23, %c0_24, %c0_25] : memref<2x2x32xf32, #tpu.memory_space<vmem>>, vector<1x2x32xf32>
    %45 = vector.shape_cast %44 : vector<1x2x32xf32> to vector<2x32xf32>
    %46 = vector.shape_cast %38 : vector<2x32xf32> to vector<1x2x32xf32>
    tpu.vector_store %arg8[%c0_23, %c0_24, %c0_25], %46 {strides = array<i32>} : memref<2x2x32xf32, #tpu.memory_space<vmem>>, vector<1x2x32xf32>,
    %c1 = arith.constant 1 : index
    %c0_26 = arith.constant 0 : index
    %c0_27 = arith.constant 0 : index
    %47 = vector.load %arg7[%c1, %c0_26, %c0_27] : memref<2x2x32xf32, #tpu.memory_space<vmem>>, vector<1x2x32xf32>
    %48 = vector.shape_cast %47 : vector<1x2x32xf32> to vector<2x32xf32>
    %c1_28 = arith.constant 1 : index
    %c0_29 = arith.constant 0 : index
    %c0_30 = arith.constant 0 : index
    %49 = vector.load %arg8[%c1_28, %c0_29, %c0_30] : memref<2x2x32xf32, #tpu.memory_space<vmem>>, vector<1x2x32xf32>
    %50 = vector.shape_cast %49 : vector<1x2x32xf32> to vector<2x32xf32>
    %51 = tpu.concatenate %40, %48 in 1 : vector<2x32xf32>, vector<2x32xf32> -> vector<2x64xf32>
    %52 = arith.truncf %51 : vector<2x64xf32> to vector<2x64xbf16>
    %53 = vector.shape_cast %4 : vector<1x64x128xbf16> to vector<64x128xbf16>
    %cst_31 = arith.constant dense<0.000000e+00> : vector<2x128xf32>
    %54 = tpu.matmul %52, %53, %cst_31 {dimension_numbers = #tpu.dot_dimension_numbers<[1], [0], [0], [1], [0, 0, 1, 1], [], []>} : vector<2x64xbf16>, vector<64x128xbf16>, vector<2x128xf32> -> vector<2x128xf32>
    %55 = vector.shape_cast %5 : vector<1x1x128xf32> to vector<1x128xf32>
    %56 = vector.broadcast %55 : vector<1x128xf32> to vector<2x128xf32>
    %57 = arith.addf %54, %56 : vector<2x128xf32>
    %58 = vector.extract_strided_slice %57 {offsets = [0, 0], sizes = [2, 32], strides = [1, 1]} : vector<2x128xf32> to vector<2x32xf32>
    %59 = arith.negf %58 : vector<2x32xf32>
    %60 = math.exp %59 : vector<2x32xf32>
    %cst_32 = arith.constant 1.000000e+00 : f32
    %61 = vector.broadcast %cst_32 : f32 to vector<2x32xf32>
    %62 = arith.addf %61, %60 : vector<2x32xf32>
    %63 = arith.divf %61, %62 : vector<2x32xf32>
    %64 = vector.extract_strided_slice %57 {offsets = [0, 32], sizes = [2, 32], strides = [1, 1]} : vector<2x128xf32> to vector<2x32xf32>
    %65 = arith.negf %64 : vector<2x32xf32>
    %66 = math.exp %65 : vector<2x32xf32>
    %cst_33 = arith.constant 1.000000e+00 : f32
    %67 = vector.broadcast %cst_33 : f32 to vector<2x32xf32>
    %68 = arith.addf %67, %66 : vector<2x32xf32>
    %69 = arith.divf %67, %68 : vector<2x32xf32>
    %70 = vector.extract_strided_slice %57 {offsets = [0, 64], sizes = [2, 32], strides = [1, 1]} : vector<2x128xf32> to vector<2x32xf32>
    %71 = math.tanh %70 : vector<2x32xf32>
    %72 = vector.extract_strided_slice %57 {offsets = [0, 96], sizes = [2, 32], strides = [1, 1]} : vector<2x128xf32> to vector<2x32xf32>
    %73 = arith.negf %72 : vector<2x32xf32>
    %74 = math.exp %73 : vector<2x32xf32>
    %cst_34 = arith.constant 1.000000e+00 : f32
    %75 = vector.broadcast %cst_34 : f32 to vector<2x32xf32>
    %76 = arith.addf %75, %74 : vector<2x32xf32>
    %77 = arith.divf %75, %76 : vector<2x32xf32>
    %78 = arith.mulf %69, %50 : vector<2x32xf32>
    %79 = arith.mulf %63, %71 : vector<2x32xf32>
    %80 = arith.addf %78, %79 : vector<2x32xf32>
    %81 = math.tanh %80 : vector<2x32xf32>
    %82 = arith.mulf %77, %81 : vector<2x32xf32>
    %c1_35 = arith.constant 1 : index
    %c0_36 = arith.constant 0 : index
    %c0_37 = arith.constant 0 : index
    %83 = vector.load %arg7[%c1_35, %c0_36, %c0_37] : memref<2x2x32xf32, #tpu.memory_space<vmem>>, vector<1x2x32xf32>
    %84 = vector.shape_cast %83 : vector<1x2x32xf32> to vector<2x32xf32>
    %85 = vector.shape_cast %82 : vector<2x32xf32> to vector<1x2x32xf32>
    tpu.vector_store %arg7[%c1_35, %c0_36, %c0_37], %85 {strides = array<i32>} : memref<2x2x32xf32, #tpu.memory_space<vmem>>, vector<1x2x32xf32>,
    %c1_38 = arith.constant 1 : index
    %c0_39 = arith.constant 0 : index
    %c0_40 = arith.constant 0 : index
    %86 = vector.load %arg8[%c1_38, %c0_39, %c0_40] : memref<2x2x32xf32, #tpu.memory_space<vmem>>, vector<1x2x32xf32>
    %87 = vector.shape_cast %86 : vector<1x2x32xf32> to vector<2x32xf32>
    %88 = vector.shape_cast %80 : vector<2x32xf32> to vector<1x2x32xf32>
    tpu.vector_store %arg8[%c1_38, %c0_39, %c0_40], %88 {strides = array<i32>} : memref<2x2x32xf32, #tpu.memory_space<vmem>>, vector<1x2x32xf32>,
    %89 = vector.shape_cast %82 : vector<2x32xf32> to vector<2x1x32xf32>
    %c0_41 = arith.constant 0 : index
    %c0_42 = arith.constant 0 : index
    %c0_43 = arith.constant 0 : index
    %90 = vector.load %arg6[%c0_41, %c0_42, %c0_43] : memref<2x8x32xf32, #tpu.memory_space<vmem>>, vector<2x1x32xf32>
    tpu.vector_store %arg6[%c0_41, %c0_42, %c0_43], %89 {strides = array<i32>} : memref<2x8x32xf32, #tpu.memory_space<vmem>>, vector<2x1x32xf32>,
    %c0_44 = arith.constant 0 : index
    %c1_45 = arith.constant 1 : index
    %c0_46 = arith.constant 0 : index
    %91 = vector.load %arg2[%c0_44, %c1_45, %c0_46] : memref<2x8x128xbf16, #tpu.memory_space<vmem>>, vector<2x1x128xbf16>
    %92 = vector.shape_cast %91 : vector<2x1x128xbf16> to vector<2x128xbf16>
    %93 = arith.extf %92 : vector<2x128xbf16> to vector<2x128xf32>
    %c0_47 = arith.constant 0 : index
    %c0_48 = arith.constant 0 : index
    %c0_49 = arith.constant 0 : index
    %94 = vector.load %arg7[%c0_47, %c0_48, %c0_49] : memref<2x2x32xf32, #tpu.memory_space<vmem>>, vector<1x2x32xf32>
    %95 = vector.shape_cast %94 : vector<1x2x32xf32> to vector<2x32xf32>
    %c0_50 = arith.constant 0 : index
    %c0_51 = arith.constant 0 : index
    %c0_52 = arith.constant 0 : index
    %96 = vector.load %arg8[%c0_50, %c0_51, %c0_52] : memref<2x2x32xf32, #tpu.memory_space<vmem>>, vector<1x2x32xf32>
    %97 = vector.shape_cast %96 : vector<1x2x32xf32> to vector<2x32xf32>
    %98 = arith.truncf %95 : vector<2x32xf32> to vector<2x32xbf16>
    %cst_53 = arith.constant dense<0.000000e+00> : vector<2x128xf32>
    %99 = tpu.matmul %98, %3, %cst_53 {dimension_numbers = #tpu.dot_dimension_numbers<[1], [0], [0], [1], [0, 0, 1, 1], [], []>} : vector<2x32xbf16>, vector<32x128xbf16>, vector<2x128xf32> -> vector<2x128xf32>
    %100 = arith.addf %93, %99 : vector<2x128xf32>
    %101 = vector.extract_strided_slice %100 {offsets = [0, 0], sizes = [2, 32], strides = [1, 1]} : vector<2x128xf32> to vector<2x32xf32>
    %102 = arith.negf %101 : vector<2x32xf32>
    %103 = math.exp %102 : vector<2x32xf32>
    %cst_54 = arith.constant 1.000000e+00 : f32
    %104 = vector.broadcast %cst_54 : f32 to vector<2x32xf32>
    %105 = arith.addf %104, %103 : vector<2x32xf32>
    %106 = arith.divf %104, %105 : vector<2x32xf32>
    %107 = vector.extract_strided_slice %100 {offsets = [0, 32], sizes = [2, 32], strides = [1, 1]} : vector<2x128xf32> to vector<2x32xf32>
    %108 = arith.negf %107 : vector<2x32xf32>
    %109 = math.exp %108 : vector<2x32xf32>
    %cst_55 = arith.constant 1.000000e+00 : f32
    %110 = vector.broadcast %cst_55 : f32 to vector<2x32xf32>
    %111 = arith.addf %110, %109 : vector<2x32xf32>
    %112 = arith.divf %110, %111 : vector<2x32xf32>
    %113 = vector.extract_strided_slice %100 {offsets = [0, 64], sizes = [2, 32], strides = [1, 1]} : vector<2x128xf32> to vector<2x32xf32>
    %114 = math.tanh %113 : vector<2x32xf32>
    %115 = vector.extract_strided_slice %100 {offsets = [0, 96], sizes = [2, 32], strides = [1, 1]} : vector<2x128xf32> to vector<2x32xf32>
    %116 = arith.negf %115 : vector<2x32xf32>
    %117 = math.exp %116 : vector<2x32xf32>
    %cst_56 = arith.constant 1.000000e+00 : f32
    %118 = vector.broadcast %cst_56 : f32 to vector<2x32xf32>
    %119 = arith.addf %118, %117 : vector<2x32xf32>
    %120 = arith.divf %118, %119 : vector<2x32xf32>
    %121 = arith.mulf %112, %97 : vector<2x32xf32>
    %122 = arith.mulf %106, %114 : vector<2x32xf32>
    %123 = arith.addf %121, %122 : vector<2x32xf32>
    %124 = math.tanh %123 : vector<2x32xf32>
    %125 = arith.mulf %120, %124 : vector<2x32xf32>
    %c0_57 = arith.constant 0 : index
    %c0_58 = arith.constant 0 : index
    %c0_59 = arith.constant 0 : index
    %126 = vector.load %arg7[%c0_57, %c0_58, %c0_59] : memref<2x2x32xf32, #tpu.memory_space<vmem>>, vector<1x2x32xf32>
    %127 = vector.shape_cast %126 : vector<1x2x32xf32> to vector<2x32xf32>
    %128 = vector.shape_cast %125 : vector<2x32xf32> to vector<1x2x32xf32>
    tpu.vector_store %arg7[%c0_57, %c0_58, %c0_59], %128 {strides = array<i32>} : memref<2x2x32xf32, #tpu.memory_space<vmem>>, vector<1x2x32xf32>,
    %c0_60 = arith.constant 0 : index
    %c0_61 = arith.constant 0 : index
    %c0_62 = arith.constant 0 : index
    %129 = vector.load %arg8[%c0_60, %c0_61, %c0_62] : memref<2x2x32xf32, #tpu.memory_space<vmem>>, vector<1x2x32xf32>
    %130 = vector.shape_cast %129 : vector<1x2x32xf32> to vector<2x32xf32>
    %131 = vector.shape_cast %123 : vector<2x32xf32> to vector<1x2x32xf32>
    tpu.vector_store %arg8[%c0_60, %c0_61, %c0_62], %131 {strides = array<i32>} : memref<2x2x32xf32, #tpu.memory_space<vmem>>, vector<1x2x32xf32>,
    %c1_63 = arith.constant 1 : index
    %c0_64 = arith.constant 0 : index
    %c0_65 = arith.constant 0 : index
    %132 = vector.load %arg7[%c1_63, %c0_64, %c0_65] : memref<2x2x32xf32, #tpu.memory_space<vmem>>, vector<1x2x32xf32>
    %133 = vector.shape_cast %132 : vector<1x2x32xf32> to vector<2x32xf32>
    %c1_66 = arith.constant 1 : index
    %c0_67 = arith.constant 0 : index
    %c0_68 = arith.constant 0 : index
    %134 = vector.load %arg8[%c1_66, %c0_67, %c0_68] : memref<2x2x32xf32, #tpu.memory_space<vmem>>, vector<1x2x32xf32>
    %135 = vector.shape_cast %134 : vector<1x2x32xf32> to vector<2x32xf32>
    %136 = tpu.concatenate %125, %133 in 1 : vector<2x32xf32>, vector<2x32xf32> -> vector<2x64xf32>
    %137 = arith.truncf %136 : vector<2x64xf32> to vector<2x64xbf16>
    %138 = vector.shape_cast %4 : vector<1x64x128xbf16> to vector<64x128xbf16>
    %cst_69 = arith.constant dense<0.000000e+00> : vector<2x128xf32>
    %139 = tpu.matmul %137, %138, %cst_69 {dimension_numbers = #tpu.dot_dimension_numbers<[1], [0], [0], [1], [0, 0, 1, 1], [], []>} : vector<2x64xbf16>, vector<64x128xbf16>, vector<2x128xf32> -> vector<2x128xf32>
    %140 = vector.shape_cast %5 : vector<1x1x128xf32> to vector<1x128xf32>
    %141 = vector.broadcast %140 : vector<1x128xf32> to vector<2x128xf32>
    %142 = arith.addf %139, %141 : vector<2x128xf32>
    %143 = vector.extract_strided_slice %142 {offsets = [0, 0], sizes = [2, 32], strides = [1, 1]} : vector<2x128xf32> to vector<2x32xf32>
    %144 = arith.negf %143 : vector<2x32xf32>
    %145 = math.exp %144 : vector<2x32xf32>
    %cst_70 = arith.constant 1.000000e+00 : f32
    %146 = vector.broadcast %cst_70 : f32 to vector<2x32xf32>
    %147 = arith.addf %146, %145 : vector<2x32xf32>
    %148 = arith.divf %146, %147 : vector<2x32xf32>
    %149 = vector.extract_strided_slice %142 {offsets = [0, 32], sizes = [2, 32], strides = [1, 1]} : vector<2x128xf32> to vector<2x32xf32>
    %150 = arith.negf %149 : vector<2x32xf32>
    %151 = math.exp %150 : vector<2x32xf32>
    %cst_71 = arith.constant 1.000000e+00 : f32
    %152 = vector.broadcast %cst_71 : f32 to vector<2x32xf32>
    %153 = arith.addf %152, %151 : vector<2x32xf32>
    %154 = arith.divf %152, %153 : vector<2x32xf32>
    %155 = vector.extract_strided_slice %142 {offsets = [0, 64], sizes = [2, 32], strides = [1, 1]} : vector<2x128xf32> to vector<2x32xf32>
    %156 = math.tanh %155 : vector<2x32xf32>
    %157 = vector.extract_strided_slice %142 {offsets = [0, 96], sizes = [2, 32], strides = [1, 1]} : vector<2x128xf32> to vector<2x32xf32>
    %158 = arith.negf %157 : vector<2x32xf32>
    %159 = math.exp %158 : vector<2x32xf32>
    %cst_72 = arith.constant 1.000000e+00 : f32
    %160 = vector.broadcast %cst_72 : f32 to vector<2x32xf32>
    %161 = arith.addf %160, %159 : vector<2x32xf32>
    %162 = arith.divf %160, %161 : vector<2x32xf32>
    %163 = arith.mulf %154, %135 : vector<2x32xf32>
    %164 = arith.mulf %148, %156 : vector<2x32xf32>
    %165 = arith.addf %163, %164 : vector<2x32xf32>
    %166 = math.tanh %165 : vector<2x32xf32>
    %167 = arith.mulf %162, %166 : vector<2x32xf32>
    %c1_73 = arith.constant 1 : index
    %c0_74 = arith.constant 0 : index
    %c0_75 = arith.constant 0 : index
    %168 = vector.load %arg7[%c1_73, %c0_74, %c0_75] : memref<2x2x32xf32, #tpu.memory_space<vmem>>, vector<1x2x32xf32>
    %169 = vector.shape_cast %168 : vector<1x2x32xf32> to vector<2x32xf32>
    %170 = vector.shape_cast %167 : vector<2x32xf32> to vector<1x2x32xf32>
    tpu.vector_store %arg7[%c1_73, %c0_74, %c0_75], %170 {strides = array<i32>} : memref<2x2x32xf32, #tpu.memory_space<vmem>>, vector<1x2x32xf32>,
    %c1_76 = arith.constant 1 : index
    %c0_77 = arith.constant 0 : index
    %c0_78 = arith.constant 0 : index
    %171 = vector.load %arg8[%c1_76, %c0_77, %c0_78] : memref<2x2x32xf32, #tpu.memory_space<vmem>>, vector<1x2x32xf32>
    %172 = vector.shape_cast %171 : vector<1x2x32xf32> to vector<2x32xf32>
    %173 = vector.shape_cast %165 : vector<2x32xf32> to vector<1x2x32xf32>
    tpu.vector_store %arg8[%c1_76, %c0_77, %c0_78], %173 {strides = array<i32>} : memref<2x2x32xf32, #tpu.memory_space<vmem>>, vector<1x2x32xf32>,
    %174 = vector.shape_cast %167 : vector<2x32xf32> to vector<2x1x32xf32>
    %c0_79 = arith.constant 0 : index
    %c1_80 = arith.constant 1 : index
    %c0_81 = arith.constant 0 : index
    %175 = vector.load %arg6[%c0_79, %c1_80, %c0_81] : memref<2x8x32xf32, #tpu.memory_space<vmem>>, vector<2x1x32xf32>
    tpu.vector_store %arg6[%c0_79, %c1_80, %c0_81], %174 {strides = array<i32>} : memref<2x8x32xf32, #tpu.memory_space<vmem>>, vector<2x1x32xf32>,
    %c0_82 = arith.constant 0 : index
    %c2 = arith.constant 2 : index
    %c0_83 = arith.constant 0 : index
    %176 = vector.load %arg2[%c0_82, %c2, %c0_83] : memref<2x8x128xbf16, #tpu.memory_space<vmem>>, vector<2x1x128xbf16>
    %177 = vector.shape_cast %176 : vector<2x1x128xbf16> to vector<2x128xbf16>
    %178 = arith.extf %177 : vector<2x128xbf16> to vector<2x128xf32>
    %c0_84 = arith.constant 0 : index
    %c0_85 = arith.constant 0 : index
    %c0_86 = arith.constant 0 : index
    %179 = vector.load %arg7[%c0_84, %c0_85, %c0_86] : memref<2x2x32xf32, #tpu.memory_space<vmem>>, vector<1x2x32xf32>
    %180 = vector.shape_cast %179 : vector<1x2x32xf32> to vector<2x32xf32>
    %c0_87 = arith.constant 0 : index
    %c0_88 = arith.constant 0 : index
    %c0_89 = arith.constant 0 : index
    %181 = vector.load %arg8[%c0_87, %c0_88, %c0_89] : memref<2x2x32xf32, #tpu.memory_space<vmem>>, vector<1x2x32xf32>
    %182 = vector.shape_cast %181 : vector<1x2x32xf32> to vector<2x32xf32>
    %183 = arith.truncf %180 : vector<2x32xf32> to vector<2x32xbf16>
    %cst_90 = arith.constant dense<0.000000e+00> : vector<2x128xf32>
    %184 = tpu.matmul %183, %3, %cst_90 {dimension_numbers = #tpu.dot_dimension_numbers<[1], [0], [0], [1], [0, 0, 1, 1], [], []>} : vector<2x32xbf16>, vector<32x128xbf16>, vector<2x128xf32> -> vector<2x128xf32>
    %185 = arith.addf %178, %184 : vector<2x128xf32>
    %186 = vector.extract_strided_slice %185 {offsets = [0, 0], sizes = [2, 32], strides = [1, 1]} : vector<2x128xf32> to vector<2x32xf32>
    %187 = arith.negf %186 : vector<2x32xf32>
    %188 = math.exp %187 : vector<2x32xf32>
    %cst_91 = arith.constant 1.000000e+00 : f32
    %189 = vector.broadcast %cst_91 : f32 to vector<2x32xf32>
    %190 = arith.addf %189, %188 : vector<2x32xf32>
    %191 = arith.divf %189, %190 : vector<2x32xf32>
    %192 = vector.extract_strided_slice %185 {offsets = [0, 32], sizes = [2, 32], strides = [1, 1]} : vector<2x128xf32> to vector<2x32xf32>
    %193 = arith.negf %192 : vector<2x32xf32>
    %194 = math.exp %193 : vector<2x32xf32>
    %cst_92 = arith.constant 1.000000e+00 : f32
    %195 = vector.broadcast %cst_92 : f32 to vector<2x32xf32>
    %196 = arith.addf %195, %194 : vector<2x32xf32>
    %197 = arith.divf %195, %196 : vector<2x32xf32>
    %198 = vector.extract_strided_slice %185 {offsets = [0, 64], sizes = [2, 32], strides = [1, 1]} : vector<2x128xf32> to vector<2x32xf32>
    %199 = math.tanh %198 : vector<2x32xf32>
    %200 = vector.extract_strided_slice %185 {offsets = [0, 96], sizes = [2, 32], strides = [1, 1]} : vector<2x128xf32> to vector<2x32xf32>
    %201 = arith.negf %200 : vector<2x32xf32>
    %202 = math.exp %201 : vector<2x32xf32>
    %cst_93 = arith.constant 1.000000e+00 : f32
    %203 = vector.broadcast %cst_93 : f32 to vector<2x32xf32>
    %204 = arith.addf %203, %202 : vector<2x32xf32>
    %205 = arith.divf %203, %204 : vector<2x32xf32>
    %206 = arith.mulf %197, %182 : vector<2x32xf32>
    %207 = arith.mulf %191, %199 : vector<2x32xf32>
    %208 = arith.addf %206, %207 : vector<2x32xf32>
    %209 = math.tanh %208 : vector<2x32xf32>
    %210 = arith.mulf %205, %209 : vector<2x32xf32>
    %c0_94 = arith.constant 0 : index
    %c0_95 = arith.constant 0 : index
    %c0_96 = arith.constant 0 : index
    %211 = vector.load %arg7[%c0_94, %c0_95, %c0_96] : memref<2x2x32xf32, #tpu.memory_space<vmem>>, vector<1x2x32xf32>
    %212 = vector.shape_cast %211 : vector<1x2x32xf32> to vector<2x32xf32>
    %213 = vector.shape_cast %210 : vector<2x32xf32> to vector<1x2x32xf32>
    tpu.vector_store %arg7[%c0_94, %c0_95, %c0_96], %213 {strides = array<i32>} : memref<2x2x32xf32, #tpu.memory_space<vmem>>, vector<1x2x32xf32>,
    %c0_97 = arith.constant 0 : index
    %c0_98 = arith.constant 0 : index
    %c0_99 = arith.constant 0 : index
    %214 = vector.load %arg8[%c0_97, %c0_98, %c0_99] : memref<2x2x32xf32, #tpu.memory_space<vmem>>, vector<1x2x32xf32>
    %215 = vector.shape_cast %214 : vector<1x2x32xf32> to vector<2x32xf32>
    %216 = vector.shape_cast %208 : vector<2x32xf32> to vector<1x2x32xf32>
    tpu.vector_store %arg8[%c0_97, %c0_98, %c0_99], %216 {strides = array<i32>} : memref<2x2x32xf32, #tpu.memory_space<vmem>>, vector<1x2x32xf32>,
    %c1_100 = arith.constant 1 : index
    %c0_101 = arith.constant 0 : index
    %c0_102 = arith.constant 0 : index
    %217 = vector.load %arg7[%c1_100, %c0_101, %c0_102] : memref<2x2x32xf32, #tpu.memory_space<vmem>>, vector<1x2x32xf32>
    %218 = vector.shape_cast %217 : vector<1x2x32xf32> to vector<2x32xf32>
    %c1_103 = arith.constant 1 : index
    %c0_104 = arith.constant 0 : index
    %c0_105 = arith.constant 0 : index
    %219 = vector.load %arg8[%c1_103, %c0_104, %c0_105] : memref<2x2x32xf32, #tpu.memory_space<vmem>>, vector<1x2x32xf32>
    %220 = vector.shape_cast %219 : vector<1x2x32xf32> to vector<2x32xf32>
    %221 = tpu.concatenate %210, %218 in 1 : vector<2x32xf32>, vector<2x32xf32> -> vector<2x64xf32>
    %222 = arith.truncf %221 : vector<2x64xf32> to vector<2x64xbf16>
    %223 = vector.shape_cast %4 : vector<1x64x128xbf16> to vector<64x128xbf16>
    %cst_106 = arith.constant dense<0.000000e+00> : vector<2x128xf32>
    %224 = tpu.matmul %222, %223, %cst_106 {dimension_numbers = #tpu.dot_dimension_numbers<[1], [0], [0], [1], [0, 0, 1, 1], [], []>} : vector<2x64xbf16>, vector<64x128xbf16>, vector<2x128xf32> -> vector<2x128xf32>
    %225 = vector.shape_cast %5 : vector<1x1x128xf32> to vector<1x128xf32>
    %226 = vector.broadcast %225 : vector<1x128xf32> to vector<2x128xf32>
    %227 = arith.addf %224, %226 : vector<2x128xf32>
    %228 = vector.extract_strided_slice %227 {offsets = [0, 0], sizes = [2, 32], strides = [1, 1]} : vector<2x128xf32> to vector<2x32xf32>
    %229 = arith.negf %228 : vector<2x32xf32>
    %230 = math.exp %229 : vector<2x32xf32>
    %cst_107 = arith.constant 1.000000e+00 : f32
    %231 = vector.broadcast %cst_107 : f32 to vector<2x32xf32>
    %232 = arith.addf %231, %230 : vector<2x32xf32>
    %233 = arith.divf %231, %232 : vector<2x32xf32>
    %234 = vector.extract_strided_slice %227 {offsets = [0, 32], sizes = [2, 32], strides = [1, 1]} : vector<2x128xf32> to vector<2x32xf32>
    %235 = arith.negf %234 : vector<2x32xf32>
    %236 = math.exp %235 : vector<2x32xf32>
    %cst_108 = arith.constant 1.000000e+00 : f32
    %237 = vector.broadcast %cst_108 : f32 to vector<2x32xf32>
    %238 = arith.addf %237, %236 : vector<2x32xf32>
    %239 = arith.divf %237, %238 : vector<2x32xf32>
    %240 = vector.extract_strided_slice %227 {offsets = [0, 64], sizes = [2, 32], strides = [1, 1]} : vector<2x128xf32> to vector<2x32xf32>
    %241 = math.tanh %240 : vector<2x32xf32>
    %242 = vector.extract_strided_slice %227 {offsets = [0, 96], sizes = [2, 32], strides = [1, 1]} : vector<2x128xf32> to vector<2x32xf32>
    %243 = arith.negf %242 : vector<2x32xf32>
    %244 = math.exp %243 : vector<2x32xf32>
    %cst_109 = arith.constant 1.000000e+00 : f32
    %245 = vector.broadcast %cst_109 : f32 to vector<2x32xf32>
    %246 = arith.addf %245, %244 : vector<2x32xf32>
    %247 = arith.divf %245, %246 : vector<2x32xf32>
    %248 = arith.mulf %239, %220 : vector<2x32xf32>
    %249 = arith.mulf %233, %241 : vector<2x32xf32>
    %250 = arith.addf %248, %249 : vector<2x32xf32>
    %251 = math.tanh %250 : vector<2x32xf32>
    %252 = arith.mulf %247, %251 : vector<2x32xf32>
    %c1_110 = arith.constant 1 : index
    %c0_111 = arith.constant 0 : index
    %c0_112 = arith.constant 0 : index
    %253 = vector.load %arg7[%c1_110, %c0_111, %c0_112] : memref<2x2x32xf32, #tpu.memory_space<vmem>>, vector<1x2x32xf32>
    %254 = vector.shape_cast %253 : vector<1x2x32xf32> to vector<2x32xf32>
    %255 = vector.shape_cast %252 : vector<2x32xf32> to vector<1x2x32xf32>
    tpu.vector_store %arg7[%c1_110, %c0_111, %c0_112], %255 {strides = array<i32>} : memref<2x2x32xf32, #tpu.memory_space<vmem>>, vector<1x2x32xf32>,
    %c1_113 = arith.constant 1 : index
    %c0_114 = arith.constant 0 : index
    %c0_115 = arith.constant 0 : index
    %256 = vector.load %arg8[%c1_113, %c0_114, %c0_115] : memref<2x2x32xf32, #tpu.memory_space<vmem>>, vector<1x2x32xf32>
    %257 = vector.shape_cast %256 : vector<1x2x32xf32> to vector<2x32xf32>
    %258 = vector.shape_cast %250 : vector<2x32xf32> to vector<1x2x32xf32>
    tpu.vector_store %arg8[%c1_113, %c0_114, %c0_115], %258 {strides = array<i32>} : memref<2x2x32xf32, #tpu.memory_space<vmem>>, vector<1x2x32xf32>,
    %259 = vector.shape_cast %252 : vector<2x32xf32> to vector<2x1x32xf32>
    %c0_116 = arith.constant 0 : index
    %c2_117 = arith.constant 2 : index
    %c0_118 = arith.constant 0 : index
    %260 = vector.load %arg6[%c0_116, %c2_117, %c0_118] : memref<2x8x32xf32, #tpu.memory_space<vmem>>, vector<2x1x32xf32>
    tpu.vector_store %arg6[%c0_116, %c2_117, %c0_118], %259 {strides = array<i32>} : memref<2x8x32xf32, #tpu.memory_space<vmem>>, vector<2x1x32xf32>,
    %c0_119 = arith.constant 0 : index
    %c3 = arith.constant 3 : index
    %c0_120 = arith.constant 0 : index
    %261 = vector.load %arg2[%c0_119, %c3, %c0_120] : memref<2x8x128xbf16, #tpu.memory_space<vmem>>, vector<2x1x128xbf16>
    %262 = vector.shape_cast %261 : vector<2x1x128xbf16> to vector<2x128xbf16>
    %263 = arith.extf %262 : vector<2x128xbf16> to vector<2x128xf32>
    %c0_121 = arith.constant 0 : index
    %c0_122 = arith.constant 0 : index
    %c0_123 = arith.constant 0 : index
    %264 = vector.load %arg7[%c0_121, %c0_122, %c0_123] : memref<2x2x32xf32, #tpu.memory_space<vmem>>, vector<1x2x32xf32>
    %265 = vector.shape_cast %264 : vector<1x2x32xf32> to vector<2x32xf32>
    %c0_124 = arith.constant 0 : index
    %c0_125 = arith.constant 0 : index
    %c0_126 = arith.constant 0 : index
    %266 = vector.load %arg8[%c0_124, %c0_125, %c0_126] : memref<2x2x32xf32, #tpu.memory_space<vmem>>, vector<1x2x32xf32>
    %267 = vector.shape_cast %266 : vector<1x2x32xf32> to vector<2x32xf32>
    %268 = arith.truncf %265 : vector<2x32xf32> to vector<2x32xbf16>
    %cst_127 = arith.constant dense<0.000000e+00> : vector<2x128xf32>
    %269 = tpu.matmul %268, %3, %cst_127 {dimension_numbers = #tpu.dot_dimension_numbers<[1], [0], [0], [1], [0, 0, 1, 1], [], []>} : vector<2x32xbf16>, vector<32x128xbf16>, vector<2x128xf32> -> vector<2x128xf32>
    %270 = arith.addf %263, %269 : vector<2x128xf32>
    %271 = vector.extract_strided_slice %270 {offsets = [0, 0], sizes = [2, 32], strides = [1, 1]} : vector<2x128xf32> to vector<2x32xf32>
    %272 = arith.negf %271 : vector<2x32xf32>
    %273 = math.exp %272 : vector<2x32xf32>
    %cst_128 = arith.constant 1.000000e+00 : f32
    %274 = vector.broadcast %cst_128 : f32 to vector<2x32xf32>
    %275 = arith.addf %274, %273 : vector<2x32xf32>
    %276 = arith.divf %274, %275 : vector<2x32xf32>
    %277 = vector.extract_strided_slice %270 {offsets = [0, 32], sizes = [2, 32], strides = [1, 1]} : vector<2x128xf32> to vector<2x32xf32>
    %278 = arith.negf %277 : vector<2x32xf32>
    %279 = math.exp %278 : vector<2x32xf32>
    %cst_129 = arith.constant 1.000000e+00 : f32
    %280 = vector.broadcast %cst_129 : f32 to vector<2x32xf32>
    %281 = arith.addf %280, %279 : vector<2x32xf32>
    %282 = arith.divf %280, %281 : vector<2x32xf32>
    %283 = vector.extract_strided_slice %270 {offsets = [0, 64], sizes = [2, 32], strides = [1, 1]} : vector<2x128xf32> to vector<2x32xf32>
    %284 = math.tanh %283 : vector<2x32xf32>
    %285 = vector.extract_strided_slice %270 {offsets = [0, 96], sizes = [2, 32], strides = [1, 1]} : vector<2x128xf32> to vector<2x32xf32>
    %286 = arith.negf %285 : vector<2x32xf32>
    %287 = math.exp %286 : vector<2x32xf32>
    %cst_130 = arith.constant 1.000000e+00 : f32
    %288 = vector.broadcast %cst_130 : f32 to vector<2x32xf32>
    %289 = arith.addf %288, %287 : vector<2x32xf32>
    %290 = arith.divf %288, %289 : vector<2x32xf32>
    %291 = arith.mulf %282, %267 : vector<2x32xf32>
    %292 = arith.mulf %276, %284 : vector<2x32xf32>
    %293 = arith.addf %291, %292 : vector<2x32xf32>
    %294 = math.tanh %293 : vector<2x32xf32>
    %295 = arith.mulf %290, %294 : vector<2x32xf32>
    %c0_131 = arith.constant 0 : index
    %c0_132 = arith.constant 0 : index
    %c0_133 = arith.constant 0 : index
    %296 = vector.load %arg7[%c0_131, %c0_132, %c0_133] : memref<2x2x32xf32, #tpu.memory_space<vmem>>, vector<1x2x32xf32>
    %297 = vector.shape_cast %296 : vector<1x2x32xf32> to vector<2x32xf32>
    %298 = vector.shape_cast %295 : vector<2x32xf32> to vector<1x2x32xf32>
    tpu.vector_store %arg7[%c0_131, %c0_132, %c0_133], %298 {strides = array<i32>} : memref<2x2x32xf32, #tpu.memory_space<vmem>>, vector<1x2x32xf32>,
    %c0_134 = arith.constant 0 : index
    %c0_135 = arith.constant 0 : index
    %c0_136 = arith.constant 0 : index
    %299 = vector.load %arg8[%c0_134, %c0_135, %c0_136] : memref<2x2x32xf32, #tpu.memory_space<vmem>>, vector<1x2x32xf32>
    %300 = vector.shape_cast %299 : vector<1x2x32xf32> to vector<2x32xf32>
    %301 = vector.shape_cast %293 : vector<2x32xf32> to vector<1x2x32xf32>
    tpu.vector_store %arg8[%c0_134, %c0_135, %c0_136], %301 {strides = array<i32>} : memref<2x2x32xf32, #tpu.memory_space<vmem>>, vector<1x2x32xf32>,
    %c1_137 = arith.constant 1 : index
    %c0_138 = arith.constant 0 : index
    %c0_139 = arith.constant 0 : index
    %302 = vector.load %arg7[%c1_137, %c0_138, %c0_139] : memref<2x2x32xf32, #tpu.memory_space<vmem>>, vector<1x2x32xf32>
    %303 = vector.shape_cast %302 : vector<1x2x32xf32> to vector<2x32xf32>
    %c1_140 = arith.constant 1 : index
    %c0_141 = arith.constant 0 : index
    %c0_142 = arith.constant 0 : index
    %304 = vector.load %arg8[%c1_140, %c0_141, %c0_142] : memref<2x2x32xf32, #tpu.memory_space<vmem>>, vector<1x2x32xf32>
    %305 = vector.shape_cast %304 : vector<1x2x32xf32> to vector<2x32xf32>
    %306 = tpu.concatenate %295, %303 in 1 : vector<2x32xf32>, vector<2x32xf32> -> vector<2x64xf32>
    %307 = arith.truncf %306 : vector<2x64xf32> to vector<2x64xbf16>
    %308 = vector.shape_cast %4 : vector<1x64x128xbf16> to vector<64x128xbf16>
    %cst_143 = arith.constant dense<0.000000e+00> : vector<2x128xf32>
    %309 = tpu.matmul %307, %308, %cst_143 {dimension_numbers = #tpu.dot_dimension_numbers<[1], [0], [0], [1], [0, 0, 1, 1], [], []>} : vector<2x64xbf16>, vector<64x128xbf16>, vector<2x128xf32> -> vector<2x128xf32>
    %310 = vector.shape_cast %5 : vector<1x1x128xf32> to vector<1x128xf32>
    %311 = vector.broadcast %310 : vector<1x128xf32> to vector<2x128xf32>
    %312 = arith.addf %309, %311 : vector<2x128xf32>
    %313 = vector.extract_strided_slice %312 {offsets = [0, 0], sizes = [2, 32], strides = [1, 1]} : vector<2x128xf32> to vector<2x32xf32>
    %314 = arith.negf %313 : vector<2x32xf32>
    %315 = math.exp %314 : vector<2x32xf32>
    %cst_144 = arith.constant 1.000000e+00 : f32
    %316 = vector.broadcast %cst_144 : f32 to vector<2x32xf32>
    %317 = arith.addf %316, %315 : vector<2x32xf32>
    %318 = arith.divf %316, %317 : vector<2x32xf32>
    %319 = vector.extract_strided_slice %312 {offsets = [0, 32], sizes = [2, 32], strides = [1, 1]} : vector<2x128xf32> to vector<2x32xf32>
    %320 = arith.negf %319 : vector<2x32xf32>
    %321 = math.exp %320 : vector<2x32xf32>
    %cst_145 = arith.constant 1.000000e+00 : f32
    %322 = vector.broadcast %cst_145 : f32 to vector<2x32xf32>
    %323 = arith.addf %322, %321 : vector<2x32xf32>
    %324 = arith.divf %322, %323 : vector<2x32xf32>
    %325 = vector.extract_strided_slice %312 {offsets = [0, 64], sizes = [2, 32], strides = [1, 1]} : vector<2x128xf32> to vector<2x32xf32>
    %326 = math.tanh %325 : vector<2x32xf32>
    %327 = vector.extract_strided_slice %312 {offsets = [0, 96], sizes = [2, 32], strides = [1, 1]} : vector<2x128xf32> to vector<2x32xf32>
    %328 = arith.negf %327 : vector<2x32xf32>
    %329 = math.exp %328 : vector<2x32xf32>
    %cst_146 = arith.constant 1.000000e+00 : f32
    %330 = vector.broadcast %cst_146 : f32 to vector<2x32xf32>
    %331 = arith.addf %330, %329 : vector<2x32xf32>
    %332 = arith.divf %330, %331 : vector<2x32xf32>
    %333 = arith.mulf %324, %305 : vector<2x32xf32>
    %334 = arith.mulf %318, %326 : vector<2x32xf32>
    %335 = arith.addf %333, %334 : vector<2x32xf32>
    %336 = math.tanh %335 : vector<2x32xf32>
    %337 = arith.mulf %332, %336 : vector<2x32xf32>
    %c1_147 = arith.constant 1 : index
    %c0_148 = arith.constant 0 : index
    %c0_149 = arith.constant 0 : index
    %338 = vector.load %arg7[%c1_147, %c0_148, %c0_149] : memref<2x2x32xf32, #tpu.memory_space<vmem>>, vector<1x2x32xf32>
    %339 = vector.shape_cast %338 : vector<1x2x32xf32> to vector<2x32xf32>
    %340 = vector.shape_cast %337 : vector<2x32xf32> to vector<1x2x32xf32>
    tpu.vector_store %arg7[%c1_147, %c0_148, %c0_149], %340 {strides = array<i32>} : memref<2x2x32xf32, #tpu.memory_space<vmem>>, vector<1x2x32xf32>,
    %c1_150 = arith.constant 1 : index
    %c0_151 = arith.constant 0 : index
    %c0_152 = arith.constant 0 : index
    %341 = vector.load %arg8[%c1_150, %c0_151, %c0_152] : memref<2x2x32xf32, #tpu.memory_space<vmem>>, vector<1x2x32xf32>
    %342 = vector.shape_cast %341 : vector<1x2x32xf32> to vector<2x32xf32>
    %343 = vector.shape_cast %335 : vector<2x32xf32> to vector<1x2x32xf32>
    tpu.vector_store %arg8[%c1_150, %c0_151, %c0_152], %343 {strides = array<i32>} : memref<2x2x32xf32, #tpu.memory_space<vmem>>, vector<1x2x32xf32>,
    %344 = vector.shape_cast %337 : vector<2x32xf32> to vector<2x1x32xf32>
    %c0_153 = arith.constant 0 : index
    %c3_154 = arith.constant 3 : index
    %c0_155 = arith.constant 0 : index
    %345 = vector.load %arg6[%c0_153, %c3_154, %c0_155] : memref<2x8x32xf32, #tpu.memory_space<vmem>>, vector<2x1x32xf32>
    tpu.vector_store %arg6[%c0_153, %c3_154, %c0_155], %344 {strides = array<i32>} : memref<2x8x32xf32, #tpu.memory_space<vmem>>, vector<2x1x32xf32>,
    %c0_156 = arith.constant 0 : index
    %c4 = arith.constant 4 : index
    %c0_157 = arith.constant 0 : index
    %346 = vector.load %arg2[%c0_156, %c4, %c0_157] : memref<2x8x128xbf16, #tpu.memory_space<vmem>>, vector<2x1x128xbf16>
    %347 = vector.shape_cast %346 : vector<2x1x128xbf16> to vector<2x128xbf16>
    %348 = arith.extf %347 : vector<2x128xbf16> to vector<2x128xf32>
    %c0_158 = arith.constant 0 : index
    %c0_159 = arith.constant 0 : index
    %c0_160 = arith.constant 0 : index
    %349 = vector.load %arg7[%c0_158, %c0_159, %c0_160] : memref<2x2x32xf32, #tpu.memory_space<vmem>>, vector<1x2x32xf32>
    %350 = vector.shape_cast %349 : vector<1x2x32xf32> to vector<2x32xf32>
    %c0_161 = arith.constant 0 : index
    %c0_162 = arith.constant 0 : index
    %c0_163 = arith.constant 0 : index
    %351 = vector.load %arg8[%c0_161, %c0_162, %c0_163] : memref<2x2x32xf32, #tpu.memory_space<vmem>>, vector<1x2x32xf32>
    %352 = vector.shape_cast %351 : vector<1x2x32xf32> to vector<2x32xf32>
    %353 = arith.truncf %350 : vector<2x32xf32> to vector<2x32xbf16>
    %cst_164 = arith.constant dense<0.000000e+00> : vector<2x128xf32>
    %354 = tpu.matmul %353, %3, %cst_164 {dimension_numbers = #tpu.dot_dimension_numbers<[1], [0], [0], [1], [0, 0, 1, 1], [], []>} : vector<2x32xbf16>, vector<32x128xbf16>, vector<2x128xf32> -> vector<2x128xf32>
    %355 = arith.addf %348, %354 : vector<2x128xf32>
    %356 = vector.extract_strided_slice %355 {offsets = [0, 0], sizes = [2, 32], strides = [1, 1]} : vector<2x128xf32> to vector<2x32xf32>
    %357 = arith.negf %356 : vector<2x32xf32>
    %358 = math.exp %357 : vector<2x32xf32>
    %cst_165 = arith.constant 1.000000e+00 : f32
    %359 = vector.broadcast %cst_165 : f32 to vector<2x32xf32>
    %360 = arith.addf %359, %358 : vector<2x32xf32>
    %361 = arith.divf %359, %360 : vector<2x32xf32>
    %362 = vector.extract_strided_slice %355 {offsets = [0, 32], sizes = [2, 32], strides = [1, 1]} : vector<2x128xf32> to vector<2x32xf32>
    %363 = arith.negf %362 : vector<2x32xf32>
    %364 = math.exp %363 : vector<2x32xf32>
    %cst_166 = arith.constant 1.000000e+00 : f32
    %365 = vector.broadcast %cst_166 : f32 to vector<2x32xf32>
    %366 = arith.addf %365, %364 : vector<2x32xf32>
    %367 = arith.divf %365, %366 : vector<2x32xf32>
    %368 = vector.extract_strided_slice %355 {offsets = [0, 64], sizes = [2, 32], strides = [1, 1]} : vector<2x128xf32> to vector<2x32xf32>
    %369 = math.tanh %368 : vector<2x32xf32>
    %370 = vector.extract_strided_slice %355 {offsets = [0, 96], sizes = [2, 32], strides = [1, 1]} : vector<2x128xf32> to vector<2x32xf32>
    %371 = arith.negf %370 : vector<2x32xf32>
    %372 = math.exp %371 : vector<2x32xf32>
    %cst_167 = arith.constant 1.000000e+00 : f32
    %373 = vector.broadcast %cst_167 : f32 to vector<2x32xf32>
    %374 = arith.addf %373, %372 : vector<2x32xf32>
    %375 = arith.divf %373, %374 : vector<2x32xf32>
    %376 = arith.mulf %367, %352 : vector<2x32xf32>
    %377 = arith.mulf %361, %369 : vector<2x32xf32>
    %378 = arith.addf %376, %377 : vector<2x32xf32>
    %379 = math.tanh %378 : vector<2x32xf32>
    %380 = arith.mulf %375, %379 : vector<2x32xf32>
    %c0_168 = arith.constant 0 : index
    %c0_169 = arith.constant 0 : index
    %c0_170 = arith.constant 0 : index
    %381 = vector.load %arg7[%c0_168, %c0_169, %c0_170] : memref<2x2x32xf32, #tpu.memory_space<vmem>>, vector<1x2x32xf32>
    %382 = vector.shape_cast %381 : vector<1x2x32xf32> to vector<2x32xf32>
    %383 = vector.shape_cast %380 : vector<2x32xf32> to vector<1x2x32xf32>
    tpu.vector_store %arg7[%c0_168, %c0_169, %c0_170], %383 {strides = array<i32>} : memref<2x2x32xf32, #tpu.memory_space<vmem>>, vector<1x2x32xf32>,
    %c0_171 = arith.constant 0 : index
    %c0_172 = arith.constant 0 : index
    %c0_173 = arith.constant 0 : index
    %384 = vector.load %arg8[%c0_171, %c0_172, %c0_173] : memref<2x2x32xf32, #tpu.memory_space<vmem>>, vector<1x2x32xf32>
    %385 = vector.shape_cast %384 : vector<1x2x32xf32> to vector<2x32xf32>
    %386 = vector.shape_cast %378 : vector<2x32xf32> to vector<1x2x32xf32>
    tpu.vector_store %arg8[%c0_171, %c0_172, %c0_173], %386 {strides = array<i32>} : memref<2x2x32xf32, #tpu.memory_space<vmem>>, vector<1x2x32xf32>,
    %c1_174 = arith.constant 1 : index
    %c0_175 = arith.constant 0 : index
    %c0_176 = arith.constant 0 : index
    %387 = vector.load %arg7[%c1_174, %c0_175, %c0_176] : memref<2x2x32xf32, #tpu.memory_space<vmem>>, vector<1x2x32xf32>
    %388 = vector.shape_cast %387 : vector<1x2x32xf32> to vector<2x32xf32>
    %c1_177 = arith.constant 1 : index
    %c0_178 = arith.constant 0 : index
    %c0_179 = arith.constant 0 : index
    %389 = vector.load %arg8[%c1_177, %c0_178, %c0_179] : memref<2x2x32xf32, #tpu.memory_space<vmem>>, vector<1x2x32xf32>
    %390 = vector.shape_cast %389 : vector<1x2x32xf32> to vector<2x32xf32>
    %391 = tpu.concatenate %380, %388 in 1 : vector<2x32xf32>, vector<2x32xf32> -> vector<2x64xf32>
    %392 = arith.truncf %391 : vector<2x64xf32> to vector<2x64xbf16>
    %393 = vector.shape_cast %4 : vector<1x64x128xbf16> to vector<64x128xbf16>
    %cst_180 = arith.constant dense<0.000000e+00> : vector<2x128xf32>
    %394 = tpu.matmul %392, %393, %cst_180 {dimension_numbers = #tpu.dot_dimension_numbers<[1], [0], [0], [1], [0, 0, 1, 1], [], []>} : vector<2x64xbf16>, vector<64x128xbf16>, vector<2x128xf32> -> vector<2x128xf32>
    %395 = vector.shape_cast %5 : vector<1x1x128xf32> to vector<1x128xf32>
    %396 = vector.broadcast %395 : vector<1x128xf32> to vector<2x128xf32>
    %397 = arith.addf %394, %396 : vector<2x128xf32>
    %398 = vector.extract_strided_slice %397 {offsets = [0, 0], sizes = [2, 32], strides = [1, 1]} : vector<2x128xf32> to vector<2x32xf32>
    %399 = arith.negf %398 : vector<2x32xf32>
    %400 = math.exp %399 : vector<2x32xf32>
    %cst_181 = arith.constant 1.000000e+00 : f32
    %401 = vector.broadcast %cst_181 : f32 to vector<2x32xf32>
    %402 = arith.addf %401, %400 : vector<2x32xf32>
    %403 = arith.divf %401, %402 : vector<2x32xf32>
    %404 = vector.extract_strided_slice %397 {offsets = [0, 32], sizes = [2, 32], strides = [1, 1]} : vector<2x128xf32> to vector<2x32xf32>
    %405 = arith.negf %404 : vector<2x32xf32>
    %406 = math.exp %405 : vector<2x32xf32>
    %cst_182 = arith.constant 1.000000e+00 : f32
    %407 = vector.broadcast %cst_182 : f32 to vector<2x32xf32>
    %408 = arith.addf %407, %406 : vector<2x32xf32>
    %409 = arith.divf %407, %408 : vector<2x32xf32>
    %410 = vector.extract_strided_slice %397 {offsets = [0, 64], sizes = [2, 32], strides = [1, 1]} : vector<2x128xf32> to vector<2x32xf32>
    %411 = math.tanh %410 : vector<2x32xf32>
    %412 = vector.extract_strided_slice %397 {offsets = [0, 96], sizes = [2, 32], strides = [1, 1]} : vector<2x128xf32> to vector<2x32xf32>
    %413 = arith.negf %412 : vector<2x32xf32>
    %414 = math.exp %413 : vector<2x32xf32>
    %cst_183 = arith.constant 1.000000e+00 : f32
    %415 = vector.broadcast %cst_183 : f32 to vector<2x32xf32>
    %416 = arith.addf %415, %414 : vector<2x32xf32>
    %417 = arith.divf %415, %416 : vector<2x32xf32>
    %418 = arith.mulf %409, %390 : vector<2x32xf32>
    %419 = arith.mulf %403, %411 : vector<2x32xf32>
    %420 = arith.addf %418, %419 : vector<2x32xf32>
    %421 = math.tanh %420 : vector<2x32xf32>
    %422 = arith.mulf %417, %421 : vector<2x32xf32>
    %c1_184 = arith.constant 1 : index
    %c0_185 = arith.constant 0 : index
    %c0_186 = arith.constant 0 : index
    %423 = vector.load %arg7[%c1_184, %c0_185, %c0_186] : memref<2x2x32xf32, #tpu.memory_space<vmem>>, vector<1x2x32xf32>
    %424 = vector.shape_cast %423 : vector<1x2x32xf32> to vector<2x32xf32>
    %425 = vector.shape_cast %422 : vector<2x32xf32> to vector<1x2x32xf32>
    tpu.vector_store %arg7[%c1_184, %c0_185, %c0_186], %425 {strides = array<i32>} : memref<2x2x32xf32, #tpu.memory_space<vmem>>, vector<1x2x32xf32>,
    %c1_187 = arith.constant 1 : index
    %c0_188 = arith.constant 0 : index
    %c0_189 = arith.constant 0 : index
    %426 = vector.load %arg8[%c1_187, %c0_188, %c0_189] : memref<2x2x32xf32, #tpu.memory_space<vmem>>, vector<1x2x32xf32>
    %427 = vector.shape_cast %426 : vector<1x2x32xf32> to vector<2x32xf32>
    %428 = vector.shape_cast %420 : vector<2x32xf32> to vector<1x2x32xf32>
    tpu.vector_store %arg8[%c1_187, %c0_188, %c0_189], %428 {strides = array<i32>} : memref<2x2x32xf32, #tpu.memory_space<vmem>>, vector<1x2x32xf32>,
    %429 = vector.shape_cast %422 : vector<2x32xf32> to vector<2x1x32xf32>
    %c0_190 = arith.constant 0 : index
    %c4_191 = arith.constant 4 : index
    %c0_192 = arith.constant 0 : index
    %430 = vector.load %arg6[%c0_190, %c4_191, %c0_192] : memref<2x8x32xf32, #tpu.memory_space<vmem>>, vector<2x1x32xf32>
    tpu.vector_store %arg6[%c0_190, %c4_191, %c0_192], %429 {strides = array<i32>} : memref<2x8x32xf32, #tpu.memory_space<vmem>>, vector<2x1x32xf32>,
    %c0_193 = arith.constant 0 : index
    %c5 = arith.constant 5 : index
    %c0_194 = arith.constant 0 : index
    %431 = vector.load %arg2[%c0_193, %c5, %c0_194] : memref<2x8x128xbf16, #tpu.memory_space<vmem>>, vector<2x1x128xbf16>
    %432 = vector.shape_cast %431 : vector<2x1x128xbf16> to vector<2x128xbf16>
    %433 = arith.extf %432 : vector<2x128xbf16> to vector<2x128xf32>
    %c0_195 = arith.constant 0 : index
    %c0_196 = arith.constant 0 : index
    %c0_197 = arith.constant 0 : index
    %434 = vector.load %arg7[%c0_195, %c0_196, %c0_197] : memref<2x2x32xf32, #tpu.memory_space<vmem>>, vector<1x2x32xf32>
    %435 = vector.shape_cast %434 : vector<1x2x32xf32> to vector<2x32xf32>
    %c0_198 = arith.constant 0 : index
    %c0_199 = arith.constant 0 : index
    %c0_200 = arith.constant 0 : index
    %436 = vector.load %arg8[%c0_198, %c0_199, %c0_200] : memref<2x2x32xf32, #tpu.memory_space<vmem>>, vector<1x2x32xf32>
    %437 = vector.shape_cast %436 : vector<1x2x32xf32> to vector<2x32xf32>
    %438 = arith.truncf %435 : vector<2x32xf32> to vector<2x32xbf16>
    %cst_201 = arith.constant dense<0.000000e+00> : vector<2x128xf32>
    %439 = tpu.matmul %438, %3, %cst_201 {dimension_numbers = #tpu.dot_dimension_numbers<[1], [0], [0], [1], [0, 0, 1, 1], [], []>} : vector<2x32xbf16>, vector<32x128xbf16>, vector<2x128xf32> -> vector<2x128xf32>
    %440 = arith.addf %433, %439 : vector<2x128xf32>
    %441 = vector.extract_strided_slice %440 {offsets = [0, 0], sizes = [2, 32], strides = [1, 1]} : vector<2x128xf32> to vector<2x32xf32>
    %442 = arith.negf %441 : vector<2x32xf32>
    %443 = math.exp %442 : vector<2x32xf32>
    %cst_202 = arith.constant 1.000000e+00 : f32
    %444 = vector.broadcast %cst_202 : f32 to vector<2x32xf32>
    %445 = arith.addf %444, %443 : vector<2x32xf32>
    %446 = arith.divf %444, %445 : vector<2x32xf32>
    %447 = vector.extract_strided_slice %440 {offsets = [0, 32], sizes = [2, 32], strides = [1, 1]} : vector<2x128xf32> to vector<2x32xf32>
    %448 = arith.negf %447 : vector<2x32xf32>
    %449 = math.exp %448 : vector<2x32xf32>
    %cst_203 = arith.constant 1.000000e+00 : f32
    %450 = vector.broadcast %cst_203 : f32 to vector<2x32xf32>
    %451 = arith.addf %450, %449 : vector<2x32xf32>
    %452 = arith.divf %450, %451 : vector<2x32xf32>
    %453 = vector.extract_strided_slice %440 {offsets = [0, 64], sizes = [2, 32], strides = [1, 1]} : vector<2x128xf32> to vector<2x32xf32>
    %454 = math.tanh %453 : vector<2x32xf32>
    %455 = vector.extract_strided_slice %440 {offsets = [0, 96], sizes = [2, 32], strides = [1, 1]} : vector<2x128xf32> to vector<2x32xf32>
    %456 = arith.negf %455 : vector<2x32xf32>
    %457 = math.exp %456 : vector<2x32xf32>
    %cst_204 = arith.constant 1.000000e+00 : f32
    %458 = vector.broadcast %cst_204 : f32 to vector<2x32xf32>
    %459 = arith.addf %458, %457 : vector<2x32xf32>
    %460 = arith.divf %458, %459 : vector<2x32xf32>
    %461 = arith.mulf %452, %437 : vector<2x32xf32>
    %462 = arith.mulf %446, %454 : vector<2x32xf32>
    %463 = arith.addf %461, %462 : vector<2x32xf32>
    %464 = math.tanh %463 : vector<2x32xf32>
    %465 = arith.mulf %460, %464 : vector<2x32xf32>
    %c0_205 = arith.constant 0 : index
    %c0_206 = arith.constant 0 : index
    %c0_207 = arith.constant 0 : index
    %466 = vector.load %arg7[%c0_205, %c0_206, %c0_207] : memref<2x2x32xf32, #tpu.memory_space<vmem>>, vector<1x2x32xf32>
    %467 = vector.shape_cast %466 : vector<1x2x32xf32> to vector<2x32xf32>
    %468 = vector.shape_cast %465 : vector<2x32xf32> to vector<1x2x32xf32>
    tpu.vector_store %arg7[%c0_205, %c0_206, %c0_207], %468 {strides = array<i32>} : memref<2x2x32xf32, #tpu.memory_space<vmem>>, vector<1x2x32xf32>,
    %c0_208 = arith.constant 0 : index
    %c0_209 = arith.constant 0 : index
    %c0_210 = arith.constant 0 : index
    %469 = vector.load %arg8[%c0_208, %c0_209, %c0_210] : memref<2x2x32xf32, #tpu.memory_space<vmem>>, vector<1x2x32xf32>
    %470 = vector.shape_cast %469 : vector<1x2x32xf32> to vector<2x32xf32>
    %471 = vector.shape_cast %463 : vector<2x32xf32> to vector<1x2x32xf32>
    tpu.vector_store %arg8[%c0_208, %c0_209, %c0_210], %471 {strides = array<i32>} : memref<2x2x32xf32, #tpu.memory_space<vmem>>, vector<1x2x32xf32>,
    %c1_211 = arith.constant 1 : index
    %c0_212 = arith.constant 0 : index
    %c0_213 = arith.constant 0 : index
    %472 = vector.load %arg7[%c1_211, %c0_212, %c0_213] : memref<2x2x32xf32, #tpu.memory_space<vmem>>, vector<1x2x32xf32>
    %473 = vector.shape_cast %472 : vector<1x2x32xf32> to vector<2x32xf32>
    %c1_214 = arith.constant 1 : index
    %c0_215 = arith.constant 0 : index
    %c0_216 = arith.constant 0 : index
    %474 = vector.load %arg8[%c1_214, %c0_215, %c0_216] : memref<2x2x32xf32, #tpu.memory_space<vmem>>, vector<1x2x32xf32>
    %475 = vector.shape_cast %474 : vector<1x2x32xf32> to vector<2x32xf32>
    %476 = tpu.concatenate %465, %473 in 1 : vector<2x32xf32>, vector<2x32xf32> -> vector<2x64xf32>
    %477 = arith.truncf %476 : vector<2x64xf32> to vector<2x64xbf16>
    %478 = vector.shape_cast %4 : vector<1x64x128xbf16> to vector<64x128xbf16>
    %cst_217 = arith.constant dense<0.000000e+00> : vector<2x128xf32>
    %479 = tpu.matmul %477, %478, %cst_217 {dimension_numbers = #tpu.dot_dimension_numbers<[1], [0], [0], [1], [0, 0, 1, 1], [], []>} : vector<2x64xbf16>, vector<64x128xbf16>, vector<2x128xf32> -> vector<2x128xf32>
    %480 = vector.shape_cast %5 : vector<1x1x128xf32> to vector<1x128xf32>
    %481 = vector.broadcast %480 : vector<1x128xf32> to vector<2x128xf32>
    %482 = arith.addf %479, %481 : vector<2x128xf32>
    %483 = vector.extract_strided_slice %482 {offsets = [0, 0], sizes = [2, 32], strides = [1, 1]} : vector<2x128xf32> to vector<2x32xf32>
    %484 = arith.negf %483 : vector<2x32xf32>
    %485 = math.exp %484 : vector<2x32xf32>
    %cst_218 = arith.constant 1.000000e+00 : f32
    %486 = vector.broadcast %cst_218 : f32 to vector<2x32xf32>
    %487 = arith.addf %486, %485 : vector<2x32xf32>
    %488 = arith.divf %486, %487 : vector<2x32xf32>
    %489 = vector.extract_strided_slice %482 {offsets = [0, 32], sizes = [2, 32], strides = [1, 1]} : vector<2x128xf32> to vector<2x32xf32>
    %490 = arith.negf %489 : vector<2x32xf32>
    %491 = math.exp %490 : vector<2x32xf32>
    %cst_219 = arith.constant 1.000000e+00 : f32
    %492 = vector.broadcast %cst_219 : f32 to vector<2x32xf32>
    %493 = arith.addf %492, %491 : vector<2x32xf32>
    %494 = arith.divf %492, %493 : vector<2x32xf32>
    %495 = vector.extract_strided_slice %482 {offsets = [0, 64], sizes = [2, 32], strides = [1, 1]} : vector<2x128xf32> to vector<2x32xf32>
    %496 = math.tanh %495 : vector<2x32xf32>
    %497 = vector.extract_strided_slice %482 {offsets = [0, 96], sizes = [2, 32], strides = [1, 1]} : vector<2x128xf32> to vector<2x32xf32>
    %498 = arith.negf %497 : vector<2x32xf32>
    %499 = math.exp %498 : vector<2x32xf32>
    %cst_220 = arith.constant 1.000000e+00 : f32
    %500 = vector.broadcast %cst_220 : f32 to vector<2x32xf32>
    %501 = arith.addf %500, %499 : vector<2x32xf32>
    %502 = arith.divf %500, %501 : vector<2x32xf32>
    %503 = arith.mulf %494, %475 : vector<2x32xf32>
    %504 = arith.mulf %488, %496 : vector<2x32xf32>
    %505 = arith.addf %503, %504 : vector<2x32xf32>
    %506 = math.tanh %505 : vector<2x32xf32>
    %507 = arith.mulf %502, %506 : vector<2x32xf32>
    %c1_221 = arith.constant 1 : index
    %c0_222 = arith.constant 0 : index
    %c0_223 = arith.constant 0 : index
    %508 = vector.load %arg7[%c1_221, %c0_222, %c0_223] : memref<2x2x32xf32, #tpu.memory_space<vmem>>, vector<1x2x32xf32>
    %509 = vector.shape_cast %508 : vector<1x2x32xf32> to vector<2x32xf32>
    %510 = vector.shape_cast %507 : vector<2x32xf32> to vector<1x2x32xf32>
    tpu.vector_store %arg7[%c1_221, %c0_222, %c0_223], %510 {strides = array<i32>} : memref<2x2x32xf32, #tpu.memory_space<vmem>>, vector<1x2x32xf32>,
    %c1_224 = arith.constant 1 : index
    %c0_225 = arith.constant 0 : index
    %c0_226 = arith.constant 0 : index
    %511 = vector.load %arg8[%c1_224, %c0_225, %c0_226] : memref<2x2x32xf32, #tpu.memory_space<vmem>>, vector<1x2x32xf32>
    %512 = vector.shape_cast %511 : vector<1x2x32xf32> to vector<2x32xf32>
    %513 = vector.shape_cast %505 : vector<2x32xf32> to vector<1x2x32xf32>
    tpu.vector_store %arg8[%c1_224, %c0_225, %c0_226], %513 {strides = array<i32>} : memref<2x2x32xf32, #tpu.memory_space<vmem>>, vector<1x2x32xf32>,
    %514 = vector.shape_cast %507 : vector<2x32xf32> to vector<2x1x32xf32>
    %c0_227 = arith.constant 0 : index
    %c5_228 = arith.constant 5 : index
    %c0_229 = arith.constant 0 : index
    %515 = vector.load %arg6[%c0_227, %c5_228, %c0_229] : memref<2x8x32xf32, #tpu.memory_space<vmem>>, vector<2x1x32xf32>
    tpu.vector_store %arg6[%c0_227, %c5_228, %c0_229], %514 {strides = array<i32>} : memref<2x8x32xf32, #tpu.memory_space<vmem>>, vector<2x1x32xf32>,
    %c0_230 = arith.constant 0 : index
    %c6 = arith.constant 6 : index
    %c0_231 = arith.constant 0 : index
    %516 = vector.load %arg2[%c0_230, %c6, %c0_231] : memref<2x8x128xbf16, #tpu.memory_space<vmem>>, vector<2x1x128xbf16>
    %517 = vector.shape_cast %516 : vector<2x1x128xbf16> to vector<2x128xbf16>
    %518 = arith.extf %517 : vector<2x128xbf16> to vector<2x128xf32>
    %c0_232 = arith.constant 0 : index
    %c0_233 = arith.constant 0 : index
    %c0_234 = arith.constant 0 : index
    %519 = vector.load %arg7[%c0_232, %c0_233, %c0_234] : memref<2x2x32xf32, #tpu.memory_space<vmem>>, vector<1x2x32xf32>
    %520 = vector.shape_cast %519 : vector<1x2x32xf32> to vector<2x32xf32>
    %c0_235 = arith.constant 0 : index
    %c0_236 = arith.constant 0 : index
    %c0_237 = arith.constant 0 : index
    %521 = vector.load %arg8[%c0_235, %c0_236, %c0_237] : memref<2x2x32xf32, #tpu.memory_space<vmem>>, vector<1x2x32xf32>
    %522 = vector.shape_cast %521 : vector<1x2x32xf32> to vector<2x32xf32>
    %523 = arith.truncf %520 : vector<2x32xf32> to vector<2x32xbf16>
    %cst_238 = arith.constant dense<0.000000e+00> : vector<2x128xf32>
    %524 = tpu.matmul %523, %3, %cst_238 {dimension_numbers = #tpu.dot_dimension_numbers<[1], [0], [0], [1], [0, 0, 1, 1], [], []>} : vector<2x32xbf16>, vector<32x128xbf16>, vector<2x128xf32> -> vector<2x128xf32>
    %525 = arith.addf %518, %524 : vector<2x128xf32>
    %526 = vector.extract_strided_slice %525 {offsets = [0, 0], sizes = [2, 32], strides = [1, 1]} : vector<2x128xf32> to vector<2x32xf32>
    %527 = arith.negf %526 : vector<2x32xf32>
    %528 = math.exp %527 : vector<2x32xf32>
    %cst_239 = arith.constant 1.000000e+00 : f32
    %529 = vector.broadcast %cst_239 : f32 to vector<2x32xf32>
    %530 = arith.addf %529, %528 : vector<2x32xf32>
    %531 = arith.divf %529, %530 : vector<2x32xf32>
    %532 = vector.extract_strided_slice %525 {offsets = [0, 32], sizes = [2, 32], strides = [1, 1]} : vector<2x128xf32> to vector<2x32xf32>
    %533 = arith.negf %532 : vector<2x32xf32>
    %534 = math.exp %533 : vector<2x32xf32>
    %cst_240 = arith.constant 1.000000e+00 : f32
    %535 = vector.broadcast %cst_240 : f32 to vector<2x32xf32>
    %536 = arith.addf %535, %534 : vector<2x32xf32>
    %537 = arith.divf %535, %536 : vector<2x32xf32>
    %538 = vector.extract_strided_slice %525 {offsets = [0, 64], sizes = [2, 32], strides = [1, 1]} : vector<2x128xf32> to vector<2x32xf32>
    %539 = math.tanh %538 : vector<2x32xf32>
    %540 = vector.extract_strided_slice %525 {offsets = [0, 96], sizes = [2, 32], strides = [1, 1]} : vector<2x128xf32> to vector<2x32xf32>
    %541 = arith.negf %540 : vector<2x32xf32>
    %542 = math.exp %541 : vector<2x32xf32>
    %cst_241 = arith.constant 1.000000e+00 : f32
    %543 = vector.broadcast %cst_241 : f32 to vector<2x32xf32>
    %544 = arith.addf %543, %542 : vector<2x32xf32>
    %545 = arith.divf %543, %544 : vector<2x32xf32>
    %546 = arith.mulf %537, %522 : vector<2x32xf32>
    %547 = arith.mulf %531, %539 : vector<2x32xf32>
    %548 = arith.addf %546, %547 : vector<2x32xf32>
    %549 = math.tanh %548 : vector<2x32xf32>
    %550 = arith.mulf %545, %549 : vector<2x32xf32>
    %c0_242 = arith.constant 0 : index
    %c0_243 = arith.constant 0 : index
    %c0_244 = arith.constant 0 : index
    %551 = vector.load %arg7[%c0_242, %c0_243, %c0_244] : memref<2x2x32xf32, #tpu.memory_space<vmem>>, vector<1x2x32xf32>
    %552 = vector.shape_cast %551 : vector<1x2x32xf32> to vector<2x32xf32>
    %553 = vector.shape_cast %550 : vector<2x32xf32> to vector<1x2x32xf32>
    tpu.vector_store %arg7[%c0_242, %c0_243, %c0_244], %553 {strides = array<i32>} : memref<2x2x32xf32, #tpu.memory_space<vmem>>, vector<1x2x32xf32>,
    %c0_245 = arith.constant 0 : index
    %c0_246 = arith.constant 0 : index
    %c0_247 = arith.constant 0 : index
    %554 = vector.load %arg8[%c0_245, %c0_246, %c0_247] : memref<2x2x32xf32, #tpu.memory_space<vmem>>, vector<1x2x32xf32>
    %555 = vector.shape_cast %554 : vector<1x2x32xf32> to vector<2x32xf32>
    %556 = vector.shape_cast %548 : vector<2x32xf32> to vector<1x2x32xf32>
    tpu.vector_store %arg8[%c0_245, %c0_246, %c0_247], %556 {strides = array<i32>} : memref<2x2x32xf32, #tpu.memory_space<vmem>>, vector<1x2x32xf32>,
    %c1_248 = arith.constant 1 : index
    %c0_249 = arith.constant 0 : index
    %c0_250 = arith.constant 0 : index
    %557 = vector.load %arg7[%c1_248, %c0_249, %c0_250] : memref<2x2x32xf32, #tpu.memory_space<vmem>>, vector<1x2x32xf32>
    %558 = vector.shape_cast %557 : vector<1x2x32xf32> to vector<2x32xf32>
    %c1_251 = arith.constant 1 : index
    %c0_252 = arith.constant 0 : index
    %c0_253 = arith.constant 0 : index
    %559 = vector.load %arg8[%c1_251, %c0_252, %c0_253] : memref<2x2x32xf32, #tpu.memory_space<vmem>>, vector<1x2x32xf32>
    %560 = vector.shape_cast %559 : vector<1x2x32xf32> to vector<2x32xf32>
    %561 = tpu.concatenate %550, %558 in 1 : vector<2x32xf32>, vector<2x32xf32> -> vector<2x64xf32>
    %562 = arith.truncf %561 : vector<2x64xf32> to vector<2x64xbf16>
    %563 = vector.shape_cast %4 : vector<1x64x128xbf16> to vector<64x128xbf16>
    %cst_254 = arith.constant dense<0.000000e+00> : vector<2x128xf32>
    %564 = tpu.matmul %562, %563, %cst_254 {dimension_numbers = #tpu.dot_dimension_numbers<[1], [0], [0], [1], [0, 0, 1, 1], [], []>} : vector<2x64xbf16>, vector<64x128xbf16>, vector<2x128xf32> -> vector<2x128xf32>
    %565 = vector.shape_cast %5 : vector<1x1x128xf32> to vector<1x128xf32>
    %566 = vector.broadcast %565 : vector<1x128xf32> to vector<2x128xf32>
    %567 = arith.addf %564, %566 : vector<2x128xf32>
    %568 = vector.extract_strided_slice %567 {offsets = [0, 0], sizes = [2, 32], strides = [1, 1]} : vector<2x128xf32> to vector<2x32xf32>
    %569 = arith.negf %568 : vector<2x32xf32>
    %570 = math.exp %569 : vector<2x32xf32>
    %cst_255 = arith.constant 1.000000e+00 : f32
    %571 = vector.broadcast %cst_255 : f32 to vector<2x32xf32>
    %572 = arith.addf %571, %570 : vector<2x32xf32>
    %573 = arith.divf %571, %572 : vector<2x32xf32>
    %574 = vector.extract_strided_slice %567 {offsets = [0, 32], sizes = [2, 32], strides = [1, 1]} : vector<2x128xf32> to vector<2x32xf32>
    %575 = arith.negf %574 : vector<2x32xf32>
    %576 = math.exp %575 : vector<2x32xf32>
    %cst_256 = arith.constant 1.000000e+00 : f32
    %577 = vector.broadcast %cst_256 : f32 to vector<2x32xf32>
    %578 = arith.addf %577, %576 : vector<2x32xf32>
    %579 = arith.divf %577, %578 : vector<2x32xf32>
    %580 = vector.extract_strided_slice %567 {offsets = [0, 64], sizes = [2, 32], strides = [1, 1]} : vector<2x128xf32> to vector<2x32xf32>
    %581 = math.tanh %580 : vector<2x32xf32>
    %582 = vector.extract_strided_slice %567 {offsets = [0, 96], sizes = [2, 32], strides = [1, 1]} : vector<2x128xf32> to vector<2x32xf32>
    %583 = arith.negf %582 : vector<2x32xf32>
    %584 = math.exp %583 : vector<2x32xf32>
    %cst_257 = arith.constant 1.000000e+00 : f32
    %585 = vector.broadcast %cst_257 : f32 to vector<2x32xf32>
    %586 = arith.addf %585, %584 : vector<2x32xf32>
    %587 = arith.divf %585, %586 : vector<2x32xf32>
    %588 = arith.mulf %579, %560 : vector<2x32xf32>
    %589 = arith.mulf %573, %581 : vector<2x32xf32>
    %590 = arith.addf %588, %589 : vector<2x32xf32>
    %591 = math.tanh %590 : vector<2x32xf32>
    %592 = arith.mulf %587, %591 : vector<2x32xf32>
    %c1_258 = arith.constant 1 : index
    %c0_259 = arith.constant 0 : index
    %c0_260 = arith.constant 0 : index
    %593 = vector.load %arg7[%c1_258, %c0_259, %c0_260] : memref<2x2x32xf32, #tpu.memory_space<vmem>>, vector<1x2x32xf32>
    %594 = vector.shape_cast %593 : vector<1x2x32xf32> to vector<2x32xf32>
    %595 = vector.shape_cast %592 : vector<2x32xf32> to vector<1x2x32xf32>
    tpu.vector_store %arg7[%c1_258, %c0_259, %c0_260], %595 {strides = array<i32>} : memref<2x2x32xf32, #tpu.memory_space<vmem>>, vector<1x2x32xf32>,
    %c1_261 = arith.constant 1 : index
    %c0_262 = arith.constant 0 : index
    %c0_263 = arith.constant 0 : index
    %596 = vector.load %arg8[%c1_261, %c0_262, %c0_263] : memref<2x2x32xf32, #tpu.memory_space<vmem>>, vector<1x2x32xf32>
    %597 = vector.shape_cast %596 : vector<1x2x32xf32> to vector<2x32xf32>
    %598 = vector.shape_cast %590 : vector<2x32xf32> to vector<1x2x32xf32>
    tpu.vector_store %arg8[%c1_261, %c0_262, %c0_263], %598 {strides = array<i32>} : memref<2x2x32xf32, #tpu.memory_space<vmem>>, vector<1x2x32xf32>,
    %599 = vector.shape_cast %592 : vector<2x32xf32> to vector<2x1x32xf32>
    %c0_264 = arith.constant 0 : index
    %c6_265 = arith.constant 6 : index
    %c0_266 = arith.constant 0 : index
    %600 = vector.load %arg6[%c0_264, %c6_265, %c0_266] : memref<2x8x32xf32, #tpu.memory_space<vmem>>, vector<2x1x32xf32>
    tpu.vector_store %arg6[%c0_264, %c6_265, %c0_266], %599 {strides = array<i32>} : memref<2x8x32xf32, #tpu.memory_space<vmem>>, vector<2x1x32xf32>,
    %c0_267 = arith.constant 0 : index
    %c7 = arith.constant 7 : index
    %c0_268 = arith.constant 0 : index
    %601 = vector.load %arg2[%c0_267, %c7, %c0_268] : memref<2x8x128xbf16, #tpu.memory_space<vmem>>, vector<2x1x128xbf16>
    %602 = vector.shape_cast %601 : vector<2x1x128xbf16> to vector<2x128xbf16>
    %603 = arith.extf %602 : vector<2x128xbf16> to vector<2x128xf32>
    %c0_269 = arith.constant 0 : index
    %c0_270 = arith.constant 0 : index
    %c0_271 = arith.constant 0 : index
    %604 = vector.load %arg7[%c0_269, %c0_270, %c0_271] : memref<2x2x32xf32, #tpu.memory_space<vmem>>, vector<1x2x32xf32>
    %605 = vector.shape_cast %604 : vector<1x2x32xf32> to vector<2x32xf32>
    %c0_272 = arith.constant 0 : index
    %c0_273 = arith.constant 0 : index
    %c0_274 = arith.constant 0 : index
    %606 = vector.load %arg8[%c0_272, %c0_273, %c0_274] : memref<2x2x32xf32, #tpu.memory_space<vmem>>, vector<1x2x32xf32>
    %607 = vector.shape_cast %606 : vector<1x2x32xf32> to vector<2x32xf32>
    %608 = arith.truncf %605 : vector<2x32xf32> to vector<2x32xbf16>
    %cst_275 = arith.constant dense<0.000000e+00> : vector<2x128xf32>
    %609 = tpu.matmul %608, %3, %cst_275 {dimension_numbers = #tpu.dot_dimension_numbers<[1], [0], [0], [1], [0, 0, 1, 1], [], []>} : vector<2x32xbf16>, vector<32x128xbf16>, vector<2x128xf32> -> vector<2x128xf32>
    %610 = arith.addf %603, %609 : vector<2x128xf32>
    %611 = vector.extract_strided_slice %610 {offsets = [0, 0], sizes = [2, 32], strides = [1, 1]} : vector<2x128xf32> to vector<2x32xf32>
    %612 = arith.negf %611 : vector<2x32xf32>
    %613 = math.exp %612 : vector<2x32xf32>
    %cst_276 = arith.constant 1.000000e+00 : f32
    %614 = vector.broadcast %cst_276 : f32 to vector<2x32xf32>
    %615 = arith.addf %614, %613 : vector<2x32xf32>
    %616 = arith.divf %614, %615 : vector<2x32xf32>
    %617 = vector.extract_strided_slice %610 {offsets = [0, 32], sizes = [2, 32], strides = [1, 1]} : vector<2x128xf32> to vector<2x32xf32>
    %618 = arith.negf %617 : vector<2x32xf32>
    %619 = math.exp %618 : vector<2x32xf32>
    %cst_277 = arith.constant 1.000000e+00 : f32
    %620 = vector.broadcast %cst_277 : f32 to vector<2x32xf32>
    %621 = arith.addf %620, %619 : vector<2x32xf32>
    %622 = arith.divf %620, %621 : vector<2x32xf32>
    %623 = vector.extract_strided_slice %610 {offsets = [0, 64], sizes = [2, 32], strides = [1, 1]} : vector<2x128xf32> to vector<2x32xf32>
    %624 = math.tanh %623 : vector<2x32xf32>
    %625 = vector.extract_strided_slice %610 {offsets = [0, 96], sizes = [2, 32], strides = [1, 1]} : vector<2x128xf32> to vector<2x32xf32>
    %626 = arith.negf %625 : vector<2x32xf32>
    %627 = math.exp %626 : vector<2x32xf32>
    %cst_278 = arith.constant 1.000000e+00 : f32
    %628 = vector.broadcast %cst_278 : f32 to vector<2x32xf32>
    %629 = arith.addf %628, %627 : vector<2x32xf32>
    %630 = arith.divf %628, %629 : vector<2x32xf32>
    %631 = arith.mulf %622, %607 : vector<2x32xf32>
    %632 = arith.mulf %616, %624 : vector<2x32xf32>
    %633 = arith.addf %631, %632 : vector<2x32xf32>
    %634 = math.tanh %633 : vector<2x32xf32>
    %635 = arith.mulf %630, %634 : vector<2x32xf32>
    %c0_279 = arith.constant 0 : index
    %c0_280 = arith.constant 0 : index
    %c0_281 = arith.constant 0 : index
    %636 = vector.load %arg7[%c0_279, %c0_280, %c0_281] : memref<2x2x32xf32, #tpu.memory_space<vmem>>, vector<1x2x32xf32>
    %637 = vector.shape_cast %636 : vector<1x2x32xf32> to vector<2x32xf32>
    %638 = vector.shape_cast %635 : vector<2x32xf32> to vector<1x2x32xf32>
    tpu.vector_store %arg7[%c0_279, %c0_280, %c0_281], %638 {strides = array<i32>} : memref<2x2x32xf32, #tpu.memory_space<vmem>>, vector<1x2x32xf32>,
    %c0_282 = arith.constant 0 : index
    %c0_283 = arith.constant 0 : index
    %c0_284 = arith.constant 0 : index
    %639 = vector.load %arg8[%c0_282, %c0_283, %c0_284] : memref<2x2x32xf32, #tpu.memory_space<vmem>>, vector<1x2x32xf32>
    %640 = vector.shape_cast %639 : vector<1x2x32xf32> to vector<2x32xf32>
    %641 = vector.shape_cast %633 : vector<2x32xf32> to vector<1x2x32xf32>
    tpu.vector_store %arg8[%c0_282, %c0_283, %c0_284], %641 {strides = array<i32>} : memref<2x2x32xf32, #tpu.memory_space<vmem>>, vector<1x2x32xf32>,
    %c1_285 = arith.constant 1 : index
    %c0_286 = arith.constant 0 : index
    %c0_287 = arith.constant 0 : index
    %642 = vector.load %arg7[%c1_285, %c0_286, %c0_287] : memref<2x2x32xf32, #tpu.memory_space<vmem>>, vector<1x2x32xf32>
    %643 = vector.shape_cast %642 : vector<1x2x32xf32> to vector<2x32xf32>
    %c1_288 = arith.constant 1 : index
    %c0_289 = arith.constant 0 : index
    %c0_290 = arith.constant 0 : index
    %644 = vector.load %arg8[%c1_288, %c0_289, %c0_290] : memref<2x2x32xf32, #tpu.memory_space<vmem>>, vector<1x2x32xf32>
    %645 = vector.shape_cast %644 : vector<1x2x32xf32> to vector<2x32xf32>
    %646 = tpu.concatenate %635, %643 in 1 : vector<2x32xf32>, vector<2x32xf32> -> vector<2x64xf32>
    %647 = arith.truncf %646 : vector<2x64xf32> to vector<2x64xbf16>
    %648 = vector.shape_cast %4 : vector<1x64x128xbf16> to vector<64x128xbf16>
    %cst_291 = arith.constant dense<0.000000e+00> : vector<2x128xf32>
    %649 = tpu.matmul %647, %648, %cst_291 {dimension_numbers = #tpu.dot_dimension_numbers<[1], [0], [0], [1], [0, 0, 1, 1], [], []>} : vector<2x64xbf16>, vector<64x128xbf16>, vector<2x128xf32> -> vector<2x128xf32>
    %650 = vector.shape_cast %5 : vector<1x1x128xf32> to vector<1x128xf32>
    %651 = vector.broadcast %650 : vector<1x128xf32> to vector<2x128xf32>
    %652 = arith.addf %649, %651 : vector<2x128xf32>
    %653 = vector.extract_strided_slice %652 {offsets = [0, 0], sizes = [2, 32], strides = [1, 1]} : vector<2x128xf32> to vector<2x32xf32>
    %654 = arith.negf %653 : vector<2x32xf32>
    %655 = math.exp %654 : vector<2x32xf32>
    %cst_292 = arith.constant 1.000000e+00 : f32
    %656 = vector.broadcast %cst_292 : f32 to vector<2x32xf32>
    %657 = arith.addf %656, %655 : vector<2x32xf32>
    %658 = arith.divf %656, %657 : vector<2x32xf32>
    %659 = vector.extract_strided_slice %652 {offsets = [0, 32], sizes = [2, 32], strides = [1, 1]} : vector<2x128xf32> to vector<2x32xf32>
    %660 = arith.negf %659 : vector<2x32xf32>
    %661 = math.exp %660 : vector<2x32xf32>
    %cst_293 = arith.constant 1.000000e+00 : f32
    %662 = vector.broadcast %cst_293 : f32 to vector<2x32xf32>
    %663 = arith.addf %662, %661 : vector<2x32xf32>
    %664 = arith.divf %662, %663 : vector<2x32xf32>
    %665 = vector.extract_strided_slice %652 {offsets = [0, 64], sizes = [2, 32], strides = [1, 1]} : vector<2x128xf32> to vector<2x32xf32>
    %666 = math.tanh %665 : vector<2x32xf32>
    %667 = vector.extract_strided_slice %652 {offsets = [0, 96], sizes = [2, 32], strides = [1, 1]} : vector<2x128xf32> to vector<2x32xf32>
    %668 = arith.negf %667 : vector<2x32xf32>
    %669 = math.exp %668 : vector<2x32xf32>
    %cst_294 = arith.constant 1.000000e+00 : f32
    %670 = vector.broadcast %cst_294 : f32 to vector<2x32xf32>
    %671 = arith.addf %670, %669 : vector<2x32xf32>
    %672 = arith.divf %670, %671 : vector<2x32xf32>
    %673 = arith.mulf %664, %645 : vector<2x32xf32>
    %674 = arith.mulf %658, %666 : vector<2x32xf32>
    %675 = arith.addf %673, %674 : vector<2x32xf32>
    %676 = math.tanh %675 : vector<2x32xf32>
    %677 = arith.mulf %672, %676 : vector<2x32xf32>
    %c1_295 = arith.constant 1 : index
    %c0_296 = arith.constant 0 : index
    %c0_297 = arith.constant 0 : index
    %678 = vector.load %arg7[%c1_295, %c0_296, %c0_297] : memref<2x2x32xf32, #tpu.memory_space<vmem>>, vector<1x2x32xf32>
    %679 = vector.shape_cast %678 : vector<1x2x32xf32> to vector<2x32xf32>
    %680 = vector.shape_cast %677 : vector<2x32xf32> to vector<1x2x32xf32>
    tpu.vector_store %arg7[%c1_295, %c0_296, %c0_297], %680 {strides = array<i32>} : memref<2x2x32xf32, #tpu.memory_space<vmem>>, vector<1x2x32xf32>,
    %c1_298 = arith.constant 1 : index
    %c0_299 = arith.constant 0 : index
    %c0_300 = arith.constant 0 : index
    %681 = vector.load %arg8[%c1_298, %c0_299, %c0_300] : memref<2x2x32xf32, #tpu.memory_space<vmem>>, vector<1x2x32xf32>
    %682 = vector.shape_cast %681 : vector<1x2x32xf32> to vector<2x32xf32>
    %683 = vector.shape_cast %675 : vector<2x32xf32> to vector<1x2x32xf32>
    tpu.vector_store %arg8[%c1_298, %c0_299, %c0_300], %683 {strides = array<i32>} : memref<2x2x32xf32, #tpu.memory_space<vmem>>, vector<1x2x32xf32>,
    %684 = vector.shape_cast %677 : vector<2x32xf32> to vector<2x1x32xf32>
    %c0_301 = arith.constant 0 : index
    %c7_302 = arith.constant 7 : index
    %c0_303 = arith.constant 0 : index
    %685 = vector.load %arg6[%c0_301, %c7_302, %c0_303] : memref<2x8x32xf32, #tpu.memory_space<vmem>>, vector<2x1x32xf32>
    tpu.vector_store %arg6[%c0_301, %c7_302, %c0_303], %684 {strides = array<i32>} : memref<2x8x32xf32, #tpu.memory_space<vmem>>, vector<2x1x32xf32>,
    return
  }
  func.func @transform_0(%arg0: i32, %arg1: i32) -> (i32, i32, i32) {
    %c0_i32 = arith.constant 0 : i32
    %c0_i32_0 = arith.constant 0 : i32
    return %arg0, %arg1, %c0_i32 : i32, i32, i32
  }
  func.func @transform_1(%arg0: i32, %arg1: i32) -> (i32, i32) {
    %c0_i32 = arith.constant 0 : i32
    %c0_i32_0 = arith.constant 0 : i32
    %c0_i32_1 = arith.constant 0 : i32
    return %c0_i32, %c0_i32_0 : i32, i32
  }
  func.func @transform_2(%arg0: i32, %arg1: i32) -> (i32, i32, i32) {
    %c0_i32 = arith.constant 0 : i32
    %c0_i32_0 = arith.constant 0 : i32
    %c0_i32_1 = arith.constant 0 : i32
    %c0_i32_2 = arith.constant 0 : i32
    return %c0_i32, %c0_i32_0, %c0_i32_1 : i32, i32, i32
  }
  func.func @transform_3(%arg0: i32, %arg1: i32) -> (i32, i32, i32) {
    %c0_i32 = arith.constant 0 : i32
    %c0_i32_0 = arith.constant 0 : i32
    %c0_i32_1 = arith.constant 0 : i32
    %c0_i32_2 = arith.constant 0 : i32
    return %c0_i32, %c0_i32_0, %c0_i32_1 : i32, i32, i32
  }
  func.func @transform_4(%arg0: i32, %arg1: i32) -> (i32, i32, i32) {
    %c0_i32 = arith.constant 0 : i32
    %c0_i32_0 = arith.constant 0 : i32
    return %arg0, %arg1, %c0_i32 : i32, i32, i32
  }
}

</mosaic_0001>

<llo_original>
// kernel: lstmattn_forward.3
$region0: #{lstmattn_forward.3}
  #allocation0 [shape = 'u32[]', space=smem, size = 0x4, offset = 0x4, fixed_abs, tag = 'smem constant byte address 0x4 - core index']
  #allocation1 [shape = 'u32[72,128]{1,0:T(1,128)}', space=vmem, size = 0x9000, scoped, tag = 'internal scratch']
  %s0 = inlined_call_operand.vmem [shape: bf16[16,48], index: 0, kind: input, shape index: {}]
  %s1 = inlined_call_operand.vmem [shape: f32[16,2], index: 1, kind: input, shape index: {}]
  %s2 = inlined_call_operand.vmem [shape: f32[1,2], index: 2, kind: input, shape index: {}]
  %s3 = inlined_call_operand.vmem [shape: f32[1,2], index: 3, kind: input, shape index: {}]
  %s4 = inlined_call_operand.vmem [shape: bf16[48,32], index: 4, kind: input, shape index: {}]
  %s5 = inlined_call_operand.vmem [shape: f32[1,32], index: 5, kind: input, shape index: {}]
  %s6 = inlined_call_operand.vmem [shape: f32[1,32], index: 6, kind: input, shape index: {}]
  %s7 = inlined_call_operand.vmem [shape: f32[1,32], index: 7, kind: input, shape index: {}]
  %s8 = inlined_call_operand.vmem [shape: bf16[2,32], index: 8, kind: input, shape index: {}]
  %s9 = inlined_call_operand.vmem [shape: f32[1,32], index: 9, kind: input, shape index: {}]
  %s10 = inlined_call_operand.vmem [shape: f32[1,32], index: 10, kind: input, shape index: {}]
  %s11 = inlined_call_operand.vmem [shape: f32[1,32], index: 11, kind: input, shape index: {}]
  %s12 = inlined_call_operand.vmem [shape: bf16[32,32], index: 12, kind: input, shape index: {}]
  %s13 = inlined_call_operand.vmem [shape: bf16[32,32], index: 13, kind: input, shape index: {}]
  %s14 = inlined_call_operand.vmem [shape: f32[1,32], index: 14, kind: input, shape index: {}]
  %s15 = inlined_call_operand.vmem [shape: f32[1,32], index: 15, kind: input, shape index: {}]
  %s16 = inlined_call_operand.vmem [shape: f32[1,32], index: 16, kind: input, shape index: {}]
  %s17 = inlined_call_operand.vmem [shape: bf16[32,128], index: 17, kind: input, shape index: {}]
  %s18 = inlined_call_operand.vmem [shape: f32[1,128], index: 18, kind: input, shape index: {}]
  %s19 = inlined_call_operand.vmem [shape: bf16[16,128], index: 19, kind: output, shape index: {}]
  %s20 = sld [smem:[#allocation0]]
  $region86: #{lstmattn_forward.3} parent=0
    _
  %s22 = ssub.s32 1, %s20
  %s23 = scalar_select 0, %s22, %s20
  // Predicated region
  $region2: #{lstmattn_forward.3} parent=0 // pred_check
    _
  $region3: #{lstmattn_forward.3} parent=0 // pred_check_branch
    %25 = sbr.rel (0) target = $region5
  $region4: #{lstmattn_forward.3} parent=0 // pred_region
    _
  $region5: #{lstmattn_forward.3} parent=0 // pred_fallthru
    _
  // Predicated region
  $region6: #{lstmattn_forward.3} parent=0 // pred_check
    _
  $region7: #{lstmattn_forward.3} parent=0 // pred_check_branch
    %27 = sbr.rel (0) target = $region9
  $region8: #{lstmattn_forward.3} parent=0 // pred_region
    _
  $region9: #{lstmattn_forward.3} parent=0 // pred_fallthru
    _
  // Predicated region
  $region10: #{lstmattn_forward.3} parent=0 // pred_check
    _
  $region11: #{lstmattn_forward.3} parent=0 // pred_check_branch
    %29 = sbr.rel (0) target = $region13
  $region12: #{lstmattn_forward.3} parent=0 // pred_region
    _
  $region13: #{lstmattn_forward.3} parent=0 // pred_fallthru
    _
  // Predicated region
  $region14: #{lstmattn_forward.3} parent=0 // pred_check
    _
  $region15: #{lstmattn_forward.3} parent=0 // pred_check_branch
    %31 = sbr.rel (0) target = $region17
  $region16: #{lstmattn_forward.3} parent=0 // pred_region
    _
  $region17: #{lstmattn_forward.3} parent=0 // pred_fallthru
    _
  // Predicated region
  $region18: #{lstmattn_forward.3} parent=0 // pred_check
    _
  $region19: #{lstmattn_forward.3} parent=0 // pred_check_branch
    %33 = sbr.rel (0) target = $region21
  $region20: #{lstmattn_forward.3} parent=0 // pred_region
    _
  $region21: #{lstmattn_forward.3} parent=0 // pred_fallthru
    _
  // Predicated region
  $region22: #{lstmattn_forward.3} parent=0 // pred_check
    _
  $region23: #{lstmattn_forward.3} parent=0 // pred_check_branch
    %35 = sbr.rel (0) target = $region25
  $region24: #{lstmattn_forward.3} parent=0 // pred_region
    _
  $region25: #{lstmattn_forward.3} parent=0 // pred_fallthru
    _
  // Predicated region
  $region26: #{lstmattn_forward.3} parent=0 // pred_check
    _
  $region27: #{lstmattn_forward.3} parent=0 // pred_check_branch
    %37 = sbr.rel (0) target = $region29
  $region28: #{lstmattn_forward.3} parent=0 // pred_region
    _
  $region29: #{lstmattn_forward.3} parent=0 // pred_fallthru
    _
  // Predicated region
  $region30: #{lstmattn_forward.3} parent=0 // pred_check
    _
  $region31: #{lstmattn_forward.3} parent=0 // pred_check_branch
    %39 = sbr.rel (0) target = $region33
  $region32: #{lstmattn_forward.3} parent=0 // pred_region
    _
  $region33: #{lstmattn_forward.3} parent=0 // pred_fallthru
    _
  // Predicated region
  $region34: #{lstmattn_forward.3} parent=0 // pred_check
    _
  $region35: #{lstmattn_forward.3} parent=0 // pred_check_branch
    %41 = sbr.rel (0) target = $region37
  $region36: #{lstmattn_forward.3} parent=0 // pred_region
    _
  $region37: #{lstmattn_forward.3} parent=0 // pred_fallthru
    _
  // Predicated region
  $region38: #{lstmattn_forward.3} parent=0 // pred_check
    _
  $region39: #{lstmattn_forward.3} parent=0 // pred_check_branch
    %43 = sbr.rel (0) target = $region41
  $region40: #{lstmattn_forward.3} parent=0 // pred_region
    _
  $region41: #{lstmattn_forward.3} parent=0 // pred_fallthru
    _
  // Predicated region
  $region42: #{lstmattn_forward.3} parent=0 // pred_check
    _
  $region43: #{lstmattn_forward.3} parent=0 // pred_check_branch
    %45 = sbr.rel (0) target = $region45
  $region44: #{lstmattn_forward.3} parent=0 // pred_region
    _
  $region45: #{lstmattn_forward.3} parent=0 // pred_fallthru
    _
  // Predicated region
  $region46: #{lstmattn_forward.3} parent=0 // pred_check
    _
  $region47: #{lstmattn_forward.3} parent=0 // pred_check_branch
    %47 = sbr.rel (0) target = $region49
  $region48: #{lstmattn_forward.3} parent=0 // pred_region
    _
  $region49: #{lstmattn_forward.3} parent=0 // pred_fallthru
    _
  // Predicated region
  $region50: #{lstmattn_forward.3} parent=0 // pred_check
    _
  $region51: #{lstmattn_forward.3} parent=0 // pred_check_branch
    %49 = sbr.rel (0) target = $region53
  $region52: #{lstmattn_forward.3} parent=0 // pred_region
    _
  $region53: #{lstmattn_forward.3} parent=0 // pred_fallthru
    _
  // Predicated region
  $region54: #{lstmattn_forward.3} parent=0 // pred_check
    _
  $region55: #{lstmattn_forward.3} parent=0 // pred_check_branch
    %51 = sbr.rel (0) target = $region57
  $region56: #{lstmattn_forward.3} parent=0 // pred_region
    _
  $region57: #{lstmattn_forward.3} parent=0 // pred_fallthru
    _
  // Predicated region
  $region58: #{lstmattn_forward.3} parent=0 // pred_check
    _
  $region59: #{lstmattn_forward.3} parent=0 // pred_check_branch
    %53 = sbr.rel (0) target = $region61
  $region60: #{lstmattn_forward.3} parent=0 // pred_region
    _
  $region61: #{lstmattn_forward.3} parent=0 // pred_fallthru
    _
  // Predicated region
  $region62: #{lstmattn_forward.3} parent=0 // pred_check
    _
  $region63: #{lstmattn_forward.3} parent=0 // pred_check_branch
    %55 = sbr.rel (0) target = $region65
  $region64: #{lstmattn_forward.3} parent=0 // pred_region
    _
  $region65: #{lstmattn_forward.3} parent=0 // pred_fallthru
    _
  // Predicated region
  $region66: #{lstmattn_forward.3} parent=0 // pred_check
    _
  $region67: #{lstmattn_forward.3} parent=0 // pred_check_branch
    %57 = sbr.rel (0) target = $region69
  $region68: #{lstmattn_forward.3} parent=0 // pred_region
    _
  $region69: #{lstmattn_forward.3} parent=0 // pred_fallthru
    _
  // Predicated region
  $region70: #{lstmattn_forward.3} parent=0 // pred_check
    _
  $region71: #{lstmattn_forward.3} parent=0 // pred_check_branch
    %59 = sbr.rel (0) target = $region73
  $region72: #{lstmattn_forward.3} parent=0 // pred_region
    _
  $region73: #{lstmattn_forward.3} parent=0 // pred_fallthru
    _
  // Predicated region
  $region74: #{lstmattn_forward.3} parent=0 // pred_check
    _
  $region75: #{lstmattn_forward.3} parent=0 // pred_check_branch
    %61 = sbr.rel (0) target = $region77
  $region76: #{lstmattn_forward.3} parent=0 // pred_region
    _
  $region77: #{lstmattn_forward.3} parent=0 // pred_fallthru
    _
  %v63 = vld [vmem:[%s0] sm:$0xf]
  %v64 = vld [vmem:[%s0 + $0x4] sm:$0xf]
  %v65 = vld [vmem:[%s4] sm:$0xf]
  %v66 = vld [vmem:[%s4 + $0x4] sm:$0xf]
  %v67 = vld [vmem:[%s4 + $0x8] sm:$0xf]
  %v68 = vld [vmem:[%s4 + $0xc] sm:$0xf]
  %v69 = vld [vmem:[%s4 + $0x10] sm:$0xf]
  %v70 = vld [vmem:[%s4 + $0x14] sm:$0xf]
  %v71 = vld [vmem:[%s5] sm:$0x1]
  %v73 = vperm.slane %v71, 0
  %v77 = vunpack.c.l.b16 %v63
  %v78 = vunpack.c.l.b16 %v64
  %v79 = vpack.c.b16 %v78, %v77
  %v86 = vunpack.c.l.b16 %v65
  %v87 = vunpack.c.l.b16 %v66
  %v88 = vunpack.c.l.b16 %v67
  %v89 = vunpack.c.l.b16 %v68
  %v90 = vunpack.c.l.b16 %v69
  %v91 = vunpack.c.l.b16 %v70
  %v92 = vpack.c.b16 %v87, %v86
  %v93 = vpack.c.b16 %v89, %v88
  %v94 = vpack.c.b16 %v91, %v90
  %vm98 = vcmask 392192
  %v100 = vsel %vm98, %v79, 0
  %102 = vmatpush.bf16.msra.mxu0 0
  %103 = vmatpush.bf16.msra.mxu0 0
  %104 = vmatpush.bf16.msra.mxu0 0
  %105 = vmatpush.bf16.msra.mxu0 0
  %106 = vmatpush.bf16.msra.mxu0 0
  %107 = vmatpush.bf16.msra.mxu0 %v94
  %108 = vmatpush.bf16.msra.mxu0 %v93
  %109 = vmatpush.bf16.msra.mxu0 %v92
  %110 = vmatmul.bf16.gmra.mxu0 %v100
  %v111 = vpop.f32.mrf.mxu0
  %v112 = vadd.f32 %v73, %v111
  %v113 = vpop.f32.mrf.mxu0
  %v114 = vadd.f32 %v73, %v113
  %115 = vdwg.mxu0
  %v116 = vld [vmem:[%s6] sm:$0x1]
  %v117 = vld [vmem:[%s7] sm:$0x1]
  %vm118 = vcmask 261120
  %v119 = vsel %vm118, %v112, 0.0
  %120 = vadd.xlane.f32.xlu0 %v119
  %v121 = vpop.xlane.xlu0 %120
  %v122 = vsel %vm118, %v114, 0.0
  %123 = vadd.xlane.f32.xlu0 %v122
  %v124 = vpop.xlane.xlu0 %123
  %v125 = vrcp.pop 32.0
  %v126 = vmul.f32 32.0, %v125
  %v127 = vsub.f32 1.0, %v126
  %v128 = vmul.f32 %v125, %v127
  %v129 = vadd.f32 %v125, %v128
  %vm130 = vweird.f32 %v125
  %v131 = vsel %vm130, %v125, %v129
  %v132 = vmul.f32 %v121, %v131
  %v133 = vmul.f32 %v124, %v131
  %v134 = vsub.f32 %v112, %v132
  %v135 = vsub.f32 %v114, %v133
  %v136 = vmul.f32 %v134, %v134
  %v137 = vmul.f32 %v135, %v135
  %v138 = vsel %vm118, %v136, 0.0
  %139 = vadd.xlane.f32.xlu0 %v138
  %v140 = vpop.xlane.xlu0 %139
  %v141 = vsel %vm118, %v137, 0.0
  %142 = vadd.xlane.f32.xlu0 %v141
  %v143 = vpop.xlane.xlu0 %142
  %v144 = vmul.f32 %v140, %v131
  %v145 = vmul.f32 %v143, %v131
  %v146 = vadd.f32 %v144, 1e-05
  %v147 = vadd.f32 %v145, 1e-05
  %v148 = vrsqrt.pop %v146
  %v149 = vmul.f32 %v148, %v146
  %v150 = vmul.f32 %v149, %v148
  %v151 = vmul.f32 0.5, %v150
  %v152 = vsub.f32 1.5, %v151
  %v153 = vmul.f32 %v148, %v152
  %vm154 = vweird.f32 %v146
  %vm155 = vweird.f32 %v148
  %vm156 = vmor %vm154, %vm155
  %v157 = vsel %vm156, %v148, %v153
  %v158 = vrsqrt.pop %v147
  %v159 = vmul.f32 %v158, %v147
  %v160 = vmul.f32 %v159, %v158
  %v161 = vmul.f32 0.5, %v160
  %v162 = vsub.f32 1.5, %v161
  %v163 = vmul.f32 %v158, %v162
  %vm164 = vweird.f32 %v147
  %vm165 = vweird.f32 %v158
  %vm166 = vmor %vm164, %vm165
  %v167 = vsel %vm166, %v158, %v163
  %v168 = vmul.f32 %v134, %v157
  %v169 = vmul.f32 %v135, %v167
  %v171 = vperm.slane %v116, 0
  %v173 = vmul.f32 %v168, %v171
  %v174 = vmul.f32 %v169, %v171
  %v176 = vperm.slane %v117, 0
  %v178 = vadd.f32 %v173, %v176
  %v179 = vadd.f32 %v174, %v176
  %v180 = vld [vmem:[%s1] sm:$0xff]
  %v181 = vld [vmem:[%s1 + $0x8] sm:$0xff]
  %v182 = vld [vmem:[%s2] sm:$0x1]
  %v184 = vperm.slane %v182, 0
  %v186 = vmul.f32 %v180, %v184
  %v187 = vmul.f32 %v181, %v184
  %v188 = vld [vmem:[%s3] sm:$0x1]
  %v190 = vperm.slane %v188, 0
  %v192 = vadd.f32 %v186, %v190
  %v193 = vadd.f32 %v187, %v190
  %v194 = vpack.c.bf16 %v193, %v192
  %v195 = vld [vmem:[%s8] sm:$0x1]
  %v196 = vld [vmem:[%s9] sm:$0x1]
  %v198 = vperm.slane %v196, 0
  %vm200 = vcmask 15360
  %v202 = vsel %vm200, %v194, 0
  %vm204 = vcmask 1040384
  %v206 = vsel %vm204, %v195, 0
  %208 = vmatpush.bf16.msra.mxu0 0
  %209 = vmatpush.bf16.msra.mxu0 0
  %210 = vmatpush.bf16.msra.mxu0 0
  %211 = vmatpush.bf16.msra.mxu0 0
  %212 = vmatpush.bf16.msra.mxu0 0
  %213 = vmatpush.bf16.msra.mxu0 0
  %214 = vmatpush.bf16.msra.mxu0 0
  %215 = vmatpush.bf16.msra.mxu0 %v206
  %216 = vmatmul.bf16.gmra.mxu0 %v202
  %v217 = vpop.f32.mrf.mxu0
  %v218 = vadd.f32 %v198, %v217
  %v219 = vpop.f32.mrf.mxu0
  %v220 = vadd.f32 %v198, %v219
  %221 = vdwg.mxu0
  %v222 = vld [vmem:[%s10] sm:$0x1]
  %v223 = vld [vmem:[%s11] sm:$0x1]
  %v224 = vsel %vm118, %v218, 0.0
  %225 = vadd.xlane.f32.xlu0 %v224
  %v226 = vpop.xlane.xlu0 %225
  %v227 = vsel %vm118, %v220, 0.0
  %228 = vadd.xlane.f32.xlu0 %v227
  %v229 = vpop.xlane.xlu0 %228
  %v230 = vmul.f32 %v226, %v131
  %v231 = vmul.f32 %v229, %v131
  %v232 = vsub.f32 %v218, %v230
  %v233 = vsub.f32 %v220, %v231
  %v234 = vmul.f32 %v232, %v232
  %v235 = vmul.f32 %v233, %v233
  %v236 = vsel %vm118, %v234, 0.0
  %237 = vadd.xlane.f32.xlu0 %v236
  %v238 = vpop.xlane.xlu0 %237
  %v239 = vsel %vm118, %v235, 0.0
  %240 = vadd.xlane.f32.xlu0 %v239
  %v241 = vpop.xlane.xlu0 %240
  %v242 = vmul.f32 %v238, %v131
  %v243 = vmul.f32 %v241, %v131
  %v244 = vadd.f32 %v242, 1e-05
  %v245 = vadd.f32 %v243, 1e-05
  %v246 = vrsqrt.pop %v244
  %v247 = vmul.f32 %v246, %v244
  %v248 = vmul.f32 %v247, %v246
  %v249 = vmul.f32 0.5, %v248
  %v250 = vsub.f32 1.5, %v249
  %v251 = vmul.f32 %v246, %v250
  %vm252 = vweird.f32 %v244
  %vm253 = vweird.f32 %v246
  %vm254 = vmor %vm252, %vm253
  %v255 = vsel %vm254, %v246, %v251
  %v256 = vrsqrt.pop %v245
  %v257 = vmul.f32 %v256, %v245
  %v258 = vmul.f32 %v257, %v256
  %v259 = vmul.f32 0.5, %v258
  %v260 = vsub.f32 1.5, %v259
  %v261 = vmul.f32 %v256, %v260
  %vm262 = vweird.f32 %v245
  %vm263 = vweird.f32 %v256
  %vm264 = vmor %vm262, %vm263
  %v265 = vsel %vm264, %v256, %v261
  %v266 = vmul.f32 %v232, %v255
  %v267 = vmul.f32 %v233, %v265
  %v269 = vperm.slane %v222, 0
  %v271 = vmul.f32 %v266, %v269
  %v272 = vmul.f32 %v267, %v269
  %v274 = vperm.slane %v223, 0
  %v276 = vadd.f32 %v271, %v274
  %v277 = vadd.f32 %v272, %v274
  %v278 = vmax.f32 %v178, 0.0
  %v279 = vmax.f32 %v179, 0.0
  %v280 = vpack.c.bf16 %v279, %v278
  %v281 = vld [vmem:[%s12] sm:$0xf]
  %v282 = vld [vmem:[%s12 + $0x4] sm:$0xf]
  %v283 = vld [vmem:[%s12 + $0x8] sm:$0xf]
  %v284 = vld [vmem:[%s12 + $0xc] sm:$0xf]
  %v285 = vmax.f32 %v276, 0.0
  %v286 = vmax.f32 %v277, 0.0
  %v287 = vpack.c.bf16 %v286, %v285
  %v288 = vld [vmem:[%s13] sm:$0xf]
  %v289 = vld [vmem:[%s13 + $0x4] sm:$0xf]
  %v290 = vld [vmem:[%s13 + $0x8] sm:$0xf]
  %v291 = vld [vmem:[%s13 + $0xc] sm:$0xf]
  %v296 = vunpack.c.l.b16 %v288
  %v297 = vunpack.c.l.b16 %v289
  %v298 = vunpack.c.l.b16 %v290
  %v299 = vunpack.c.l.b16 %v291
  %v300 = vpack.c.b16 %v297, %v296
  %v301 = vpack.c.b16 %v299, %v298
  %v305 = vsel %vm118, %v287, 0
  %307 = vmatpush.bf16.msra.mxu0 0
  %308 = vmatpush.bf16.msra.mxu0 0
  %309 = vmatpush.bf16.msra.mxu0 0
  %310 = vmatpush.bf16.msra.mxu0 0
  %311 = vmatpush.bf16.msra.mxu0 0
  %312 = vmatpush.bf16.msra.mxu0 0
  %313 = vmatpush.bf16.msra.mxu0 %v301
  %314 = vmatpush.bf16.msra.mxu0 %v300
  %315 = vmatmul.bf16.gmra.mxu0 %v305
  %v316 = vpop.f32.mrf.mxu0
  %v317 = vadd.f32 0.0, %v316
  %v318 = vpop.f32.mrf.mxu0
  %v319 = vadd.f32 0.0, %v318
  %320 = vdwg.mxu0
  %v325 = vunpack.c.l.b16 %v281
  %v326 = vunpack.c.l.b16 %v282
  %v327 = vunpack.c.l.b16 %v283
  %v328 = vunpack.c.l.b16 %v284
  %v329 = vpack.c.b16 %v326, %v325
  %v330 = vpack.c.b16 %v328, %v327
  %v334 = vsel %vm118, %v280, 0
  %336 = vmatpush.bf16.msra.mxu0 0
  %337 = vmatpush.bf16.msra.mxu0 0
  %338 = vmatpush.bf16.msra.mxu0 0
  %339 = vmatpush.bf16.msra.mxu0 0
  %340 = vmatpush.bf16.msra.mxu0 0
  %341 = vmatpush.bf16.msra.mxu0 0
  %342 = vmatpush.bf16.msra.mxu0 %v330
  %343 = vmatpush.bf16.msra.mxu0 %v329
  %344 = vmatmul.bf16.gmra.mxu0 %v334
  %v345 = vpop.f32.mrf.mxu0
  %v346 = vadd.f32 %v317, %v345
  %v347 = vpop.f32.mrf.mxu0
  %v348 = vadd.f32 %v319, %v347
  %349 = vdwg.mxu0
  %v350 = vld [vmem:[%s14] sm:$0x1]
  %v352 = vperm.slane %v350, 0
  %v354 = vadd.f32 %v346, %v352
  %v355 = vadd.f32 %v348, %v352
  %v356 = vld [vmem:[%s15] sm:$0x1]
  %v357 = vld [vmem:[%s16] sm:$0x1]
  %v358 = vsel %vm118, %v354, 0.0
  %359 = vadd.xlane.f32.xlu0 %v358
  %v360 = vpop.xlane.xlu0 %359
  %v361 = vsel %vm118, %v355, 0.0
  %362 = vadd.xlane.f32.xlu0 %v361
  %v363 = vpop.xlane.xlu0 %362
  %v364 = vmul.f32 %v360, %v131
  %v365 = vmul.f32 %v363, %v131
  %v366 = vsub.f32 %v354, %v364
  %v367 = vsub.f32 %v355, %v365
  %v368 = vmul.f32 %v366, %v366
  %v369 = vmul.f32 %v367, %v367
  %v370 = vsel %vm118, %v368, 0.0
  %371 = vadd.xlane.f32.xlu0 %v370
  %v372 = vpop.xlane.xlu0 %371
  %v373 = vsel %vm118, %v369, 0.0
  %374 = vadd.xlane.f32.xlu0 %v373
  %v375 = vpop.xlane.xlu0 %374
  %v376 = vmul.f32 %v372, %v131
  %v377 = vmul.f32 %v375, %v131
  %v378 = vadd.f32 %v376, 1e-05
  %v379 = vadd.f32 %v377, 1e-05
  %v380 = vrsqrt.pop %v378
  %v381 = vmul.f32 %v380, %v378
  %v382 = vmul.f32 %v381, %v380
  %v383 = vmul.f32 0.5, %v382
  %v384 = vsub.f32 1.5, %v383
  %v385 = vmul.f32 %v380, %v384
  %vm386 = vweird.f32 %v378
  %vm387 = vweird.f32 %v380
  %vm388 = vmor %vm386, %vm387
  %v389 = vsel %vm388, %v380, %v385
  %v390 = vrsqrt.pop %v379
  %v391 = vmul.f32 %v390, %v379
  %v392 = vmul.f32 %v391, %v390
  %v393 = vmul.f32 0.5, %v392
  %v394 = vsub.f32 1.5, %v393
  %v395 = vmul.f32 %v390, %v394
  %vm396 = vweird.f32 %v379
  %vm397 = vweird.f32 %v390
  %vm398 = vmor %vm396, %vm397
  %v399 = vsel %vm398, %v390, %v395
  %v400 = vmul.f32 %v366, %v389
  %v401 = vmul.f32 %v367, %v399
  %v403 = vperm.slane %v356, 0
  %v405 = vmul.f32 %v400, %v403
  %v406 = vmul.f32 %v401, %v403
  %v408 = vperm.slane %v357, 0
  %v410 = vadd.f32 %v405, %v408
  %v411 = vadd.f32 %v406, %v408
  %v412 = vpack.c.bf16 %v411, %v410
  %v413 = vld [vmem:[%s17] sm:$0xf]
  %v414 = vld [vmem:[%s17 + $0x4] sm:$0xf]
  %v415 = vld [vmem:[%s17 + $0x8] sm:$0xf]
  %v416 = vld [vmem:[%s17 + $0xc] sm:$0xf]
  %v417 = vld [vmem:[%s18] sm:$0x1]
  %v419 = vperm.slane %v417, 0
  %v425 = vunpack.c.l.b16 %v413
  %v426 = vunpack.c.l.b16 %v414
  %v427 = vunpack.c.l.b16 %v415
  %v428 = vunpack.c.l.b16 %v416
  %v429 = vpack.c.b16 %v426, %v425
  %v430 = vpack.c.b16 %v428, %v427
  %v434 = vsel %vm118, %v412, 0
  %436 = vmatpush.bf16.msra.mxu0 0
  %437 = vmatpush.bf16.msra.mxu0 0
  %438 = vmatpush.bf16.msra.mxu0 0
  %439 = vmatpush.bf16.msra.mxu0 0
  %440 = vmatpush.bf16.msra.mxu0 0
  %441 = vmatpush.bf16.msra.mxu0 0
  %442 = vmatpush.bf16.msra.mxu0 %v430
  %443 = vmatpush.bf16.msra.mxu0 %v429
  %444 = vmatmul.bf16.gmra.mxu0 %v434
  %v445 = vpop.f32.mrf.mxu0
  %v446 = vadd.f32 %v419, %v445
  %v447 = vpop.f32.mrf.mxu0
  %v448 = vadd.f32 %v419, %v447
  %449 = vdwg.mxu0
  %v450 = vpack.c.bf16 %v446, %v446
  %v451 = vpack.c.bf16 %v448, %v448
  %452 = vst [vmem:[%s19] sm:$0xf] %v450
  %453 = vst [vmem:[%s19 + $0x4] sm:$0xf] %v451
  // Predicated region
  $region78: #{lstmattn_forward.3} parent=0 // pred_check
    _
  $region79: #{lstmattn_forward.3} parent=0 // pred_check_branch
    %455 = sbr.rel (0) target = $region81
  $region80: #{lstmattn_forward.3} parent=0 // pred_region
    _
  $region81: #{lstmattn_forward.3} parent=0 // pred_fallthru
    _
  // Predicated region
  $region82: #{lstmattn_forward.3} parent=0 // pred_check
    _
  $region83: #{lstmattn_forward.3} parent=0 // pred_check_branch
    %457 = sbr.rel (0) target = $region85
  $region84: #{lstmattn_forward.3} parent=0 // pred_region
    _
  $region85: #{lstmattn_forward.3} parent=0 // pred_fallthru
    _

// kernel: lstmattn_forward.5
$region0: #{lstmattn_forward.5}
  #allocation0 [shape = 'u32[]', space=smem, size = 0x4, offset = 0x4, fixed_abs, tag = 'smem constant byte address 0x4 - core index']
  #allocation1 [shape = 'u32[72,128]{1,0:T(1,128)}', space=vmem, size = 0x9000, scoped, tag = 'internal scratch']
  #allocation2 [shape = 'f32[2,8,32]{2,1,0:T(8,128)}', space=vmem, size = 0x2000, scoped, tag = 'scratch operand']
  #allocation3 [shape = 'f32[1,1]{1,0:T(1,128)S(1)}', space=vmem, size = 0x200, scoped, tag = 'scoped memory for lstmattn_forward.5']
  %s0 = inlined_call_operand.vmem [shape: f32[2,8,32], index: 0, kind: input, shape index: {}]
  %s1 = inlined_call_operand.vmem [shape: f32[2,1,8], index: 1, kind: input, shape index: {}]
  %s2 = inlined_call_operand.vmem [shape: bf16[32,96], index: 2, kind: input, shape index: {}]
  %s3 = inlined_call_operand.vmem [shape: f32[1,96], index: 3, kind: input, shape index: {}]
  %s4 = inlined_call_operand.vmem [shape: bf16[32,32], index: 4, kind: input, shape index: {}]
  %s5 = inlined_call_operand.vmem [shape: f32[1,32], index: 5, kind: input, shape index: {}]
  %s6 = inlined_call_operand.vmem [shape: f32[1,32], index: 6, kind: input, shape index: {}]
  %s7 = inlined_call_operand.vmem [shape: f32[1,32], index: 7, kind: input, shape index: {}]
  %s8 = inlined_call_operand.vmem [shape: bf16[32,32], index: 8, kind: input, shape index: {}]
  %s9 = inlined_call_operand.vmem [shape: f32[1,32], index: 9, kind: input, shape index: {}]
  %s10 = inlined_call_operand.vmem [shape: bf16[32,32], index: 10, kind: input, shape index: {}]
  %s11 = inlined_call_operand.vmem [shape: f32[1,32], index: 11, kind: input, shape index: {}]
  %s12 = inlined_call_operand.vmem [shape: f32[1,32], index: 12, kind: input, shape index: {}]
  %s13 = inlined_call_operand.vmem [shape: f32[1,32], index: 13, kind: input, shape index: {}]
  %s14 = inlined_call_operand.vmem [shape: f32[1,32], index: 14, kind: input, shape index: {}]
  %s15 = inlined_call_operand.<no memory space> [shape: f32[1,1], index: 15, kind: input, shape index: {}]
  %s16 = inlined_call_operand.hbm [shape: f32[2,1,8], index: 16, kind: output, shape index: {}]
  %s17 = sld [smem:[#allocation0]]
  $region74: #{lstmattn_forward.5} parent=0
    _
  %s19 = ssub.s32 1, %s17
  %s20 = scalar_select 0, %s19, %s17
  %v21 = vstv %s15
  %22 = vst [vmem:[#allocation3] sm:$0x1] %v21
  $region1: #{lstmattn_forward.5} parent=0
    #allocation4 [shape = 'u8[1024]{0}', space=vmem, size = 0x400, scoped, tag = 'output window, operand 0, single buffered']
    #allocation5 [shape = 's32[1]{0}', space=sflag, size = 0x4, scoped, tag = 'scoped memory for lstmattn_forward.5']
    %23 = vsyncpa [#allocation5], 0
    // Predicated region
    $region2: #{lstmattn_forward.5} parent=1 // pred_check
      _
    $region3: #{lstmattn_forward.5} parent=1 // pred_check_branch
      %25 = sbr.rel (0) target = $region5
    $region4: #{lstmattn_forward.5} parent=1 // pred_region
      _
    $region5: #{lstmattn_forward.5} parent=1 // pred_fallthru
      _
    // Predicated region
    $region6: #{lstmattn_forward.5} parent=1 // pred_check
      _
    $region7: #{lstmattn_forward.5} parent=1 // pred_check_branch
      %27 = sbr.rel (0) target = $region9
    $region8: #{lstmattn_forward.5} parent=1 // pred_region
      _
    $region9: #{lstmattn_forward.5} parent=1 // pred_fallthru
      _
    // Predicated region
    $region10: #{lstmattn_forward.5} parent=1 // pred_check
      _
    $region11: #{lstmattn_forward.5} parent=1 // pred_check_branch
      %29 = sbr.rel (0) target = $region13
    $region12: #{lstmattn_forward.5} parent=1 // pred_region
      _
    $region13: #{lstmattn_forward.5} parent=1 // pred_fallthru
      _
    // Predicated region
    $region14: #{lstmattn_forward.5} parent=1 // pred_check
      _
    $region15: #{lstmattn_forward.5} parent=1 // pred_check_branch
      %31 = sbr.rel (0) target = $region17
    $region16: #{lstmattn_forward.5} parent=1 // pred_region
      _
    $region17: #{lstmattn_forward.5} parent=1 // pred_fallthru
      _
    // Predicated region
    $region18: #{lstmattn_forward.5} parent=1 // pred_check
      _
    $region19: #{lstmattn_forward.5} parent=1 // pred_check_branch
      %33 = sbr.rel (0) target = $region21
    $region20: #{lstmattn_forward.5} parent=1 // pred_region
      _
    $region21: #{lstmattn_forward.5} parent=1 // pred_fallthru
      _
    // Predicated region
    $region22: #{lstmattn_forward.5} parent=1 // pred_check
      _
    $region23: #{lstmattn_forward.5} parent=1 // pred_check_branch
      %35 = sbr.rel (0) target = $region25
    $region24: #{lstmattn_forward.5} parent=1 // pred_region
      _
    $region25: #{lstmattn_forward.5} parent=1 // pred_fallthru
      _
    // Predicated region
    $region26: #{lstmattn_forward.5} parent=1 // pred_check
      _
    $region27: #{lstmattn_forward.5} parent=1 // pred_check_branch
      %37 = sbr.rel (0) target = $region29
    $region28: #{lstmattn_forward.5} parent=1 // pred_region
      _
    $region29: #{lstmattn_forward.5} parent=1 // pred_fallthru
      _
    // Predicated region
    $region30: #{lstmattn_forward.5} parent=1 // pred_check
      _
    $region31: #{lstmattn_forward.5} parent=1 // pred_check_branch
      %39 = sbr.rel (0) target = $region33
    $region32: #{lstmattn_forward.5} parent=1 // pred_region
      _
    $region33: #{lstmattn_forward.5} parent=1 // pred_fallthru
      _
    // Predicated region
    $region34: #{lstmattn_forward.5} parent=1 // pred_check
      _
    $region35: #{lstmattn_forward.5} parent=1 // pred_check_branch
      %41 = sbr.rel (0) target = $region37
    $region36: #{lstmattn_forward.5} parent=1 // pred_region
      _
    $region37: #{lstmattn_forward.5} parent=1 // pred_fallthru
      _
    // Predicated region
    $region38: #{lstmattn_forward.5} parent=1 // pred_check
      _
    $region39: #{lstmattn_forward.5} parent=1 // pred_check_branch
      %43 = sbr.rel (0) target = $region41
    $region40: #{lstmattn_forward.5} parent=1 // pred_region
      _
    $region41: #{lstmattn_forward.5} parent=1 // pred_fallthru
      _
    // Predicated region
    $region42: #{lstmattn_forward.5} parent=1 // pred_check
      _
    $region43: #{lstmattn_forward.5} parent=1 // pred_check_branch
      %45 = sbr.rel (0) target = $region45
    $region44: #{lstmattn_forward.5} parent=1 // pred_region
      _
    $region45: #{lstmattn_forward.5} parent=1 // pred_fallthru
      _
    // Predicated region
    $region46: #{lstmattn_forward.5} parent=1 // pred_check
      _
    $region47: #{lstmattn_forward.5} parent=1 // pred_check_branch
      %47 = sbr.rel (0) target = $region49
    $region48: #{lstmattn_forward.5} parent=1 // pred_region
      _
    $region49: #{lstmattn_forward.5} parent=1 // pred_fallthru
      _
    // Predicated region
    $region50: #{lstmattn_forward.5} parent=1 // pred_check
      _
    $region51: #{lstmattn_forward.5} parent=1 // pred_check_branch
      %49 = sbr.rel (0) target = $region53
    $region52: #{lstmattn_forward.5} parent=1 // pred_region
      _
    $region53: #{lstmattn_forward.5} parent=1 // pred_fallthru
      _
    // Predicated region
    $region54: #{lstmattn_forward.5} parent=1 // pred_check
      _
    $region55: #{lstmattn_forward.5} parent=1 // pred_check_branch
      %51 = sbr.rel (0) target = $region57
    $region56: #{lstmattn_forward.5} parent=1 // pred_region
      _
    $region57: #{lstmattn_forward.5} parent=1 // pred_fallthru
      _
    // Predicated region
    $region58: #{lstmattn_forward.5} parent=1 // pred_check
      _
    $region59: #{lstmattn_forward.5} parent=1 // pred_check_branch
      %53 = sbr.rel (0) target = $region61
    $region60: #{lstmattn_forward.5} parent=1 // pred_region
      _
    $region61: #{lstmattn_forward.5} parent=1 // pred_fallthru
      _
    // Predicated region
    $region62: #{lstmattn_forward.5} parent=1 // pred_check
      _
    $region63: #{lstmattn_forward.5} parent=1 // pred_check_branch
      %55 = sbr.rel (0) target = $region65
    $region64: #{lstmattn_forward.5} parent=1 // pred_region
      _
    $region65: #{lstmattn_forward.5} parent=1 // pred_fallthru
      _
    %v57 = vld [vmem:[%s0] sm:$0xff]
    %v58 = vld [vmem:[%s0 + $0x8] sm:$0xff]
    %v59 = vld [vmem:[%s1] sm:$0x1]
    %v60 = vld [vmem:[%s1 + $0x1] sm:$0x1]
    %v61 = vsub.f32 1.0, %v59
    %v62 = vsub.f32 1.0, %v60
    %v63 = vmul.f32 %v61, -10000.0
    %v64 = vmul.f32 %v62, -10000.0
    %v65 = vpack.c.bf16 %v58, %v57
    %v66 = vld [vmem:[%s2] sm:$0xf]
    %v67 = vld [vmem:[%s2 + $0x4] sm:$0xf]
    %v68 = vld [vmem:[%s2 + $0x8] sm:$0xf]
    %v69 = vld [vmem:[%s2 + $0xc] sm:$0xf]
    %v70 = vld [vmem:[%s3] sm:$0x1]
    %v72 = vperm.slane %v70, 0
    %v78 = vunpack.c.l.b16 %v66
    %v79 = vunpack.c.l.b16 %v67
    %v80 = vunpack.c.l.b16 %v68
    %v81 = vunpack.c.l.b16 %v69
    %v82 = vpack.c.b16 %v79, %v78
    %v83 = vpack.c.b16 %v81, %v80
    %vm86 = vcmask 261120
    %v88 = vsel %vm86, %v65, 0
    %90 = vmatpush.bf16.msra.mxu0 0
    %91 = vmatpush.bf16.msra.mxu0 0
    %92 = vmatpush.bf16.msra.mxu0 0
    %93 = vmatpush.bf16.msra.mxu0 0
    %94 = vmatpush.bf16.msra.mxu0 0
    %95 = vmatpush.bf16.msra.mxu0 0
    %96 = vmatpush.bf16.msra.mxu0 %v83
    %97 = vmatpush.bf16.msra.mxu0 %v82
    %98 = vmatmul.bf16.gmra.mxu0 %v88
    %v99 = vpop.f32.mrf.mxu0
    %v100 = vadd.f32 %v72, %v99
    %v101 = vpop.f32.mrf.mxu0
    %v102 = vadd.f32 %v72, %v101
    %103 = vdwg.mxu0
    %v104 = vpack.c.bf16 %v100, %v100
    %v105 = vpack.c.bf16 %v102, %v102
    %v107 = vunpack.c.l.b16 %v104
    %v108 = vpack.c.b16 %v107, %v107
    %109 = vrot.lane.b32.xlu0 %v108, 96
    %v110 = vpop.permute.xlu0 %109
    %vm111 = vcmask 64512
    %v113 = vsel %vm111, %v104, 0
    %v116 = vsel %vm111, %v110, 0
    %118 = vmatpush.bf16.xpose.msra.mxu0 0
    %119 = vmatpush.bf16.xpose.msra.mxu0 0
    %120 = vmatpush.bf16.xpose.msra.mxu0 0
    %121 = vmatpush.bf16.xpose.msra.mxu0 0
    %122 = vmatpush.bf16.xpose.msra.mxu0 0
    %123 = vmatpush.bf16.xpose.msra.mxu0 0
    %124 = vmatpush.bf16.xpose.msra.mxu0 0
    %125 = vmatpush.bf16.xpose.msra.mxu0 %v116
    %126 = vmatmul.bf16.gmra.mxu0 %v113
    %v127 = vpop.f32.mrf.mxu0
    %v128 = vadd.f32 0.0, %v127
    %v129 = vpop.f32.mrf.mxu0
    %130 = vdwg.mxu0
    %v132 = vunpack.c.l.b16 %v105
    %v133 = vpack.c.b16 %v132, %v132
    %134 = vrot.lane.b32.xlu0 %v133, 96
    %v135 = vpop.permute.xlu0 %134
    %v137 = vsel %vm111, %v105, 0
    %v140 = vsel %vm111, %v135, 0
    %142 = vmatpush.bf16.xpose.msra.mxu0 0
    %143 = vmatpush.bf16.xpose.msra.mxu0 0
    %144 = vmatpush.bf16.xpose.msra.mxu0 0
    %145 = vmatpush.bf16.xpose.msra.mxu0 0
    %146 = vmatpush.bf16.xpose.msra.mxu0 0
    %147 = vmatpush.bf16.xpose.msra.mxu0 0
    %148 = vmatpush.bf16.xpose.msra.mxu0 0
    %149 = vmatpush.bf16.xpose.msra.mxu0 %v140
    %150 = vmatmul.bf16.gmra.mxu0 %v137
    %v151 = vpop.f32.mrf.mxu0
    %v152 = vadd.f32 0.0, %v151
    %v153 = vpop.f32.mrf.mxu0
    %154 = vdwg.mxu0
    %v155 = vmul.f32 %v128, 0.35355338
    %v156 = vmul.f32 %v152, 0.35355338
    %v159 = vperm.slane %v63, 0
    %v160 = vperm.slane %v64, 0
    %v163 = vadd.f32 %v155, %v159
    %v164 = vadd.f32 %v156, %v160
    %v165 = vsel %vm111, %v163, -inf
    %166 = vmax.xlane.f32.xlu0 %v165
    %v167 = vpop.xlane.xlu0 %166
    %v168 = vsel %vm111, %v164, -inf
    %169 = vmax.xlane.f32.xlu0 %v168
    %v170 = vpop.xlane.xlu0 %169
    %v171 = vsub.f32 %v163, %v167
    %v172 = vsub.f32 %v164, %v170
    %v173 = vmul.f32 %v171, 1.442695
    %v174 = vpow.pop %v173
    %v175 = vmul.f32 %v172, 1.442695
    %v176 = vpow.pop %v175
    %v177 = vsel %vm111, %v174, 0.0
    %178 = vadd.xlane.f32.xlu0 %v177
    %v179 = vpop.xlane.xlu0 %178
    %v180 = vsel %vm111, %v176, 0.0
    %181 = vadd.xlane.f32.xlu0 %v180
    %v182 = vpop.xlane.xlu0 %181
    %v183 = vrcp.pop %v179
    %v184 = vrcp.pop %v182
    %v185 = vmul.f32 %v174, %v183
    %v186 = vmul.f32 %v176, %v184
    %v187 = vpack.c.bf16 %v185, %v185
    %v188 = vpack.c.bf16 %v186, %v186
    %189 = vrot.lane.b32.xlu0 %v108, 64
    %v190 = vpop.permute.xlu0 %189
    %v192 = vsel %vm111, %v187, 0
    %vm194 = vcmask 1043456
    %v196 = vsel %vm194, %v190, 0
    %198 = vmatpush.bf16.msra.mxu0 0
    %199 = vmatpush.bf16.msra.mxu0 0
    %200 = vmatpush.bf16.msra.mxu0 0
    %201 = vmatpush.bf16.msra.mxu0 0
    %202 = vmatpush.bf16.msra.mxu0 0
    %203 = vmatpush.bf16.msra.mxu0 0
    %204 = vmatpush.bf16.msra.mxu0 0
    %205 = vmatpush.bf16.msra.mxu0 %v196
    %206 = vmatmul.bf16.gmra.mxu0 %v192
    %v207 = vpop.f32.mrf.mxu0
    %v208 = vadd.f32 0.0, %v207
    %v209 = vpop.f32.mrf.mxu0
    %210 = vdwg.mxu0
    %211 = vrot.lane.b32.xlu0 %v133, 64
    %v212 = vpop.permute.xlu0 %211
    %v214 = vsel %vm111, %v188, 0
    %v217 = vsel %vm194, %v212, 0
    %219 = vmatpush.bf16.msra.mxu0 0
    %220 = vmatpush.bf16.msra.mxu0 0
    %221 = vmatpush.bf16.msra.mxu0 0
    %222 = vmatpush.bf16.msra.mxu0 0
    %223 = vmatpush.bf16.msra.mxu0 0
    %224 = vmatpush.bf16.msra.mxu0 0
    %225 = vmatpush.bf16.msra.mxu0 0
    %226 = vmatpush.bf16.msra.mxu0 %v217
    %227 = vmatmul.bf16.gmra.mxu0 %v214
    %v228 = vpop.f32.mrf.mxu0
    %v229 = vadd.f32 0.0, %v228
    %v230 = vpop.f32.mrf.mxu0
    %231 = vdwg.mxu0
    %232 = vst.msk [vmem:[#allocation2] sm:$0xff] %vm111, %v208
    %233 = vst.msk [vmem:[#allocation2 + $0x8] sm:$0xff] %vm111, %v229
    %234 = vrot.lane.b32.xlu0 %v108, 120
    %v235 = vpop.permute.xlu0 %234
    %236 = vrot.lane.b32.xlu0 %v108, 88
    %v237 = vpop.permute.xlu0 %236
    %v239 = vsel %vm111, %v235, 0
    %v242 = vsel %vm111, %v237, 0
    %244 = vmatpush.bf16.xpose.msra.mxu0 0
    %245 = vmatpush.bf16.xpose.msra.mxu0 0
    %246 = vmatpush.bf16.xpose.msra.mxu0 0
    %247 = vmatpush.bf16.xpose.msra.mxu0 0
    %248 = vmatpush.bf16.xpose.msra.mxu0 0
    %249 = vmatpush.bf16.xpose.msra.mxu0 0
    %250 = vmatpush.bf16.xpose.msra.mxu0 0
    %251 = vmatpush.bf16.xpose.msra.mxu0 %v242
    %252 = vmatmul.bf16.gmra.mxu0 %v239
    %v253 = vpop.f32.mrf.mxu0
    %v254 = vadd.f32 0.0, %v253
    %v255 = vpop.f32.mrf.mxu0
    %256 = vdwg.mxu0
    %257 = vrot.lane.b32.xlu0 %v133, 120
    %v258 = vpop.permute.xlu0 %257
    %259 = vrot.lane.b32.xlu0 %v133, 88
    %v260 = vpop.permute.xlu0 %259
    %v262 = vsel %vm111, %v258, 0
    %v265 = vsel %vm111, %v260, 0
    %267 = vmatpush.bf16.xpose.msra.mxu0 0
    %268 = vmatpush.bf16.xpose.msra.mxu0 0
    %269 = vmatpush.bf16.xpose.msra.mxu0 0
    %270 = vmatpush.bf16.xpose.msra.mxu0 0
    %271 = vmatpush.bf16.xpose.msra.mxu0 0
    %272 = vmatpush.bf16.xpose.msra.mxu0 0
    %273 = vmatpush.bf16.xpose.msra.mxu0 0
    %274 = vmatpush.bf16.xpose.msra.mxu0 %v265
    %275 = vmatmul.bf16.gmra.mxu0 %v262
    %v276 = vpop.f32.mrf.mxu0
    %v277 = vadd.f32 0.0, %v276
    %v278 = vpop.f32.mrf.mxu0
    %279 = vdwg.mxu0
    %v280 = vmul.f32 %v254, 0.35355338
    %v281 = vmul.f32 %v277, 0.35355338
    %v282 = vadd.f32 %v280, %v159
    %v283 = vadd.f32 %v281, %v160
    %v284 = vsel %vm111, %v282, -inf
    %285 = vmax.xlane.f32.xlu0 %v284
    %v286 = vpop.xlane.xlu0 %285
    %v287 = vsel %vm111, %v283, -inf
    %288 = vmax.xlane.f32.xlu0 %v287
    %v289 = vpop.xlane.xlu0 %288
    %v290 = vsub.f32 %v282, %v286
    %v291 = vsub.f32 %v283, %v289
    %v292 = vmul.f32 %v290, 1.442695
    %v293 = vpow.pop %v292
    %v294 = vmul.f32 %v291, 1.442695
    %v295 = vpow.pop %v294
    %v296 = vsel %vm111, %v293, 0.0
    %297 = vadd.xlane.f32.xlu0 %v296
    %v298 = vpop.xlane.xlu0 %297
    %v299 = vsel %vm111, %v295, 0.0
    %300 = vadd.xlane.f32.xlu0 %v299
    %v301 = vpop.xlane.xlu0 %300
    %v302 = vrcp.pop %v298
    %v303 = vrcp.pop %v301
    %v304 = vmul.f32 %v293, %v302
    %v305 = vmul.f32 %v295, %v303
    %v306 = vpack.c.bf16 %v304, %v304
    %v307 = vpack.c.bf16 %v305, %v305
    %308 = vrot.lane.b32.xlu0 %v108, 56
    %v309 = vpop.permute.xlu0 %308
    %v311 = vsel %vm111, %v306, 0
    %v314 = vsel %vm194, %v309, 0
    %316 = vmatpush.bf16.msra.mxu0 0
    %317 = vmatpush.bf16.msra.mxu0 0
    %318 = vmatpush.bf16.msra.mxu0 0
    %319 = vmatpush.bf16.msra.mxu0 0
    %320 = vmatpush.bf16.msra.mxu0 0
    %321 = vmatpush.bf16.msra.mxu0 0
    %322 = vmatpush.bf16.msra.mxu0 0
    %323 = vmatpush.bf16.msra.mxu0 %v314
    %324 = vmatmul.bf16.gmra.mxu0 %v311
    %v325 = vpop.f32.mrf.mxu0
    %v326 = vadd.f32 0.0, %v325
    %v327 = vpop.f32.mrf.mxu0
    %328 = vdwg.mxu0
    %329 = vrot.lane.b32.xlu0 %v133, 56
    %v330 = vpop.permute.xlu0 %329
    %v332 = vsel %vm111, %v307, 0
    %v335 = vsel %vm194, %v330, 0
    %337 = vmatpush.bf16.msra.mxu0 0
    %338 = vmatpush.bf16.msra.mxu0 0
    %339 = vmatpush.bf16.msra.mxu0 0
    %340 = vmatpush.bf16.msra.mxu0 0
    %341 = vmatpush.bf16.msra.mxu0 0
    %342 = vmatpush.bf16.msra.mxu0 0
    %343 = vmatpush.bf16.msra.mxu0 0
    %344 = vmatpush.bf16.msra.mxu0 %v335
    %345 = vmatmul.bf16.gmra.mxu0 %v332
    %v346 = vpop.f32.mrf.mxu0
    %v347 = vadd.f32 0.0, %v346
    %v348 = vpop.f32.mrf.mxu0
    %349 = vdwg.mxu0
    %352 = vrot.lane.b32.xlu0 %v326, 8
    %v353 = vpop.permute.xlu0 %352
    %354 = vrot.lane.b32.xlu0 %v347, 8
    %v355 = vpop.permute.xlu0 %354
    %vm358 = vcmask 130112
    %359 = vst.msk [vmem:[#allocation2] sm:$0xff] %vm358, %v353
    %360 = vst.msk [vmem:[#allocation2 + $0x8] sm:$0xff] %vm358, %v355
    %361 = vrot.lane.b32.xlu0 %v108, 112
    %v362 = vpop.permute.xlu0 %361
    %363 = vrot.lane.b32.xlu0 %v108, 80
    %v364 = vpop.permute.xlu0 %363
    %v366 = vsel %vm111, %v362, 0
    %v369 = vsel %vm111, %v364, 0
    %371 = vmatpush.bf16.xpose.msra.mxu0 0
    %372 = vmatpush.bf16.xpose.msra.mxu0 0
    %373 = vmatpush.bf16.xpose.msra.mxu0 0
    %374 = vmatpush.bf16.xpose.msra.mxu0 0
    %375 = vmatpush.bf16.xpose.msra.mxu0 0
    %376 = vmatpush.bf16.xpose.msra.mxu0 0
    %377 = vmatpush.bf16.xpose.msra.mxu0 0
    %378 = vmatpush.bf16.xpose.msra.mxu0 %v369
    %379 = vmatmul.bf16.gmra.mxu0 %v366
    %v380 = vpop.f32.mrf.mxu0
    %v381 = vadd.f32 0.0, %v380
    %v382 = vpop.f32.mrf.mxu0
    %383 = vdwg.mxu0
    %384 = vrot.lane.b32.xlu0 %v133, 112
    %v385 = vpop.permute.xlu0 %384
    %386 = vrot.lane.b32.xlu0 %v133, 80
    %v387 = vpop.permute.xlu0 %386
    %v389 = vsel %vm111, %v385, 0
    %v392 = vsel %vm111, %v387, 0
    %394 = vmatpush.bf16.xpose.msra.mxu0 0
    %395 = vmatpush.bf16.xpose.msra.mxu0 0
    %396 = vmatpush.bf16.xpose.msra.mxu0 0
    %397 = vmatpush.bf16.xpose.msra.mxu0 0
    %398 = vmatpush.bf16.xpose.msra.mxu0 0
    %399 = vmatpush.bf16.xpose.msra.mxu0 0
    %400 = vmatpush.bf16.xpose.msra.mxu0 0
    %401 = vmatpush.bf16.xpose.msra.mxu0 %v392
    %402 = vmatmul.bf16.gmra.mxu0 %v389
    %v403 = vpop.f32.mrf.mxu0
    %v404 = vadd.f32 0.0, %v403
    %v405 = vpop.f32.mrf.mxu0
    %406 = vdwg.mxu0
    %v407 = vmul.f32 %v381, 0.35355338
    %v408 = vmul.f32 %v404, 0.35355338
    %v409 = vadd.f32 %v407, %v159
    %v410 = vadd.f32 %v408, %v160
    %v411 = vsel %vm111, %v409, -inf
    %412 = vmax.xlane.f32.xlu0 %v411
    %v413 = vpop.xlane.xlu0 %412
    %v414 = vsel %vm111, %v410, -inf
    %415 = vmax.xlane.f32.xlu0 %v414
    %v416 = vpop.xlane.xlu0 %415
    %v417 = vsub.f32 %v409, %v413
    %v418 = vsub.f32 %v410, %v416
    %v419 = vmul.f32 %v417, 1.442695
    %v420 = vpow.pop %v419
    %v421 = vmul.f32 %v418, 1.442695
    %v422 = vpow.pop %v421
    %v423 = vsel %vm111, %v420, 0.0
    %424 = vadd.xlane.f32.xlu0 %v423
    %v425 = vpop.xlane.xlu0 %424
    %v426 = vsel %vm111, %v422, 0.0
    %427 = vadd.xlane.f32.xlu0 %v426
    %v428 = vpop.xlane.xlu0 %427
    %v429 = vrcp.pop %v425
    %v430 = vrcp.pop %v428
    %v431 = vmul.f32 %v420, %v429
    %v432 = vmul.f32 %v422, %v430
    %v433 = vpack.c.bf16 %v431, %v431
    %v434 = vpack.c.bf16 %v432, %v432
    %435 = vrot.lane.b32.xlu0 %v108, 48
    %v436 = vpop.permute.xlu0 %435
    %v438 = vsel %vm111, %v433, 0
    %v441 = vsel %vm194, %v436, 0
    %443 = vmatpush.bf16.msra.mxu0 0
    %444 = vmatpush.bf16.msra.mxu0 0
    %445 = vmatpush.bf16.msra.mxu0 0
    %446 = vmatpush.bf16.msra.mxu0 0
    %447 = vmatpush.bf16.msra.mxu0 0
    %448 = vmatpush.bf16.msra.mxu0 0
    %449 = vmatpush.bf16.msra.mxu0 0
    %450 = vmatpush.bf16.msra.mxu0 %v441
    %451 = vmatmul.bf16.gmra.mxu0 %v438
    %v452 = vpop.f32.mrf.mxu0
    %v453 = vadd.f32 0.0, %v452
    %v454 = vpop.f32.mrf.mxu0
    %455 = vdwg.mxu0
    %456 = vrot.lane.b32.xlu0 %v133, 48
    %v457 = vpop.permute.xlu0 %456
    %v459 = vsel %vm111, %v434, 0
    %v462 = vsel %vm194, %v457, 0
    %464 = vmatpush.bf16.msra.mxu0 0
    %465 = vmatpush.bf16.msra.mxu0 0
    %466 = vmatpush.bf16.msra.mxu0 0
    %467 = vmatpush.bf16.msra.mxu0 0
    %468 = vmatpush.bf16.msra.mxu0 0
    %469 = vmatpush.bf16.msra.mxu0 0
    %470 = vmatpush.bf16.msra.mxu0 0
    %471 = vmatpush.bf16.msra.mxu0 %v462
    %472 = vmatmul.bf16.gmra.mxu0 %v459
    %v473 = vpop.f32.mrf.mxu0
    %v474 = vadd.f32 0.0, %v473
    %v475 = vpop.f32.mrf.mxu0
    %476 = vdwg.mxu0
    %479 = vrot.lane.b32.xlu0 %v453, 16
    %v480 = vpop.permute.xlu0 %479
    %481 = vrot.lane.b32.xlu0 %v474, 16
    %v482 = vpop.permute.xlu0 %481
    %vm485 = vcmask 195712
    %486 = vst.msk [vmem:[#allocation2] sm:$0xff] %vm485, %v480
    %487 = vst.msk [vmem:[#allocation2 + $0x8] sm:$0xff] %vm485, %v482
    %488 = vrot.lane.b32.xlu0 %v108, 104
    %v489 = vpop.permute.xlu0 %488
    %490 = vrot.lane.b32.xlu0 %v108, 72
    %v491 = vpop.permute.xlu0 %490
    %v493 = vsel %vm111, %v489, 0
    %v496 = vsel %vm111, %v491, 0
    %498 = vmatpush.bf16.xpose.msra.mxu0 0
    %499 = vmatpush.bf16.xpose.msra.mxu0 0
    %500 = vmatpush.bf16.xpose.msra.mxu0 0
    %501 = vmatpush.bf16.xpose.msra.mxu0 0
    %502 = vmatpush.bf16.xpose.msra.mxu0 0
    %503 = vmatpush.bf16.xpose.msra.mxu0 0
    %504 = vmatpush.bf16.xpose.msra.mxu0 0
    %505 = vmatpush.bf16.xpose.msra.mxu0 %v496
    %506 = vmatmul.bf16.gmra.mxu0 %v493
    %v507 = vpop.f32.mrf.mxu0
    %v508 = vadd.f32 0.0, %v507
    %v509 = vpop.f32.mrf.mxu0
    %510 = vdwg.mxu0
    %511 = vrot.lane.b32.xlu0 %v133, 104
    %v512 = vpop.permute.xlu0 %511
    %513 = vrot.lane.b32.xlu0 %v133, 72
    %v514 = vpop.permute.xlu0 %513
    %v516 = vsel %vm111, %v512, 0
    %v519 = vsel %vm111, %v514, 0
    %521 = vmatpush.bf16.xpose.msra.mxu0 0
    %522 = vmatpush.bf16.xpose.msra.mxu0 0
    %523 = vmatpush.bf16.xpose.msra.mxu0 0
    %524 = vmatpush.bf16.xpose.msra.mxu0 0
    %525 = vmatpush.bf16.xpose.msra.mxu0 0
    %526 = vmatpush.bf16.xpose.msra.mxu0 0
    %527 = vmatpush.bf16.xpose.msra.mxu0 0
    %528 = vmatpush.bf16.xpose.msra.mxu0 %v519
    %529 = vmatmul.bf16.gmra.mxu0 %v516
    %v530 = vpop.f32.mrf.mxu0
    %v531 = vadd.f32 0.0, %v530
    %v532 = vpop.f32.mrf.mxu0
    %533 = vdwg.mxu0
    %v534 = vmul.f32 %v508, 0.35355338
    %v535 = vmul.f32 %v531, 0.35355338
    %v536 = vadd.f32 %v534, %v159
    %v537 = vadd.f32 %v535, %v160
    %v538 = vsel %vm111, %v536, -inf
    %539 = vmax.xlane.f32.xlu0 %v538
    %v540 = vpop.xlane.xlu0 %539
    %v541 = vsel %vm111, %v537, -inf
    %542 = vmax.xlane.f32.xlu0 %v541
    %v543 = vpop.xlane.xlu0 %542
    %v544 = vsub.f32 %v536, %v540
    %v545 = vsub.f32 %v537, %v543
    %v546 = vmul.f32 %v544, 1.442695
    %v547 = vpow.pop %v546
    %v548 = vmul.f32 %v545, 1.442695
    %v549 = vpow.pop %v548
    %v550 = vsel %vm111, %v547, 0.0
    %551 = vadd.xlane.f32.xlu0 %v550
    %v552 = vpop.xlane.xlu0 %551
    %v553 = vsel %vm111, %v549, 0.0
    %554 = vadd.xlane.f32.xlu0 %v553
    %v555 = vpop.xlane.xlu0 %554
    %v556 = vrcp.pop %v552
    %v557 = vrcp.pop %v555
    %v558 = vmul.f32 %v547, %v556
    %v559 = vmul.f32 %v549, %v557
    %v560 = vpack.c.bf16 %v558, %v558
    %v561 = vpack.c.bf16 %v559, %v559
    %562 = vrot.lane.b32.xlu0 %v108, 40
    %v563 = vpop.permute.xlu0 %562
    %v565 = vsel %vm111, %v560, 0
    %v568 = vsel %vm194, %v563, 0
    %570 = vmatpush.bf16.msra.mxu0 0
    %571 = vmatpush.bf16.msra.mxu0 0
    %572 = vmatpush.bf16.msra.mxu0 0
    %573 = vmatpush.bf16.msra.mxu0 0
    %574 = vmatpush.bf16.msra.mxu0 0
    %575 = vmatpush.bf16.msra.mxu0 0
    %576 = vmatpush.bf16.msra.mxu0 0
    %577 = vmatpush.bf16.msra.mxu0 %v568
    %578 = vmatmul.bf16.gmra.mxu0 %v565
    %v579 = vpop.f32.mrf.mxu0
    %v580 = vadd.f32 0.0, %v579
    %v581 = vpop.f32.mrf.mxu0
    %582 = vdwg.mxu0
    %583 = vrot.lane.b32.xlu0 %v133, 40
    %v584 = vpop.permute.xlu0 %583
    %v586 = vsel %vm111, %v561, 0
    %v589 = vsel %vm194, %v584, 0
    %591 = vmatpush.bf16.msra.mxu0 0
    %592 = vmatpush.bf16.msra.mxu0 0
    %593 = vmatpush.bf16.msra.mxu0 0
    %594 = vmatpush.bf16.msra.mxu0 0
    %595 = vmatpush.bf16.msra.mxu0 0
    %596 = vmatpush.bf16.msra.mxu0 0
    %597 = vmatpush.bf16.msra.mxu0 0
    %598 = vmatpush.bf16.msra.mxu0 %v589
    %599 = vmatmul.bf16.gmra.mxu0 %v586
    %v600 = vpop.f32.mrf.mxu0
    %v601 = vadd.f32 0.0, %v600
    %v602 = vpop.f32.mrf.mxu0
    %603 = vdwg.mxu0
    %606 = vrot.lane.b32.xlu0 %v580, 24
    %v607 = vpop.permute.xlu0 %606
    %608 = vrot.lane.b32.xlu0 %v601, 24
    %v609 = vpop.permute.xlu0 %608
    %vm612 = vcmask 261312
    %613 = vst.msk [vmem:[#allocation2] sm:$0xff] %vm612, %v607
    %614 = vst.msk [vmem:[#allocation2 + $0x8] sm:$0xff] %vm612, %v609
    %v615 = vld [vmem:[#allocation2] sm:$0xff]
    %v616 = vld [vmem:[#allocation2 + $0x8] sm:$0xff]
    %v617 = vpack.c.bf16 %v616, %v615
    %v618 = vld [vmem:[%s4] sm:$0xf]
    %v619 = vld [vmem:[%s4 + $0x4] sm:$0xf]
    %v620 = vld [vmem:[%s4 + $0x8] sm:$0xf]
    %v621 = vld [vmem:[%s4 + $0xc] sm:$0xf]
    %v622 = vld [vmem:[%s5] sm:$0x1]
    %v624 = vperm.slane %v622, 0
    %v630 = vunpack.c.l.b16 %v618
    %v631 = vunpack.c.l.b16 %v619
    %v632 = vunpack.c.l.b16 %v620
    %v633 = vunpack.c.l.b16 %v621
    %v634 = vpack.c.b16 %v631, %v630
    %v635 = vpack.c.b16 %v633, %v632
    %v639 = vsel %vm86, %v617, 0
    %641 = vmatpush.bf16.msra.mxu0 0
    %642 = vmatpush.bf16.msra.mxu0 0
    %643 = vmatpush.bf16.msra.mxu0 0
    %644 = vmatpush.bf16.msra.mxu0 0
    %645 = vmatpush.bf16.msra.mxu0 0
    %646 = vmatpush.bf16.msra.mxu0 0
    %647 = vmatpush.bf16.msra.mxu0 %v635
    %648 = vmatpush.bf16.msra.mxu0 %v634
    %649 = vmatmul.bf16.gmra.mxu0 %v639
    %v650 = vpop.f32.mrf.mxu0
    %v651 = vadd.f32 %v624, %v650
    %v652 = vpop.f32.mrf.mxu0
    %v653 = vadd.f32 %v624, %v652
    %654 = vdwg.mxu0
    %v655 = vadd.f32 %v651, %v57
    %v656 = vadd.f32 %v653, %v58
    %v657 = vld [vmem:[%s6] sm:$0x1]
    %v658 = vld [vmem:[%s7] sm:$0x1]
    %v659 = vsel %vm86, %v655, 0.0
    %660 = vadd.xlane.f32.xlu0 %v659
    %v661 = vpop.xlane.xlu0 %660
    %v662 = vsel %vm86, %v656, 0.0
    %663 = vadd.xlane.f32.xlu0 %v662
    %v664 = vpop.xlane.xlu0 %663
    %v665 = vrcp.pop 32.0
    %v666 = vmul.f32 32.0, %v665
    %v667 = vsub.f32 1.0, %v666
    %v668 = vmul.f32 %v665, %v667
    %v669 = vadd.f32 %v665, %v668
    %vm670 = vweird.f32 %v665
    %v671 = vsel %vm670, %v665, %v669
    %v672 = vmul.f32 %v661, %v671
    %v673 = vmul.f32 %v664, %v671
    %v674 = vsub.f32 %v655, %v672
    %v675 = vsub.f32 %v656, %v673
    %v676 = vmul.f32 %v674, %v674
    %v677 = vmul.f32 %v675, %v675
    %v678 = vsel %vm86, %v676, 0.0
    %679 = vadd.xlane.f32.xlu0 %v678
    %v680 = vpop.xlane.xlu0 %679
    %v681 = vsel %vm86, %v677, 0.0
    %682 = vadd.xlane.f32.xlu0 %v681
    %v683 = vpop.xlane.xlu0 %682
    %v684 = vmul.f32 %v680, %v671
    %v685 = vmul.f32 %v683, %v671
    %v686 = vadd.f32 %v684, 1e-12
    %v687 = vadd.f32 %v685, 1e-12
    %v688 = vrsqrt.pop %v686
    %v689 = vmul.f32 %v688, %v686
    %v690 = vmul.f32 %v689, %v688
    %v691 = vmul.f32 0.5, %v690
    %v692 = vsub.f32 1.5, %v691
    %v693 = vmul.f32 %v688, %v692
    %vm694 = vweird.f32 %v686
    %vm695 = vweird.f32 %v688
    %vm696 = vmor %vm694, %vm695
    %v697 = vsel %vm696, %v688, %v693
    %v698 = vrsqrt.pop %v687
    %v699 = vmul.f32 %v698, %v687
    %v700 = vmul.f32 %v699, %v698
    %v701 = vmul.f32 0.5, %v700
    %v702 = vsub.f32 1.5, %v701
    %v703 = vmul.f32 %v698, %v702
    %vm704 = vweird.f32 %v687
    %vm705 = vweird.f32 %v698
    %vm706 = vmor %vm704, %vm705
    %v707 = vsel %vm706, %v698, %v703
    %v708 = vmul.f32 %v674, %v697
    %v709 = vmul.f32 %v675, %v707
    %v711 = vperm.slane %v657, 0
    %v713 = vmul.f32 %v708, %v711
    %v714 = vmul.f32 %v709, %v711
    %v716 = vperm.slane %v658, 0
    %v718 = vadd.f32 %v713, %v716
    %v719 = vadd.f32 %v714, %v716
    %v720 = vpack.c.bf16 %v719, %v718
    %v721 = vld [vmem:[%s8] sm:$0xf]
    %v722 = vld [vmem:[%s8 + $0x4] sm:$0xf]
    %v723 = vld [vmem:[%s8 + $0x8] sm:$0xf]
    %v724 = vld [vmem:[%s8 + $0xc] sm:$0xf]
    %v725 = vld [vmem:[%s9] sm:$0x1]
    %v727 = vperm.slane %v725, 0
    %v733 = vunpack.c.l.b16 %v721
    %v734 = vunpack.c.l.b16 %v722
    %v735 = vunpack.c.l.b16 %v723
    %v736 = vunpack.c.l.b16 %v724
    %v737 = vpack.c.b16 %v734, %v733
    %v738 = vpack.c.b16 %v736, %v735
    %v742 = vsel %vm86, %v720, 0
    %744 = vmatpush.bf16.msra.mxu0 0
    %745 = vmatpush.bf16.msra.mxu0 0
    %746 = vmatpush.bf16.msra.mxu0 0
    %747 = vmatpush.bf16.msra.mxu0 0
    %748 = vmatpush.bf16.msra.mxu0 0
    %749 = vmatpush.bf16.msra.mxu0 0
    %750 = vmatpush.bf16.msra.mxu0 %v738
    %751 = vmatpush.bf16.msra.mxu0 %v737
    %752 = vmatmul.bf16.gmra.mxu0 %v742
    %v753 = vpop.f32.mrf.mxu0
    %v754 = vadd.f32 %v727, %v753
    %v755 = vpop.f32.mrf.mxu0
    %v756 = vadd.f32 %v727, %v755
    %757 = vdwg.mxu0
    %v758 = vmul.f32 %v754, 0.5
    %v759 = vmul.f32 %v756, 0.5
    %v760 = vmul.f32 %v754, 0.044715
    %v761 = vmul.f32 %v756, 0.044715
    %v762 = vmul.f32 %v760, %v754
    %v763 = vmul.f32 %v761, %v756
    %v764 = vmul.f32 %v762, %v754
    %v765 = vmul.f32 %v763, %v756
    %v766 = vadd.f32 %v754, %v764
    %v767 = vadd.f32 %v756, %v765
    %v768 = vmul.f32 %v766, 0.7978846
    %v769 = vmul.f32 %v767, 0.7978846
    %v770 = vtanh.pop %v768
    %v771 = vtanh.pop %v769
    %v772 = vadd.f32 %v770, 1.0
    %v773 = vadd.f32 %v771, 1.0
    %v774 = vmul.f32 %v758, %v772
    %v775 = vmul.f32 %v759, %v773
    %v776 = vpack.c.bf16 %v775, %v774
    %v777 = vld [vmem:[%s10] sm:$0xf]
    %v778 = vld [vmem:[%s10 + $0x4] sm:$0xf]
    %v779 = vld [vmem:[%s10 + $0x8] sm:$0xf]
    %v780 = vld [vmem:[%s10 + $0xc] sm:$0xf]
    %v781 = vld [vmem:[%s11] sm:$0x1]
    %v783 = vperm.slane %v781, 0
    %v789 = vunpack.c.l.b16 %v777
    %v790 = vunpack.c.l.b16 %v778
    %v791 = vunpack.c.l.b16 %v779
    %v792 = vunpack.c.l.b16 %v780
    %v793 = vpack.c.b16 %v790, %v789
    %v794 = vpack.c.b16 %v792, %v791
    %v798 = vsel %vm86, %v776, 0
    %800 = vmatpush.bf16.msra.mxu0 0
    %801 = vmatpush.bf16.msra.mxu0 0
    %802 = vmatpush.bf16.msra.mxu0 0
    %803 = vmatpush.bf16.msra.mxu0 0
    %804 = vmatpush.bf16.msra.mxu0 0
    %805 = vmatpush.bf16.msra.mxu0 0
    %806 = vmatpush.bf16.msra.mxu0 %v794
    %807 = vmatpush.bf16.msra.mxu0 %v793
    %808 = vmatmul.bf16.gmra.mxu0 %v798
    %v809 = vpop.f32.mrf.mxu0
    %v810 = vadd.f32 %v783, %v809
    %v811 = vpop.f32.mrf.mxu0
    %v812 = vadd.f32 %v783, %v811
    %813 = vdwg.mxu0
    %v814 = vadd.f32 %v810, %v718
    %v815 = vadd.f32 %v812, %v719
    %v816 = vld [vmem:[%s12] sm:$0x1]
    %v817 = vld [vmem:[%s13] sm:$0x1]
    %v818 = vsel %vm86, %v814, 0.0
    %819 = vadd.xlane.f32.xlu0 %v818
    %v820 = vpop.xlane.xlu0 %819
    %v821 = vsel %vm86, %v815, 0.0
    %822 = vadd.xlane.f32.xlu0 %v821
    %v823 = vpop.xlane.xlu0 %822
    %v824 = vmul.f32 %v820, %v671
    %v825 = vmul.f32 %v823, %v671
    %v826 = vsub.f32 %v814, %v824
    %v827 = vsub.f32 %v815, %v825
    %v828 = vmul.f32 %v826, %v826
    %v829 = vmul.f32 %v827, %v827
    %v830 = vsel %vm86, %v828, 0.0
    %831 = vadd.xlane.f32.xlu0 %v830
    %v832 = vpop.xlane.xlu0 %831
    %v833 = vsel %vm86, %v829, 0.0
    %834 = vadd.xlane.f32.xlu0 %v833
    %v835 = vpop.xlane.xlu0 %834
    %v836 = vmul.f32 %v832, %v671
    %v837 = vmul.f32 %v835, %v671
    %v838 = vadd.f32 %v836, 1e-12
    %v839 = vadd.f32 %v837, 1e-12
    %v840 = vrsqrt.pop %v838
    %v841 = vmul.f32 %v840, %v838
    %v842 = vmul.f32 %v841, %v840
    %v843 = vmul.f32 0.5, %v842
    %v844 = vsub.f32 1.5, %v843
    %v845 = vmul.f32 %v840, %v844
    %vm846 = vweird.f32 %v838
    %vm847 = vweird.f32 %v840
    %vm848 = vmor %vm846, %vm847
    %v849 = vsel %vm848, %v840, %v845
    %v850 = vrsqrt.pop %v839
    %v851 = vmul.f32 %v850, %v839
    %v852 = vmul.f32 %v851, %v850
    %v853 = vmul.f32 0.5, %v852
    %v854 = vsub.f32 1.5, %v853
    %v855 = vmul.f32 %v850, %v854
    %vm856 = vweird.f32 %v839
    %vm857 = vweird.f32 %v850
    %vm858 = vmor %vm856, %vm857
    %v859 = vsel %vm858, %v850, %v855
    %v860 = vmul.f32 %v826, %v849
    %v861 = vmul.f32 %v827, %v859
    %v863 = vperm.slane %v816, 0
    %v865 = vmul.f32 %v860, %v863
    %v866 = vmul.f32 %v861, %v863
    %v868 = vperm.slane %v817, 0
    %v870 = vadd.f32 %v865, %v868
    %v871 = vadd.f32 %v866, %v868
    %v872 = vld [vmem:[%s14] sm:$0x1]
    %v874 = vperm.slane %v872, 0
    %v876 = vmul.f32 %v870, %v874
    %v877 = vmul.f32 %v871, %v874
    %v878 = vsel %vm86, %v876, 0.0
    %879 = vadd.xlane.f32.xlu0 %v878
    %v880 = vpop.xlane.xlu0 %879
    %v881 = vsel %vm86, %v877, 0.0
    %882 = vadd.xlane.f32.xlu0 %v881
    %v883 = vpop.xlane.xlu0 %882
    %v884 = vld [vmem:[#allocation3] sm:$0x1]
    %v886 = vperm.slane %v884, 0
    %887 = vset.pattern.permute.xlu0 0
    %888 = vperm.xlu0 %887, %v886
    %v889 = vpop.permute.xlu0 %888
    %v891 = vadd.f32 %v880, %v889
    %v892 = vadd.f32 %v883, %v889
    %v895 = vlaneseq
    %v896 = vand.u32 %v895, 127
    %v897 = vperm.slane %v891, %v896
    %v898 = vperm.slane %v892, %v896
    %vm901 = vcmask 57344
    %902 = vst.msk [vmem:[#allocation4] sm:$0x1] %vm901, %v897
    %903 = vst.msk [vmem:[#allocation4 + $0x1] sm:$0x1] %vm901, %v898
    // Predicated region
    $region66: #{lstmattn_forward.5} parent=1 // pred_check
      _
    $region67: #{lstmattn_forward.5} parent=1 // pred_check_branch
      %905 = sbr.rel (0) target = $region69
    $region68: #{lstmattn_forward.5} parent=1 // pred_region
      %907 = vsyncadd [#allocation5], 0
      %s908 = sshll.u32 [#allocation4], 4
      %s909 = int_to_ptr.vmem [resolvable:$true] %s908
      %s910 = sshll.u32 %s16, 4
      %s911 = int_to_ptr.hbm [resolvable:$true] %s910
      %916 = dma.vmem_to_hbm [thread:$0]  %s909, 32, %s911, [#allocation5], 16, 16, 1
    $region69: #{lstmattn_forward.5} parent=1 // pred_fallthru
      _
    // Predicated region
    $region70: #{lstmattn_forward.5} parent=1 // pred_check
      _
    $region71: #{lstmattn_forward.5} parent=1 // pred_check_branch
      %918 = sbr.rel (0) target = $region73
    $region72: #{lstmattn_forward.5} parent=1 // pred_region
      %920 = dma.done [#allocation5], 32
    $region73: #{lstmattn_forward.5} parent=1 // pred_fallthru
      _
    %921 = vsyncpa [#allocation5], 1

// kernel: lstmattn_forward.4
$region0: #{lstmattn_forward.4}
  #allocation0 [shape = 'u32[]', space=smem, size = 0x4, offset = 0x4, fixed_abs, tag = 'smem constant byte address 0x4 - core index']
  #allocation1 [shape = 'u32[72,128]{1,0:T(1,128)}', space=vmem, size = 0x9000, scoped, tag = 'internal scratch']
  #allocation2 [shape = 'f32[2,2,32]{2,1,0:T(2,128)}', space=vmem, size = 0x800, scoped, tag = 'scratch operand']
  #allocation3 [shape = 'f32[2,2,32]{2,1,0:T(2,128)}', space=vmem, size = 0x800, scoped, tag = 'scratch operand']
  %s0 = inlined_call_operand.vmem [shape: bf16[2,8,128], index: 0, kind: input, shape index: {}]
  %s1 = inlined_call_operand.vmem [shape: bf16[32,128], index: 1, kind: input, shape index: {}]
  %s2 = inlined_call_operand.vmem [shape: bf16[1,64,128], index: 2, kind: input, shape index: {}]
  %s3 = inlined_call_operand.vmem [shape: f32[1,1,128], index: 3, kind: input, shape index: {}]
  %s4 = inlined_call_operand.vmem [shape: f32[2,8,32], index: 4, kind: output, shape index: {}]
  %s5 = sld [smem:[#allocation0]]
  $region30: #{lstmattn_forward.4} parent=0
    _
  %s7 = ssub.s32 1, %s5
  %s8 = scalar_select 0, %s7, %s5
  // Predicated region
  $region2: #{lstmattn_forward.4} parent=0 // pred_check
    _
  $region3: #{lstmattn_forward.4} parent=0 // pred_check_branch
    %10 = sbr.rel (0) target = $region5
  $region4: #{lstmattn_forward.4} parent=0 // pred_region
    _
  $region5: #{lstmattn_forward.4} parent=0 // pred_fallthru
    _
  // Predicated region
  $region6: #{lstmattn_forward.4} parent=0 // pred_check
    _
  $region7: #{lstmattn_forward.4} parent=0 // pred_check_branch
    %12 = sbr.rel (0) target = $region9
  $region8: #{lstmattn_forward.4} parent=0 // pred_region
    _
  $region9: #{lstmattn_forward.4} parent=0 // pred_fallthru
    _
  // Predicated region
  $region10: #{lstmattn_forward.4} parent=0 // pred_check
    _
  $region11: #{lstmattn_forward.4} parent=0 // pred_check_branch
    %14 = sbr.rel (0) target = $region13
  $region12: #{lstmattn_forward.4} parent=0 // pred_region
    _
  $region13: #{lstmattn_forward.4} parent=0 // pred_fallthru
    _
  // Predicated region
  $region14: #{lstmattn_forward.4} parent=0 // pred_check
    _
  $region15: #{lstmattn_forward.4} parent=0 // pred_check_branch
    %16 = sbr.rel (0) target = $region17
  $region16: #{lstmattn_forward.4} parent=0 // pred_region
    _
  $region17: #{lstmattn_forward.4} parent=0 // pred_fallthru
    _
  %p18 = scmp.eq.s32.totalorder 0, 0
  // Predicated region
  $region18: #{lstmattn_forward.4} parent=0 // pred_check
    %p19 = pneg %p18
  $region19: #{lstmattn_forward.4} parent=0 // pred_check_branch
    %21 = sbr.rel (%p19) target = $region21
  $region20: #{lstmattn_forward.4} parent=0 // pred_region
    %vm22 = vcmask 254976
    %23 = vst.msk [vmem:[#allocation2] sm:$0x3] %vm22, 0.0
    %24 = vst.msk [vmem:[#allocation2 + $0x2] sm:$0x3] %vm22, 0.0
    %25 = vst.msk [vmem:[#allocation3] sm:$0x3] %vm22, 0.0
    %26 = vst.msk [vmem:[#allocation3 + $0x2] sm:$0x3] %vm22, 0.0
  $region21: #{lstmattn_forward.4} parent=0 // pred_fallthru
    _
  %v27 = vld [vmem:[%s1] sm:$0xf]
  %v28 = vld [vmem:[%s1 + $0x4] sm:$0xf]
  %v29 = vld [vmem:[%s1 + $0x8] sm:$0xf]
  %v30 = vld [vmem:[%s1 + $0xc] sm:$0xf]
  %v31 = vld [vmem:[%s2] sm:$0xf]
  %v32 = vld [vmem:[%s2 + $0x4] sm:$0xf]
  %v33 = vld [vmem:[%s2 + $0x8] sm:$0xf]
  %v34 = vld [vmem:[%s2 + $0xc] sm:$0xf]
  %v35 = vld [vmem:[%s2 + $0x10] sm:$0xf]
  %v36 = vld [vmem:[%s2 + $0x14] sm:$0xf]
  %v37 = vld [vmem:[%s2 + $0x18] sm:$0xf]
  %v38 = vld [vmem:[%s2 + $0x1c] sm:$0xf]
  %v39 = vld [vmem:[%s3] sm:$0x1]
  %v40 = vld [vmem:[%s0] sm:$0x1]
  %v41 = vld [vmem:[%s0 + $0x4] sm:$0x1]
  %v42 = vunpack.c.l.bf16 %v40
  %v43 = vunpack.c.l.bf16 %v41
  %v44 = vld [vmem:[#allocation2] sm:$0x3]
  %v45 = vld [vmem:[#allocation3] sm:$0x3]
  %v46 = vpack.c.bf16 %v44, %v44
  %v51 = vunpack.c.l.b16 %v27
  %v52 = vunpack.c.l.b16 %v28
  %v53 = vunpack.c.l.b16 %v29
  %v54 = vunpack.c.l.b16 %v30
  %v55 = vpack.c.b16 %v52, %v51
  %v56 = vpack.c.b16 %v54, %v53
  %vm59 = vcmask 261120
  %v61 = vsel %vm59, %v46, 0
  %63 = vmatpush.bf16.msra.mxu0 0
  %64 = vmatpush.bf16.msra.mxu0 0
  %65 = vmatpush.bf16.msra.mxu0 0
  %66 = vmatpush.bf16.msra.mxu0 0
  %67 = vmatpush.bf16.msra.mxu0 0
  %68 = vmatpush.bf16.msra.mxu0 0
  %69 = vmatpush.bf16.msra.mxu0 %v56
  %70 = vmatpush.bf16.msra.mxu0 %v55
  %71 = vmatmul.bf16.gmra.mxu0 %v61
  %v72 = vpop.f32.mrf.mxu0
  %v73 = vadd.f32 0.0, %v72
  %v74 = vpop.f32.mrf.mxu0
  %75 = vdwg.mxu0
  %v77 = vrot.slane %v73, 1
  %v80 = vadd.f32 %v42, %v73
  %v81 = vadd.f32 %v43, %v77
  %v82 = vxor.u32 %v80, 2147483648
  %v83 = vxor.u32 %v81, 2147483648
  %v84 = vmul.f32 %v82, 1.442695
  %v85 = vpow.pop %v84
  %v86 = vmul.f32 %v83, 1.442695
  %v87 = vpow.pop %v86
  %v88 = vadd.f32 %v85, 1.0
  %v89 = vadd.f32 %v87, 1.0
  %v90 = vrcp.pop %v88
  %v91 = vmul.f32 %v88, %v90
  %v92 = vsub.f32 1.0, %v91
  %v93 = vmul.f32 %v90, %v92
  %v94 = vadd.f32 %v90, %v93
  %vm95 = vweird.f32 %v88
  %vm96 = vweird.f32 %v90
  %vm97 = vmor %vm95, %vm96
  %v98 = vsel %vm97, %v90, %v94
  %v99 = vand.u32 2147483647, %v88
  %vm100 = vcmp.eq.f32.partialorder %v99, 8.507059e+37
  %v101 = vand.u32 %v88, 2147483648
  %v102 = vor.u32 1.1754944e-38, %v101
  %v103 = vsel %vm100, %v102, %v98
  %v104 = vmul.f32 1.0, %v103
  %v105 = vrcp.pop %v89
  %v106 = vmul.f32 %v89, %v105
  %v107 = vsub.f32 1.0, %v106
  %v108 = vmul.f32 %v105, %v107
  %v109 = vadd.f32 %v105, %v108
  %vm110 = vweird.f32 %v89
  %vm111 = vweird.f32 %v105
  %vm112 = vmor %vm110, %vm111
  %v113 = vsel %vm112, %v105, %v109
  %v114 = vand.u32 2147483647, %v89
  %vm115 = vcmp.eq.f32.partialorder %v114, 8.507059e+37
  %v116 = vand.u32 %v89, 2147483648
  %v117 = vor.u32 1.1754944e-38, %v116
  %v118 = vsel %vm115, %v117, %v113
  %v119 = vmul.f32 1.0, %v118
  %v120 = vtanh.pop %v80
  %v121 = vtanh.pop %v81
  %v123 = vrot.slane %v45, 1
  %124 = vrot.lane.b32.xlu0 %v45, 32
  %v125 = vpop.permute.xlu0 %124
  %126 = vrot.lane.b32.xlu0 %v123, 32
  %v127 = vpop.permute.xlu0 %126
  %v130 = vmul.f32 %v104, %v125
  %v131 = vmul.f32 %v119, %v127
  %134 = vrot.lane.b32.xlu0 %v120, 64
  %v135 = vpop.permute.xlu0 %134
  %136 = vrot.lane.b32.xlu0 %v121, 64
  %v137 = vpop.permute.xlu0 %136
  %v140 = vmul.f32 %v104, %v135
  %v141 = vmul.f32 %v119, %v137
  %144 = vrot.lane.b32.xlu0 %v140, 32
  %v145 = vpop.permute.xlu0 %144
  %146 = vrot.lane.b32.xlu0 %v141, 32
  %v147 = vpop.permute.xlu0 %146
  %v150 = vadd.f32 %v130, %v145
  %v151 = vadd.f32 %v131, %v147
  %v152 = vtanh.pop %v150
  %v153 = vtanh.pop %v151
  %156 = vrot.lane.b32.xlu0 %v152, 64
  %v157 = vpop.permute.xlu0 %156
  %158 = vrot.lane.b32.xlu0 %v153, 64
  %v159 = vpop.permute.xlu0 %158
  %v162 = vmul.f32 %v104, %v157
  %v163 = vmul.f32 %v119, %v159
  %v166 = vrot.slane %v163, 7
  %vm167 = vcmask 1041409
  %v168 = vsel %vm167, %v166, %v162
  %169 = vrot.lane.b32.xlu0 %v168, 32
  %v170 = vpop.permute.xlu0 %169
  %vm172 = vcmask 254976
  %173 = vst.msk [vmem:[#allocation2] sm:$0x3] %vm172, %v170
  %v176 = vrot.slane %v151, 7
  %v177 = vsel %vm167, %v176, %v150
  %178 = vrot.lane.b32.xlu0 %v177, 96
  %v179 = vpop.permute.xlu0 %178
  %181 = vst.msk [vmem:[#allocation3] sm:$0x3] %vm172, %v179
  %s182 = scalar_lea.vmem [#allocation2], 2
  %v183 = vld [vmem:[%s182] sm:$0x3]
  %s184 = scalar_lea.vmem [#allocation3], 2
  %v185 = vld [vmem:[%s184] sm:$0x3]
  %187 = vrot.lane.b32.xlu0 %v183, 32
  %v188 = vpop.permute.xlu0 %187
  %v190 = vsel %vm59, %v170, %v188
  %v191 = vpack.c.bf16 %v190, %v190
  %v193 = vperm.slane %v39, 0
  %v203 = vunpack.c.l.b16 %v31
  %v204 = vunpack.c.l.b16 %v32
  %v205 = vunpack.c.l.b16 %v33
  %v206 = vunpack.c.l.b16 %v34
  %v207 = vunpack.c.l.b16 %v35
  %v208 = vunpack.c.l.b16 %v36
  %v209 = vunpack.c.l.b16 %v37
  %v210 = vunpack.c.l.b16 %v38
  %v211 = vpack.c.b16 %v204, %v203
  %v212 = vpack.c.b16 %v206, %v205
  %v213 = vpack.c.b16 %v208, %v207
  %v214 = vpack.c.b16 %v210, %v209
  %vm219 = vcmask 523264
  %v221 = vsel %vm219, %v191, 0
  %223 = vmatpush.bf16.msra.mxu0 0
  %224 = vmatpush.bf16.msra.mxu0 0
  %225 = vmatpush.bf16.msra.mxu0 0
  %226 = vmatpush.bf16.msra.mxu0 0
  %227 = vmatpush.bf16.msra.mxu0 %v214
  %228 = vmatpush.bf16.msra.mxu0 %v213
  %229 = vmatpush.bf16.msra.mxu0 %v212
  %230 = vmatpush.bf16.msra.mxu0 %v211
  %231 = vmatmul.bf16.gmra.mxu0 %v221
  %v232 = vpop.f32.mrf.mxu0
  %v233 = vadd.f32 %v193, %v232
  %v234 = vpop.f32.mrf.mxu0
  %235 = vdwg.mxu0
  %v236 = vxor.u32 %v233, 2147483648
  %v237 = vmul.f32 %v236, 1.442695
  %v238 = vpow.pop %v237
  %v239 = vadd.f32 %v238, 1.0
  %v240 = vrcp.pop %v239
  %v241 = vmul.f32 %v239, %v240
  %v242 = vsub.f32 1.0, %v241
  %v243 = vmul.f32 %v240, %v242
  %v244 = vadd.f32 %v240, %v243
  %vm245 = vweird.f32 %v239
  %vm246 = vweird.f32 %v240
  %vm247 = vmor %vm245, %vm246
  %v248 = vsel %vm247, %v240, %v244
  %v249 = vand.u32 2147483647, %v239
  %vm250 = vcmp.eq.f32.partialorder %v249, 8.507059e+37
  %v251 = vand.u32 %v239, 2147483648
  %v252 = vor.u32 1.1754944e-38, %v251
  %v253 = vsel %vm250, %v252, %v248
  %v254 = vmul.f32 1.0, %v253
  %v255 = vtanh.pop %v233
  %257 = vrot.lane.b32.xlu0 %v185, 32
  %v258 = vpop.permute.xlu0 %257
  %v260 = vmul.f32 %v254, %v258
  %262 = vrot.lane.b32.xlu0 %v255, 64
  %v263 = vpop.permute.xlu0 %262
  %v265 = vmul.f32 %v254, %v263
  %267 = vrot.lane.b32.xlu0 %v265, 32
  %v268 = vpop.permute.xlu0 %267
  %v270 = vadd.f32 %v260, %v268
  %v271 = vtanh.pop %v270
  %273 = vrot.lane.b32.xlu0 %v271, 64
  %v274 = vpop.permute.xlu0 %273
  %v276 = vmul.f32 %v254, %v274
  %278 = vrot.lane.b32.xlu0 %v276, 32
  %v279 = vpop.permute.xlu0 %278
  %281 = vst.msk [vmem:[%s182] sm:$0x3] %vm172, %v279
  %283 = vrot.lane.b32.xlu0 %v270, 96
  %v284 = vpop.permute.xlu0 %283
  %286 = vst.msk [vmem:[%s184] sm:$0x3] %vm172, %v284
  %v287 = vrot.slane %v276, 1
  %v288 = vperm.slane %v276, 0
  %v289 = vperm.slane %v287, 0
  %290 = vrot.lane.b32.xlu0 %v288, 32
  %v291 = vpop.permute.xlu0 %290
  %292 = vrot.lane.b32.xlu0 %v289, 32
  %v293 = vpop.permute.xlu0 %292
  %vm296 = vcmask 253952
  %297 = vst.msk [vmem:[%s4] sm:$0x1] %vm296, %v291
  %298 = vst.msk [vmem:[%s4 + $0x8] sm:$0x1] %vm296, %v293
  %v299 = vld [vmem:[%s0] sm:$0x1]
  %v300 = vld [vmem:[%s0 + $0x4] sm:$0x1]
  %v301 = vunpack.c.l.bf16 %v299
  %v302 = vunpack.c.l.bf16 %v300
  %v303 = vld [vmem:[#allocation2] sm:$0x3]
  %v304 = vld [vmem:[#allocation3] sm:$0x3]
  %v305 = vpack.c.bf16 %v303, %v303
  %v307 = vsel %vm59, %v305, 0
  %309 = vmatpush.bf16.msra.mxu0 0
  %310 = vmatpush.bf16.msra.mxu0 0
  %311 = vmatpush.bf16.msra.mxu0 0
  %312 = vmatpush.bf16.msra.mxu0 0
  %313 = vmatpush.bf16.msra.mxu0 0
  %314 = vmatpush.bf16.msra.mxu0 0
  %315 = vmatpush.bf16.msra.mxu0 %v56
  %316 = vmatpush.bf16.msra.mxu0 %v55
  %317 = vmatmul.bf16.gmra.mxu0 %v307
  %v318 = vpop.f32.mrf.mxu0
  %v319 = vadd.f32 0.0, %v318
  %v320 = vpop.f32.mrf.mxu0
  %321 = vdwg.mxu0
  %v323 = vrot.slane %v319, 7
  %v326 = vadd.f32 %v301, %v323
  %v327 = vadd.f32 %v302, %v319
  %v328 = vxor.u32 %v326, 2147483648
  %v329 = vxor.u32 %v327, 2147483648
  %v330 = vmul.f32 %v328, 1.442695
  %v331 = vpow.pop %v330
  %v332 = vmul.f32 %v329, 1.442695
  %v333 = vpow.pop %v332
  %v334 = vadd.f32 %v331, 1.0
  %v335 = vadd.f32 %v333, 1.0
  %v336 = vrcp.pop %v334
  %v337 = vmul.f32 %v334, %v336
  %v338 = vsub.f32 1.0, %v337
  %v339 = vmul.f32 %v336, %v338
  %v340 = vadd.f32 %v336, %v339
  %vm341 = vweird.f32 %v334
  %vm342 = vweird.f32 %v336
  %vm343 = vmor %vm341, %vm342
  %v344 = vsel %vm343, %v336, %v340
  %v345 = vand.u32 2147483647, %v334
  %vm346 = vcmp.eq.f32.partialorder %v345, 8.507059e+37
  %v347 = vand.u32 %v334, 2147483648
  %v348 = vor.u32 1.1754944e-38, %v347
  %v349 = vsel %vm346, %v348, %v344
  %v350 = vmul.f32 1.0, %v349
  %v351 = vrcp.pop %v335
  %v352 = vmul.f32 %v335, %v351
  %v353 = vsub.f32 1.0, %v352
  %v354 = vmul.f32 %v351, %v353
  %v355 = vadd.f32 %v351, %v354
  %vm356 = vweird.f32 %v335
  %vm357 = vweird.f32 %v351
  %vm358 = vmor %vm356, %vm357
  %v359 = vsel %vm358, %v351, %v355
  %v360 = vand.u32 2147483647, %v335
  %vm361 = vcmp.eq.f32.partialorder %v360, 8.507059e+37
  %v362 = vand.u32 %v335, 2147483648
  %v363 = vor.u32 1.1754944e-38, %v362
  %v364 = vsel %vm361, %v363, %v359
  %v365 = vmul.f32 1.0, %v364
  %v366 = vtanh.pop %v326
  %v367 = vtanh.pop %v327
  %v369 = vrot.slane %v304, 7
  %370 = vrot.lane.b32.xlu0 %v369, 32
  %v371 = vpop.permute.xlu0 %370
  %372 = vrot.lane.b32.xlu0 %v304, 32
  %v373 = vpop.permute.xlu0 %372
  %v376 = vmul.f32 %v350, %v371
  %v377 = vmul.f32 %v365, %v373
  %380 = vrot.lane.b32.xlu0 %v366, 64
  %v381 = vpop.permute.xlu0 %380
  %382 = vrot.lane.b32.xlu0 %v367, 64
  %v383 = vpop.permute.xlu0 %382
  %v386 = vmul.f32 %v350, %v381
  %v387 = vmul.f32 %v365, %v383
  %390 = vrot.lane.b32.xlu0 %v386, 32
  %v391 = vpop.permute.xlu0 %390
  %392 = vrot.lane.b32.xlu0 %v387, 32
  %v393 = vpop.permute.xlu0 %392
  %v396 = vadd.f32 %v376, %v391
  %v397 = vadd.f32 %v377, %v393
  %v398 = vtanh.pop %v396
  %v399 = vtanh.pop %v397
  %402 = vrot.lane.b32.xlu0 %v398, 64
  %v403 = vpop.permute.xlu0 %402
  %404 = vrot.lane.b32.xlu0 %v399, 64
  %v405 = vpop.permute.xlu0 %404
  %v408 = vmul.f32 %v350, %v403
  %v409 = vmul.f32 %v365, %v405
  %v412 = vrot.slane %v409, 7
  %vm413 = vcmask 1042434
  %v414 = vsel %vm413, %v412, %v408
  %415 = vrot.lane.b32.xlu0 %v414, 32
  %v416 = vpop.permute.xlu0 %415
  %vm418 = vcmask 256001
  %419 = vst.msk [vmem:[#allocation2 - $0x1] sm:$0x6] %vm418, %v416
  %v422 = vrot.slane %v397, 7
  %v423 = vsel %vm413, %v422, %v396
  %424 = vrot.lane.b32.xlu0 %v423, 96
  %v425 = vpop.permute.xlu0 %424
  %427 = vst.msk [vmem:[#allocation3 - $0x1] sm:$0x6] %vm418, %v425
  %v428 = vld [vmem:[%s182] sm:$0x3]
  %v429 = vld [vmem:[%s184] sm:$0x3]
  %v431 = vrot.slane %v428, 7
  %432 = vrot.lane.b32.xlu0 %v431, 32
  %v433 = vpop.permute.xlu0 %432
  %v435 = vsel %vm59, %v416, %v433
  %v436 = vpack.c.bf16 %v435, %v435
  %v438 = vshrl.u32 %v436, 16
  %v440 = vshll.u32 %v436, 16
  %v442 = vrot.slane %v440, 1
  %v443 = vor.u32 %v438, %v442
  %v445 = vsel %vm219, %v443, 0
  %447 = vmatpush.bf16.msra.mxu0 0
  %448 = vmatpush.bf16.msra.mxu0 0
  %449 = vmatpush.bf16.msra.mxu0 0
  %450 = vmatpush.bf16.msra.mxu0 0
  %451 = vmatpush.bf16.msra.mxu0 %v214
  %452 = vmatpush.bf16.msra.mxu0 %v213
  %453 = vmatpush.bf16.msra.mxu0 %v212
  %454 = vmatpush.bf16.msra.mxu0 %v211
  %455 = vmatmul.bf16.gmra.mxu0 %v445
  %v456 = vpop.f32.mrf.mxu0
  %v457 = vadd.f32 %v193, %v456
  %v458 = vpop.f32.mrf.mxu0
  %459 = vdwg.mxu0
  %v460 = vxor.u32 %v457, 2147483648
  %v461 = vmul.f32 %v460, 1.442695
  %v462 = vpow.pop %v461
  %v463 = vadd.f32 %v462, 1.0
  %v464 = vrcp.pop %v463
  %v465 = vmul.f32 %v463, %v464
  %v466 = vsub.f32 1.0, %v465
  %v467 = vmul.f32 %v464, %v466
  %v468 = vadd.f32 %v464, %v467
  %vm469 = vweird.f32 %v463
  %vm470 = vweird.f32 %v464
  %vm471 = vmor %vm469, %vm470
  %v472 = vsel %vm471, %v464, %v468
  %v473 = vand.u32 2147483647, %v463
  %vm474 = vcmp.eq.f32.partialorder %v473, 8.507059e+37
  %v475 = vand.u32 %v463, 2147483648
  %v476 = vor.u32 1.1754944e-38, %v475
  %v477 = vsel %vm474, %v476, %v472
  %v478 = vmul.f32 1.0, %v477
  %v479 = vtanh.pop %v457
  %481 = vrot.lane.b32.xlu0 %v429, 32
  %v482 = vpop.permute.xlu0 %481
  %v484 = vmul.f32 %v478, %v482
  %486 = vrot.lane.b32.xlu0 %v479, 64
  %v487 = vpop.permute.xlu0 %486
  %v489 = vmul.f32 %v478, %v487
  %491 = vrot.lane.b32.xlu0 %v489, 32
  %v492 = vpop.permute.xlu0 %491
  %v494 = vadd.f32 %v484, %v492
  %v495 = vtanh.pop %v494
  %497 = vrot.lane.b32.xlu0 %v495, 64
  %v498 = vpop.permute.xlu0 %497
  %v500 = vmul.f32 %v478, %v498
  %502 = vrot.lane.b32.xlu0 %v500, 32
  %v503 = vpop.permute.xlu0 %502
  %505 = vst.msk [vmem:[%s182] sm:$0x3] %vm172, %v503
  %507 = vrot.lane.b32.xlu0 %v494, 96
  %v508 = vpop.permute.xlu0 %507
  %510 = vst.msk [vmem:[%s184] sm:$0x3] %vm172, %v508
  %v511 = vrot.slane %v500, 1
  %v512 = vperm.slane %v500, 0
  %v513 = vperm.slane %v511, 0
  %514 = vrot.lane.b32.xlu0 %v512, 32
  %v515 = vpop.permute.xlu0 %514
  %516 = vrot.lane.b32.xlu0 %v513, 32
  %v517 = vpop.permute.xlu0 %516
  %520 = vst.msk [vmem:[%s4 + $0x1] sm:$0x1] %vm296, %v515
  %521 = vst.msk [vmem:[%s4 + $0x9] sm:$0x1] %vm296, %v517
  %v522 = vld [vmem:[%s0] sm:$0x2]
  %v523 = vld [vmem:[%s0 + $0x4] sm:$0x2]
  %v524 = vunpack.c.l.bf16 %v522
  %v525 = vunpack.c.l.bf16 %v523
  %v526 = vld [vmem:[#allocation2] sm:$0x3]
  %v527 = vld [vmem:[#allocation3] sm:$0x3]
  %v528 = vpack.c.bf16 %v526, %v526
  %v530 = vsel %vm59, %v528, 0
  %532 = vmatpush.bf16.msra.mxu0 0
  %533 = vmatpush.bf16.msra.mxu0 0
  %534 = vmatpush.bf16.msra.mxu0 0
  %535 = vmatpush.bf16.msra.mxu0 0
  %536 = vmatpush.bf16.msra.mxu0 0
  %537 = vmatpush.bf16.msra.mxu0 0
  %538 = vmatpush.bf16.msra.mxu0 %v56
  %539 = vmatpush.bf16.msra.mxu0 %v55
  %540 = vmatmul.bf16.gmra.mxu0 %v530
  %v541 = vpop.f32.mrf.mxu0
  %v542 = vadd.f32 0.0, %v541
  %v543 = vpop.f32.mrf.mxu0
  %544 = vdwg.mxu0
  %v546 = vrot.slane %v542, 6
  %v547 = vrot.slane %v542, 7
  %v550 = vadd.f32 %v524, %v546
  %v551 = vadd.f32 %v525, %v547
  %v552 = vxor.u32 %v550, 2147483648
  %v553 = vxor.u32 %v551, 2147483648
  %v554 = vmul.f32 %v552, 1.442695
  %v555 = vpow.pop %v554
  %v556 = vmul.f32 %v553, 1.442695
  %v557 = vpow.pop %v556
  %v558 = vadd.f32 %v555, 1.0
  %v559 = vadd.f32 %v557, 1.0
  %v560 = vrcp.pop %v558
  %v561 = vmul.f32 %v558, %v560
  %v562 = vsub.f32 1.0, %v561
  %v563 = vmul.f32 %v560, %v562
  %v564 = vadd.f32 %v560, %v563
  %vm565 = vweird.f32 %v558
  %vm566 = vweird.f32 %v560
  %vm567 = vmor %vm565, %vm566
  %v568 = vsel %vm567, %v560, %v564
  %v569 = vand.u32 2147483647, %v558
  %vm570 = vcmp.eq.f32.partialorder %v569, 8.507059e+37
  %v571 = vand.u32 %v558, 2147483648
  %v572 = vor.u32 1.1754944e-38, %v571
  %v573 = vsel %vm570, %v572, %v568
  %v574 = vmul.f32 1.0, %v573
  %v575 = vrcp.pop %v559
  %v576 = vmul.f32 %v559, %v575
  %v577 = vsub.f32 1.0, %v576
  %v578 = vmul.f32 %v575, %v577
  %v579 = vadd.f32 %v575, %v578
  %vm580 = vweird.f32 %v559
  %vm581 = vweird.f32 %v575
  %vm582 = vmor %vm580, %vm581
  %v583 = vsel %vm582, %v575, %v579
  %v584 = vand.u32 2147483647, %v559
  %vm585 = vcmp.eq.f32.partialorder %v584, 8.507059e+37
  %v586 = vand.u32 %v559, 2147483648
  %v587 = vor.u32 1.1754944e-38, %v586
  %v588 = vsel %vm585, %v587, %v583
  %v589 = vmul.f32 1.0, %v588
  %v590 = vtanh.pop %v550
  %v591 = vtanh.pop %v551
  %v593 = vrot.slane %v527, 6
  %v594 = vrot.slane %v527, 7
  %595 = vrot.lane.b32.xlu0 %v593, 32
  %v596 = vpop.permute.xlu0 %595
  %597 = vrot.lane.b32.xlu0 %v594, 32
  %v598 = vpop.permute.xlu0 %597
  %v601 = vmul.f32 %v574, %v596
  %v602 = vmul.f32 %v589, %v598
  %605 = vrot.lane.b32.xlu0 %v590, 64
  %v606 = vpop.permute.xlu0 %605
  %607 = vrot.lane.b32.xlu0 %v591, 64
  %v608 = vpop.permute.xlu0 %607
  %v611 = vmul.f32 %v574, %v606
  %v612 = vmul.f32 %v589, %v608
  %615 = vrot.lane.b32.xlu0 %v611, 32
  %v616 = vpop.permute.xlu0 %615
  %617 = vrot.lane.b32.xlu0 %v612, 32
  %v618 = vpop.permute.xlu0 %617
  %v621 = vadd.f32 %v601, %v616
  %v622 = vadd.f32 %v602, %v618
  %v623 = vtanh.pop %v621
  %v624 = vtanh.pop %v622
  %627 = vrot.lane.b32.xlu0 %v623, 64
  %v628 = vpop.permute.xlu0 %627
  %629 = vrot.lane.b32.xlu0 %v624, 64
  %v630 = vpop.permute.xlu0 %629
  %v633 = vmul.f32 %v574, %v628
  %v634 = vmul.f32 %v589, %v630
  %v637 = vrot.slane %v634, 7
  %vm638 = vcmask 1043459
  %v639 = vsel %vm638, %v637, %v633
  %640 = vrot.lane.b32.xlu0 %v639, 32
  %v641 = vpop.permute.xlu0 %640
  %vm643 = vcmask 257026
  %644 = vst.msk [vmem:[#allocation2 - $0x2] sm:$0xc] %vm643, %v641
  %v647 = vrot.slane %v622, 7
  %v648 = vsel %vm638, %v647, %v621
  %649 = vrot.lane.b32.xlu0 %v648, 96
  %v650 = vpop.permute.xlu0 %649
  %652 = vst.msk [vmem:[#allocation3 - $0x2] sm:$0xc] %vm643, %v650
  %v653 = vld [vmem:[%s182] sm:$0x3]
  %v654 = vld [vmem:[%s184] sm:$0x3]
  %v656 = vrot.slane %v653, 6
  %657 = vrot.lane.b32.xlu0 %v656, 32
  %v658 = vpop.permute.xlu0 %657
  %v660 = vsel %vm59, %v641, %v658
  %v661 = vpack.c.bf16 %v660, %v660
  %v663 = vrot.slane %v661, 1
  %v665 = vsel %vm219, %v663, 0
  %667 = vmatpush.bf16.msra.mxu0 0
  %668 = vmatpush.bf16.msra.mxu0 0
  %669 = vmatpush.bf16.msra.mxu0 0
  %670 = vmatpush.bf16.msra.mxu0 0
  %671 = vmatpush.bf16.msra.mxu0 %v214
  %672 = vmatpush.bf16.msra.mxu0 %v213
  %673 = vmatpush.bf16.msra.mxu0 %v212
  %674 = vmatpush.bf16.msra.mxu0 %v211
  %675 = vmatmul.bf16.gmra.mxu0 %v665
  %v676 = vpop.f32.mrf.mxu0
  %v677 = vadd.f32 %v193, %v676
  %v678 = vpop.f32.mrf.mxu0
  %679 = vdwg.mxu0
  %v680 = vxor.u32 %v677, 2147483648
  %v681 = vmul.f32 %v680, 1.442695
  %v682 = vpow.pop %v681
  %v683 = vadd.f32 %v682, 1.0
  %v684 = vrcp.pop %v683
  %v685 = vmul.f32 %v683, %v684
  %v686 = vsub.f32 1.0, %v685
  %v687 = vmul.f32 %v684, %v686
  %v688 = vadd.f32 %v684, %v687
  %vm689 = vweird.f32 %v683
  %vm690 = vweird.f32 %v684
  %vm691 = vmor %vm689, %vm690
  %v692 = vsel %vm691, %v684, %v688
  %v693 = vand.u32 2147483647, %v683
  %vm694 = vcmp.eq.f32.partialorder %v693, 8.507059e+37
  %v695 = vand.u32 %v683, 2147483648
  %v696 = vor.u32 1.1754944e-38, %v695
  %v697 = vsel %vm694, %v696, %v692
  %v698 = vmul.f32 1.0, %v697
  %v699 = vtanh.pop %v677
  %701 = vrot.lane.b32.xlu0 %v654, 32
  %v702 = vpop.permute.xlu0 %701
  %v704 = vmul.f32 %v698, %v702
  %706 = vrot.lane.b32.xlu0 %v699, 64
  %v707 = vpop.permute.xlu0 %706
  %v709 = vmul.f32 %v698, %v707
  %711 = vrot.lane.b32.xlu0 %v709, 32
  %v712 = vpop.permute.xlu0 %711
  %v714 = vadd.f32 %v704, %v712
  %v715 = vtanh.pop %v714
  %717 = vrot.lane.b32.xlu0 %v715, 64
  %v718 = vpop.permute.xlu0 %717
  %v720 = vmul.f32 %v698, %v718
  %722 = vrot.lane.b32.xlu0 %v720, 32
  %v723 = vpop.permute.xlu0 %722
  %725 = vst.msk [vmem:[%s182] sm:$0x3] %vm172, %v723
  %727 = vrot.lane.b32.xlu0 %v714, 96
  %v728 = vpop.permute.xlu0 %727
  %730 = vst.msk [vmem:[%s184] sm:$0x3] %vm172, %v728
  %v731 = vrot.slane %v720, 1
  %v732 = vperm.slane %v720, 0
  %v733 = vperm.slane %v731, 0
  %734 = vrot.lane.b32.xlu0 %v732, 32
  %v735 = vpop.permute.xlu0 %734
  %736 = vrot.lane.b32.xlu0 %v733, 32
  %v737 = vpop.permute.xlu0 %736
  %740 = vst.msk [vmem:[%s4 + $0x2] sm:$0x1] %vm296, %v735
  %741 = vst.msk [vmem:[%s4 + $0xa] sm:$0x1] %vm296, %v737
  %v742 = vld [vmem:[%s0] sm:$0x2]
  %v743 = vld [vmem:[%s0 + $0x4] sm:$0x2]
  %v744 = vunpack.c.l.bf16 %v742
  %v745 = vunpack.c.l.bf16 %v743
  %v746 = vld [vmem:[#allocation2] sm:$0x3]
  %v747 = vld [vmem:[#allocation3] sm:$0x3]
  %v748 = vpack.c.bf16 %v746, %v746
  %v750 = vsel %vm59, %v748, 0
  %752 = vmatpush.bf16.msra.mxu0 0
  %753 = vmatpush.bf16.msra.mxu0 0
  %754 = vmatpush.bf16.msra.mxu0 0
  %755 = vmatpush.bf16.msra.mxu0 0
  %756 = vmatpush.bf16.msra.mxu0 0
  %757 = vmatpush.bf16.msra.mxu0 0
  %758 = vmatpush.bf16.msra.mxu0 %v56
  %759 = vmatpush.bf16.msra.mxu0 %v55
  %760 = vmatmul.bf16.gmra.mxu0 %v750
  %v761 = vpop.f32.mrf.mxu0
  %v762 = vadd.f32 0.0, %v761
  %v763 = vpop.f32.mrf.mxu0
  %764 = vdwg.mxu0
  %v766 = vrot.slane %v762, 5
  %v767 = vrot.slane %v762, 6
  %v770 = vadd.f32 %v744, %v766
  %v771 = vadd.f32 %v745, %v767
  %v772 = vxor.u32 %v770, 2147483648
  %v773 = vxor.u32 %v771, 2147483648
  %v774 = vmul.f32 %v772, 1.442695
  %v775 = vpow.pop %v774
  %v776 = vmul.f32 %v773, 1.442695
  %v777 = vpow.pop %v776
  %v778 = vadd.f32 %v775, 1.0
  %v779 = vadd.f32 %v777, 1.0
  %v780 = vrcp.pop %v778
  %v781 = vmul.f32 %v778, %v780
  %v782 = vsub.f32 1.0, %v781
  %v783 = vmul.f32 %v780, %v782
  %v784 = vadd.f32 %v780, %v783
  %vm785 = vweird.f32 %v778
  %vm786 = vweird.f32 %v780
  %vm787 = vmor %vm785, %vm786
  %v788 = vsel %vm787, %v780, %v784
  %v789 = vand.u32 2147483647, %v778
  %vm790 = vcmp.eq.f32.partialorder %v789, 8.507059e+37
  %v791 = vand.u32 %v778, 2147483648
  %v792 = vor.u32 1.1754944e-38, %v791
  %v793 = vsel %vm790, %v792, %v788
  %v794 = vmul.f32 1.0, %v793
  %v795 = vrcp.pop %v779
  %v796 = vmul.f32 %v779, %v795
  %v797 = vsub.f32 1.0, %v796
  %v798 = vmul.f32 %v795, %v797
  %v799 = vadd.f32 %v795, %v798
  %vm800 = vweird.f32 %v779
  %vm801 = vweird.f32 %v795
  %vm802 = vmor %vm800, %vm801
  %v803 = vsel %vm802, %v795, %v799
  %v804 = vand.u32 2147483647, %v779
  %vm805 = vcmp.eq.f32.partialorder %v804, 8.507059e+37
  %v806 = vand.u32 %v779, 2147483648
  %v807 = vor.u32 1.1754944e-38, %v806
  %v808 = vsel %vm805, %v807, %v803
  %v809 = vmul.f32 1.0, %v808
  %v810 = vtanh.pop %v770
  %v811 = vtanh.pop %v771
  %v813 = vrot.slane %v747, 5
  %v814 = vrot.slane %v747, 6
  %815 = vrot.lane.b32.xlu0 %v813, 32
  %v816 = vpop.permute.xlu0 %815
  %817 = vrot.lane.b32.xlu0 %v814, 32
  %v818 = vpop.permute.xlu0 %817
  %v821 = vmul.f32 %v794, %v816
  %v822 = vmul.f32 %v809, %v818
  %825 = vrot.lane.b32.xlu0 %v810, 64
  %v826 = vpop.permute.xlu0 %825
  %827 = vrot.lane.b32.xlu0 %v811, 64
  %v828 = vpop.permute.xlu0 %827
  %v831 = vmul.f32 %v794, %v826
  %v832 = vmul.f32 %v809, %v828
  %835 = vrot.lane.b32.xlu0 %v831, 32
  %v836 = vpop.permute.xlu0 %835
  %837 = vrot.lane.b32.xlu0 %v832, 32
  %v838 = vpop.permute.xlu0 %837
  %v841 = vadd.f32 %v821, %v836
  %v842 = vadd.f32 %v822, %v838
  %v843 = vtanh.pop %v841
  %v844 = vtanh.pop %v842
  %847 = vrot.lane.b32.xlu0 %v843, 64
  %v848 = vpop.permute.xlu0 %847
  %849 = vrot.lane.b32.xlu0 %v844, 64
  %v850 = vpop.permute.xlu0 %849
  %v853 = vmul.f32 %v794, %v848
  %v854 = vmul.f32 %v809, %v850
  %v857 = vrot.slane %v854, 7
  %vm858 = vcmask 1044484
  %v859 = vsel %vm858, %v857, %v853
  %860 = vrot.lane.b32.xlu0 %v859, 32
  %v861 = vpop.permute.xlu0 %860
  %vm863 = vcmask 258051
  %864 = vst.msk [vmem:[#allocation2 - $0x3] sm:$0x18] %vm863, %v861
  %v867 = vrot.slane %v842, 7
  %v868 = vsel %vm858, %v867, %v841
  %869 = vrot.lane.b32.xlu0 %v868, 96
  %v870 = vpop.permute.xlu0 %869
  %872 = vst.msk [vmem:[#allocation3 - $0x3] sm:$0x18] %vm863, %v870
  %v873 = vld [vmem:[%s182] sm:$0x3]
  %v874 = vld [vmem:[%s184] sm:$0x3]
  %v876 = vrot.slane %v873, 5
  %877 = vrot.lane.b32.xlu0 %v876, 32
  %v878 = vpop.permute.xlu0 %877
  %v880 = vsel %vm59, %v861, %v878
  %v881 = vpack.c.bf16 %v880, %v880
  %v883 = vshrl.u32 %v881, 16
  %v885 = vrot.slane %v883, 1
  %v886 = vshll.u32 %v881, 16
  %v888 = vrot.slane %v886, 2
  %v889 = vor.u32 %v885, %v888
  %v891 = vsel %vm219, %v889, 0
  %893 = vmatpush.bf16.msra.mxu0 0
  %894 = vmatpush.bf16.msra.mxu0 0
  %895 = vmatpush.bf16.msra.mxu0 0
  %896 = vmatpush.bf16.msra.mxu0 0
  %897 = vmatpush.bf16.msra.mxu0 %v214
  %898 = vmatpush.bf16.msra.mxu0 %v213
  %899 = vmatpush.bf16.msra.mxu0 %v212
  %900 = vmatpush.bf16.msra.mxu0 %v211
  %901 = vmatmul.bf16.gmra.mxu0 %v891
  %v902 = vpop.f32.mrf.mxu0
  %v903 = vadd.f32 %v193, %v902
  %v904 = vpop.f32.mrf.mxu0
  %905 = vdwg.mxu0
  %v906 = vxor.u32 %v903, 2147483648
  %v907 = vmul.f32 %v906, 1.442695
  %v908 = vpow.pop %v907
  %v909 = vadd.f32 %v908, 1.0
  %v910 = vrcp.pop %v909
  %v911 = vmul.f32 %v909, %v910
  %v912 = vsub.f32 1.0, %v911
  %v913 = vmul.f32 %v910, %v912
  %v914 = vadd.f32 %v910, %v913
  %vm915 = vweird.f32 %v909
  %vm916 = vweird.f32 %v910
  %vm917 = vmor %vm915, %vm916
  %v918 = vsel %vm917, %v910, %v914
  %v919 = vand.u32 2147483647, %v909
  %vm920 = vcmp.eq.f32.partialorder %v919, 8.507059e+37
  %v921 = vand.u32 %v909, 2147483648
  %v922 = vor.u32 1.1754944e-38, %v921
  %v923 = vsel %vm920, %v922, %v918
  %v924 = vmul.f32 1.0, %v923
  %v925 = vtanh.pop %v903
  %927 = vrot.lane.b32.xlu0 %v874, 32
  %v928 = vpop.permute.xlu0 %927
  %v930 = vmul.f32 %v924, %v928
  %932 = vrot.lane.b32.xlu0 %v925, 64
  %v933 = vpop.permute.xlu0 %932
  %v935 = vmul.f32 %v924, %v933
  %937 = vrot.lane.b32.xlu0 %v935, 32
  %v938 = vpop.permute.xlu0 %937
  %v940 = vadd.f32 %v930, %v938
  %v941 = vtanh.pop %v940
  %943 = vrot.lane.b32.xlu0 %v941, 64
  %v944 = vpop.permute.xlu0 %943
  %v946 = vmul.f32 %v924, %v944
  %948 = vrot.lane.b32.xlu0 %v946, 32
  %v949 = vpop.permute.xlu0 %948
  %951 = vst.msk [vmem:[%s182] sm:$0x3] %vm172, %v949
  %953 = vrot.lane.b32.xlu0 %v940, 96
  %v954 = vpop.permute.xlu0 %953
  %956 = vst.msk [vmem:[%s184] sm:$0x3] %vm172, %v954
  %v957 = vrot.slane %v946, 1
  %v958 = vperm.slane %v946, 0
  %v959 = vperm.slane %v957, 0
  %960 = vrot.lane.b32.xlu0 %v958, 32
  %v961 = vpop.permute.xlu0 %960
  %962 = vrot.lane.b32.xlu0 %v959, 32
  %v963 = vpop.permute.xlu0 %962
  %966 = vst.msk [vmem:[%s4 + $0x3] sm:$0x1] %vm296, %v961
  %967 = vst.msk [vmem:[%s4 + $0xb] sm:$0x1] %vm296, %v963
  %v968 = vld [vmem:[%s0] sm:$0x4]
  %v969 = vld [vmem:[%s0 + $0x4] sm:$0x4]
  %v970 = vunpack.c.l.bf16 %v968
  %v971 = vunpack.c.l.bf16 %v969
  %v972 = vld [vmem:[#allocation2] sm:$0x3]
  %v973 = vld [vmem:[#allocation3] sm:$0x3]
  %v974 = vpack.c.bf16 %v972, %v972
  %v976 = vsel %vm59, %v974, 0
  %978 = vmatpush.bf16.msra.mxu0 0
  %979 = vmatpush.bf16.msra.mxu0 0
  %980 = vmatpush.bf16.msra.mxu0 0
  %981 = vmatpush.bf16.msra.mxu0 0
  %982 = vmatpush.bf16.msra.mxu0 0
  %983 = vmatpush.bf16.msra.mxu0 0
  %984 = vmatpush.bf16.msra.mxu0 %v56
  %985 = vmatpush.bf16.msra.mxu0 %v55
  %986 = vmatmul.bf16.gmra.mxu0 %v976
  %v987 = vpop.f32.mrf.mxu0
  %v988 = vadd.f32 0.0, %v987
  %v989 = vpop.f32.mrf.mxu0
  %990 = vdwg.mxu0
  %v992 = vrot.slane %v988, 4
  %v993 = vrot.slane %v988, 5
  %v996 = vadd.f32 %v970, %v992
  %v997 = vadd.f32 %v971, %v993
  %v998 = vxor.u32 %v996, 2147483648
  %v999 = vxor.u32 %v997, 2147483648
  %v1000 = vmul.f32 %v998, 1.442695
  %v1001 = vpow.pop %v1000
  %v1002 = vmul.f32 %v999, 1.442695
  %v1003 = vpow.pop %v1002
  %v1004 = vadd.f32 %v1001, 1.0
  %v1005 = vadd.f32 %v1003, 1.0
  %v1006 = vrcp.pop %v1004
  %v1007 = vmul.f32 %v1004, %v1006
  %v1008 = vsub.f32 1.0, %v1007
  %v1009 = vmul.f32 %v1006, %v1008
  %v1010 = vadd.f32 %v1006, %v1009
  %vm1011 = vweird.f32 %v1004
  %vm1012 = vweird.f32 %v1006
  %vm1013 = vmor %vm1011, %vm1012
  %v1014 = vsel %vm1013, %v1006, %v1010
  %v1015 = vand.u32 2147483647, %v1004
  %vm1016 = vcmp.eq.f32.partialorder %v1015, 8.507059e+37
  %v1017 = vand.u32 %v1004, 2147483648
  %v1018 = vor.u32 1.1754944e-38, %v1017
  %v1019 = vsel %vm1016, %v1018, %v1014
  %v1020 = vmul.f32 1.0, %v1019
  %v1021 = vrcp.pop %v1005
  %v1022 = vmul.f32 %v1005, %v1021
  %v1023 = vsub.f32 1.0, %v1022
  %v1024 = vmul.f32 %v1021, %v1023
  %v1025 = vadd.f32 %v1021, %v1024
  %vm1026 = vweird.f32 %v1005
  %vm1027 = vweird.f32 %v1021
  %vm1028 = vmor %vm1026, %vm1027
  %v1029 = vsel %vm1028, %v1021, %v1025
  %v1030 = vand.u32 2147483647, %v1005
  %vm1031 = vcmp.eq.f32.partialorder %v1030, 8.507059e+37
  %v1032 = vand.u32 %v1005, 2147483648
  %v1033 = vor.u32 1.1754944e-38, %v1032
  %v1034 = vsel %vm1031, %v1033, %v1029
  %v1035 = vmul.f32 1.0, %v1034
  %v1036 = vtanh.pop %v996
  %v1037 = vtanh.pop %v997
  %v1039 = vrot.slane %v973, 4
  %v1040 = vrot.slane %v973, 5
  %1041 = vrot.lane.b32.xlu0 %v1039, 32
  %v1042 = vpop.permute.xlu0 %1041
  %1043 = vrot.lane.b32.xlu0 %v1040, 32
  %v1044 = vpop.permute.xlu0 %1043
  %v1047 = vmul.f32 %v1020, %v1042
  %v1048 = vmul.f32 %v1035, %v1044
  %1051 = vrot.lane.b32.xlu0 %v1036, 64
  %v1052 = vpop.permute.xlu0 %1051
  %1053 = vrot.lane.b32.xlu0 %v1037, 64
  %v1054 = vpop.permute.xlu0 %1053
  %v1057 = vmul.f32 %v1020, %v1052
  %v1058 = vmul.f32 %v1035, %v1054
  %1061 = vrot.lane.b32.xlu0 %v1057, 32
  %v1062 = vpop.permute.xlu0 %1061
  %1063 = vrot.lane.b32.xlu0 %v1058, 32
  %v1064 = vpop.permute.xlu0 %1063
  %v1067 = vadd.f32 %v1047, %v1062
  %v1068 = vadd.f32 %v1048, %v1064
  %v1069 = vtanh.pop %v1067
  %v1070 = vtanh.pop %v1068
  %1073 = vrot.lane.b32.xlu0 %v1069, 64
  %v1074 = vpop.permute.xlu0 %1073
  %1075 = vrot.lane.b32.xlu0 %v1070, 64
  %v1076 = vpop.permute.xlu0 %1075
  %v1079 = vmul.f32 %v1020, %v1074
  %v1080 = vmul.f32 %v1035, %v1076
  %v1083 = vrot.slane %v1080, 7
  %vm1084 = vcmask 1045509
  %v1085 = vsel %vm1084, %v1083, %v1079
  %1086 = vrot.lane.b32.xlu0 %v1085, 32
  %v1087 = vpop.permute.xlu0 %1086
  %vm1089 = vcmask 259076
  %1090 = vst.msk [vmem:[#allocation2 - $0x4] sm:$0x30] %vm1089, %v1087
  %v1093 = vrot.slane %v1068, 7
  %v1094 = vsel %vm1084, %v1093, %v1067
  %1095 = vrot.lane.b32.xlu0 %v1094, 96
  %v1096 = vpop.permute.xlu0 %1095
  %1098 = vst.msk [vmem:[#allocation3 - $0x4] sm:$0x30] %vm1089, %v1096
  %v1099 = vld [vmem:[%s182] sm:$0x3]
  %v1100 = vld [vmem:[%s184] sm:$0x3]
  %v1102 = vrot.slane %v1099, 4
  %1103 = vrot.lane.b32.xlu0 %v1102, 32
  %v1104 = vpop.permute.xlu0 %1103
  %v1106 = vsel %vm59, %v1087, %v1104
  %v1107 = vpack.c.bf16 %v1106, %v1106
  %v1109 = vrot.slane %v1107, 2
  %v1111 = vsel %vm219, %v1109, 0
  %1113 = vmatpush.bf16.msra.mxu0 0
  %1114 = vmatpush.bf16.msra.mxu0 0
  %1115 = vmatpush.bf16.msra.mxu0 0
  %1116 = vmatpush.bf16.msra.mxu0 0
  %1117 = vmatpush.bf16.msra.mxu0 %v214
  %1118 = vmatpush.bf16.msra.mxu0 %v213
  %1119 = vmatpush.bf16.msra.mxu0 %v212
  %1120 = vmatpush.bf16.msra.mxu0 %v211
  %1121 = vmatmul.bf16.gmra.mxu0 %v1111
  %v1122 = vpop.f32.mrf.mxu0
  %v1123 = vadd.f32 %v193, %v1122
  %v1124 = vpop.f32.mrf.mxu0
  %1125 = vdwg.mxu0
  %v1126 = vxor.u32 %v1123, 2147483648
  %v1127 = vmul.f32 %v1126, 1.442695
  %v1128 = vpow.pop %v1127
  %v1129 = vadd.f32 %v1128, 1.0
  %v1130 = vrcp.pop %v1129
  %v1131 = vmul.f32 %v1129, %v1130
  %v1132 = vsub.f32 1.0, %v1131
  %v1133 = vmul.f32 %v1130, %v1132
  %v1134 = vadd.f32 %v1130, %v1133
  %vm1135 = vweird.f32 %v1129
  %vm1136 = vweird.f32 %v1130
  %vm1137 = vmor %vm1135, %vm1136
  %v1138 = vsel %vm1137, %v1130, %v1134
  %v1139 = vand.u32 2147483647, %v1129
  %vm1140 = vcmp.eq.f32.partialorder %v1139, 8.507059e+37
  %v1141 = vand.u32 %v1129, 2147483648
  %v1142 = vor.u32 1.1754944e-38, %v1141
  %v1143 = vsel %vm1140, %v1142, %v1138
  %v1144 = vmul.f32 1.0, %v1143
  %v1145 = vtanh.pop %v1123
  %1147 = vrot.lane.b32.xlu0 %v1100, 32
  %v1148 = vpop.permute.xlu0 %1147
  %v1150 = vmul.f32 %v1144, %v1148
  %1152 = vrot.lane.b32.xlu0 %v1145, 64
  %v1153 = vpop.permute.xlu0 %1152
  %v1155 = vmul.f32 %v1144, %v1153
  %1157 = vrot.lane.b32.xlu0 %v1155, 32
  %v1158 = vpop.permute.xlu0 %1157
  %v1160 = vadd.f32 %v1150, %v1158
  %v1161 = vtanh.pop %v1160
  %1163 = vrot.lane.b32.xlu0 %v1161, 64
  %v1164 = vpop.permute.xlu0 %1163
  %v1166 = vmul.f32 %v1144, %v1164
  %1168 = vrot.lane.b32.xlu0 %v1166, 32
  %v1169 = vpop.permute.xlu0 %1168
  %1171 = vst.msk [vmem:[%s182] sm:$0x3] %vm172, %v1169
  %1173 = vrot.lane.b32.xlu0 %v1160, 96
  %v1174 = vpop.permute.xlu0 %1173
  %1176 = vst.msk [vmem:[%s184] sm:$0x3] %vm172, %v1174
  %v1177 = vrot.slane %v1166, 1
  %v1178 = vperm.slane %v1166, 0
  %v1179 = vperm.slane %v1177, 0
  %1180 = vrot.lane.b32.xlu0 %v1178, 32
  %v1181 = vpop.permute.xlu0 %1180
  %1182 = vrot.lane.b32.xlu0 %v1179, 32
  %v1183 = vpop.permute.xlu0 %1182
  %1186 = vst.msk [vmem:[%s4 + $0x4] sm:$0x1] %vm296, %v1181
  %1187 = vst.msk [vmem:[%s4 + $0xc] sm:$0x1] %vm296, %v1183
  %v1188 = vld [vmem:[%s0] sm:$0x4]
  %v1189 = vld [vmem:[%s0 + $0x4] sm:$0x4]
  %v1190 = vunpack.c.l.bf16 %v1188
  %v1191 = vunpack.c.l.bf16 %v1189
  %v1192 = vld [vmem:[#allocation2] sm:$0x3]
  %v1193 = vld [vmem:[#allocation3] sm:$0x3]
  %v1194 = vpack.c.bf16 %v1192, %v1192
  %v1196 = vsel %vm59, %v1194, 0
  %1198 = vmatpush.bf16.msra.mxu0 0
  %1199 = vmatpush.bf16.msra.mxu0 0
  %1200 = vmatpush.bf16.msra.mxu0 0
  %1201 = vmatpush.bf16.msra.mxu0 0
  %1202 = vmatpush.bf16.msra.mxu0 0
  %1203 = vmatpush.bf16.msra.mxu0 0
  %1204 = vmatpush.bf16.msra.mxu0 %v56
  %1205 = vmatpush.bf16.msra.mxu0 %v55
  %1206 = vmatmul.bf16.gmra.mxu0 %v1196
  %v1207 = vpop.f32.mrf.mxu0
  %v1208 = vadd.f32 0.0, %v1207
  %v1209 = vpop.f32.mrf.mxu0
  %1210 = vdwg.mxu0
  %v1212 = vrot.slane %v1208, 3
  %v1213 = vrot.slane %v1208, 4
  %v1216 = vadd.f32 %v1190, %v1212
  %v1217 = vadd.f32 %v1191, %v1213
  %v1218 = vxor.u32 %v1216, 2147483648
  %v1219 = vxor.u32 %v1217, 2147483648
  %v1220 = vmul.f32 %v1218, 1.442695
  %v1221 = vpow.pop %v1220
  %v1222 = vmul.f32 %v1219, 1.442695
  %v1223 = vpow.pop %v1222
  %v1224 = vadd.f32 %v1221, 1.0
  %v1225 = vadd.f32 %v1223, 1.0
  %v1226 = vrcp.pop %v1224
  %v1227 = vmul.f32 %v1224, %v1226
  %v1228 = vsub.f32 1.0, %v1227
  %v1229 = vmul.f32 %v1226, %v1228
  %v1230 = vadd.f32 %v1226, %v1229
  %vm1231 = vweird.f32 %v1224
  %vm1232 = vweird.f32 %v1226
  %vm1233 = vmor %vm1231, %vm1232
  %v1234 = vsel %vm1233, %v1226, %v1230
  %v1235 = vand.u32 2147483647, %v1224
  %vm1236 = vcmp.eq.f32.partialorder %v1235, 8.507059e+37
  %v1237 = vand.u32 %v1224, 2147483648
  %v1238 = vor.u32 1.1754944e-38, %v1237
  %v1239 = vsel %vm1236, %v1238, %v1234
  %v1240 = vmul.f32 1.0, %v1239
  %v1241 = vrcp.pop %v1225
  %v1242 = vmul.f32 %v1225, %v1241
  %v1243 = vsub.f32 1.0, %v1242
  %v1244 = vmul.f32 %v1241, %v1243
  %v1245 = vadd.f32 %v1241, %v1244
  %vm1246 = vweird.f32 %v1225
  %vm1247 = vweird.f32 %v1241
  %vm1248 = vmor %vm1246, %vm1247
  %v1249 = vsel %vm1248, %v1241, %v1245
  %v1250 = vand.u32 2147483647, %v1225
  %vm1251 = vcmp.eq.f32.partialorder %v1250, 8.507059e+37
  %v1252 = vand.u32 %v1225, 2147483648
  %v1253 = vor.u32 1.1754944e-38, %v1252
  %v1254 = vsel %vm1251, %v1253, %v1249
  %v1255 = vmul.f32 1.0, %v1254
  %v1256 = vtanh.pop %v1216
  %v1257 = vtanh.pop %v1217
  %v1259 = vrot.slane %v1193, 3
  %v1260 = vrot.slane %v1193, 4
  %1261 = vrot.lane.b32.xlu0 %v1259, 32
  %v1262 = vpop.permute.xlu0 %1261
  %1263 = vrot.lane.b32.xlu0 %v1260, 32
  %v1264 = vpop.permute.xlu0 %1263
  %v1267 = vmul.f32 %v1240, %v1262
  %v1268 = vmul.f32 %v1255, %v1264
  %1271 = vrot.lane.b32.xlu0 %v1256, 64
  %v1272 = vpop.permute.xlu0 %1271
  %1273 = vrot.lane.b32.xlu0 %v1257, 64
  %v1274 = vpop.permute.xlu0 %1273
  %v1277 = vmul.f32 %v1240, %v1272
  %v1278 = vmul.f32 %v1255, %v1274
  %1281 = vrot.lane.b32.xlu0 %v1277, 32
  %v1282 = vpop.permute.xlu0 %1281
  %1283 = vrot.lane.b32.xlu0 %v1278, 32
  %v1284 = vpop.permute.xlu0 %1283
  %v1287 = vadd.f32 %v1267, %v1282
  %v1288 = vadd.f32 %v1268, %v1284
  %v1289 = vtanh.pop %v1287
  %v1290 = vtanh.pop %v1288
  %1293 = vrot.lane.b32.xlu0 %v1289, 64
  %v1294 = vpop.permute.xlu0 %1293
  %1295 = vrot.lane.b32.xlu0 %v1290, 64
  %v1296 = vpop.permute.xlu0 %1295
  %v1299 = vmul.f32 %v1240, %v1294
  %v1300 = vmul.f32 %v1255, %v1296
  %v1303 = vrot.slane %v1300, 7
  %vm1304 = vcmask 1046534
  %v1305 = vsel %vm1304, %v1303, %v1299
  %1306 = vrot.lane.b32.xlu0 %v1305, 32
  %v1307 = vpop.permute.xlu0 %1306
  %vm1309 = vcmask 260101
  %1310 = vst.msk [vmem:[#allocation2 - $0x5] sm:$0x60] %vm1309, %v1307
  %v1313 = vrot.slane %v1288, 7
  %v1314 = vsel %vm1304, %v1313, %v1287
  %1315 = vrot.lane.b32.xlu0 %v1314, 96
  %v1316 = vpop.permute.xlu0 %1315
  %1318 = vst.msk [vmem:[#allocation3 - $0x5] sm:$0x60] %vm1309, %v1316
  %v1319 = vld [vmem:[%s182] sm:$0x3]
  %v1320 = vld [vmem:[%s184] sm:$0x3]
  %v1322 = vrot.slane %v1319, 3
  %1323 = vrot.lane.b32.xlu0 %v1322, 32
  %v1324 = vpop.permute.xlu0 %1323
  %v1326 = vsel %vm59, %v1307, %v1324
  %v1327 = vpack.c.bf16 %v1326, %v1326
  %v1329 = vshrl.u32 %v1327, 16
  %v1331 = vrot.slane %v1329, 2
  %v1332 = vshll.u32 %v1327, 16
  %v1334 = vrot.slane %v1332, 3
  %v1335 = vor.u32 %v1331, %v1334
  %v1337 = vsel %vm219, %v1335, 0
  %1339 = vmatpush.bf16.msra.mxu0 0
  %1340 = vmatpush.bf16.msra.mxu0 0
  %1341 = vmatpush.bf16.msra.mxu0 0
  %1342 = vmatpush.bf16.msra.mxu0 0
  %1343 = vmatpush.bf16.msra.mxu0 %v214
  %1344 = vmatpush.bf16.msra.mxu0 %v213
  %1345 = vmatpush.bf16.msra.mxu0 %v212
  %1346 = vmatpush.bf16.msra.mxu0 %v211
  %1347 = vmatmul.bf16.gmra.mxu0 %v1337
  %v1348 = vpop.f32.mrf.mxu0
  %v1349 = vadd.f32 %v193, %v1348
  %v1350 = vpop.f32.mrf.mxu0
  %1351 = vdwg.mxu0
  %v1352 = vxor.u32 %v1349, 2147483648
  %v1353 = vmul.f32 %v1352, 1.442695
  %v1354 = vpow.pop %v1353
  %v1355 = vadd.f32 %v1354, 1.0
  %v1356 = vrcp.pop %v1355
  %v1357 = vmul.f32 %v1355, %v1356
  %v1358 = vsub.f32 1.0, %v1357
  %v1359 = vmul.f32 %v1356, %v1358
  %v1360 = vadd.f32 %v1356, %v1359
  %vm1361 = vweird.f32 %v1355
  %vm1362 = vweird.f32 %v1356
  %vm1363 = vmor %vm1361, %vm1362
  %v1364 = vsel %vm1363, %v1356, %v1360
  %v1365 = vand.u32 2147483647, %v1355
  %vm1366 = vcmp.eq.f32.partialorder %v1365, 8.507059e+37
  %v1367 = vand.u32 %v1355, 2147483648
  %v1368 = vor.u32 1.1754944e-38, %v1367
  %v1369 = vsel %vm1366, %v1368, %v1364
  %v1370 = vmul.f32 1.0, %v1369
  %v1371 = vtanh.pop %v1349
  %1373 = vrot.lane.b32.xlu0 %v1320, 32
  %v1374 = vpop.permute.xlu0 %1373
  %v1376 = vmul.f32 %v1370, %v1374
  %1378 = vrot.lane.b32.xlu0 %v1371, 64
  %v1379 = vpop.permute.xlu0 %1378
  %v1381 = vmul.f32 %v1370, %v1379
  %1383 = vrot.lane.b32.xlu0 %v1381, 32
  %v1384 = vpop.permute.xlu0 %1383
  %v1386 = vadd.f32 %v1376, %v1384
  %v1387 = vtanh.pop %v1386
  %1389 = vrot.lane.b32.xlu0 %v1387, 64
  %v1390 = vpop.permute.xlu0 %1389
  %v1392 = vmul.f32 %v1370, %v1390
  %1394 = vrot.lane.b32.xlu0 %v1392, 32
  %v1395 = vpop.permute.xlu0 %1394
  %1397 = vst.msk [vmem:[%s182] sm:$0x3] %vm172, %v1395
  %1399 = vrot.lane.b32.xlu0 %v1386, 96
  %v1400 = vpop.permute.xlu0 %1399
  %1402 = vst.msk [vmem:[%s184] sm:$0x3] %vm172, %v1400
  %v1403 = vrot.slane %v1392, 1
  %v1404 = vperm.slane %v1392, 0
  %v1405 = vperm.slane %v1403, 0
  %1406 = vrot.lane.b32.xlu0 %v1404, 32
  %v1407 = vpop.permute.xlu0 %1406
  %1408 = vrot.lane.b32.xlu0 %v1405, 32
  %v1409 = vpop.permute.xlu0 %1408
  %1412 = vst.msk [vmem:[%s4 + $0x5] sm:$0x1] %vm296, %v1407
  %1413 = vst.msk [vmem:[%s4 + $0xd] sm:$0x1] %vm296, %v1409
  %v1414 = vld [vmem:[%s0] sm:$0x8]
  %v1415 = vld [vmem:[%s0 + $0x4] sm:$0x8]
  %v1416 = vunpack.c.l.bf16 %v1414
  %v1417 = vunpack.c.l.bf16 %v1415
  %v1418 = vld [vmem:[#allocation2] sm:$0x3]
  %v1419 = vld [vmem:[#allocation3] sm:$0x3]
  %v1420 = vpack.c.bf16 %v1418, %v1418
  %v1422 = vsel %vm59, %v1420, 0
  %1424 = vmatpush.bf16.msra.mxu0 0
  %1425 = vmatpush.bf16.msra.mxu0 0
  %1426 = vmatpush.bf16.msra.mxu0 0
  %1427 = vmatpush.bf16.msra.mxu0 0
  %1428 = vmatpush.bf16.msra.mxu0 0
  %1429 = vmatpush.bf16.msra.mxu0 0
  %1430 = vmatpush.bf16.msra.mxu0 %v56
  %1431 = vmatpush.bf16.msra.mxu0 %v55
  %1432 = vmatmul.bf16.gmra.mxu0 %v1422
  %v1433 = vpop.f32.mrf.mxu0
  %v1434 = vadd.f32 0.0, %v1433
  %v1435 = vpop.f32.mrf.mxu0
  %1436 = vdwg.mxu0
  %v1438 = vrot.slane %v1434, 2
  %v1439 = vrot.slane %v1434, 3
  %v1442 = vadd.f32 %v1416, %v1438
  %v1443 = vadd.f32 %v1417, %v1439
  %v1444 = vxor.u32 %v1442, 2147483648
  %v1445 = vxor.u32 %v1443, 2147483648
  %v1446 = vmul.f32 %v1444, 1.442695
  %v1447 = vpow.pop %v1446
  %v1448 = vmul.f32 %v1445, 1.442695
  %v1449 = vpow.pop %v1448
  %v1450 = vadd.f32 %v1447, 1.0
  %v1451 = vadd.f32 %v1449, 1.0
  %v1452 = vrcp.pop %v1450
  %v1453 = vmul.f32 %v1450, %v1452
  %v1454 = vsub.f32 1.0, %v1453
  %v1455 = vmul.f32 %v1452, %v1454
  %v1456 = vadd.f32 %v1452, %v1455
  %vm1457 = vweird.f32 %v1450
  %vm1458 = vweird.f32 %v1452
  %vm1459 = vmor %vm1457, %vm1458
  %v1460 = vsel %vm1459, %v1452, %v1456
  %v1461 = vand.u32 2147483647, %v1450
  %vm1462 = vcmp.eq.f32.partialorder %v1461, 8.507059e+37
  %v1463 = vand.u32 %v1450, 2147483648
  %v1464 = vor.u32 1.1754944e-38, %v1463
  %v1465 = vsel %vm1462, %v1464, %v1460
  %v1466 = vmul.f32 1.0, %v1465
  %v1467 = vrcp.pop %v1451
  %v1468 = vmul.f32 %v1451, %v1467
  %v1469 = vsub.f32 1.0, %v1468
  %v1470 = vmul.f32 %v1467, %v1469
  %v1471 = vadd.f32 %v1467, %v1470
  %vm1472 = vweird.f32 %v1451
  %vm1473 = vweird.f32 %v1467
  %vm1474 = vmor %vm1472, %vm1473
  %v1475 = vsel %vm1474, %v1467, %v1471
  %v1476 = vand.u32 2147483647, %v1451
  %vm1477 = vcmp.eq.f32.partialorder %v1476, 8.507059e+37
  %v1478 = vand.u32 %v1451, 2147483648
  %v1479 = vor.u32 1.1754944e-38, %v1478
  %v1480 = vsel %vm1477, %v1479, %v1475
  %v1481 = vmul.f32 1.0, %v1480
  %v1482 = vtanh.pop %v1442
  %v1483 = vtanh.pop %v1443
  %v1485 = vrot.slane %v1419, 2
  %v1486 = vrot.slane %v1419, 3
  %1487 = vrot.lane.b32.xlu0 %v1485, 32
  %v1488 = vpop.permute.xlu0 %1487
  %1489 = vrot.lane.b32.xlu0 %v1486, 32
  %v1490 = vpop.permute.xlu0 %1489
  %v1493 = vmul.f32 %v1466, %v1488
  %v1494 = vmul.f32 %v1481, %v1490
  %1497 = vrot.lane.b32.xlu0 %v1482, 64
  %v1498 = vpop.permute.xlu0 %1497
  %1499 = vrot.lane.b32.xlu0 %v1483, 64
  %v1500 = vpop.permute.xlu0 %1499
  %v1503 = vmul.f32 %v1466, %v1498
  %v1504 = vmul.f32 %v1481, %v1500
  %1507 = vrot.lane.b32.xlu0 %v1503, 32
  %v1508 = vpop.permute.xlu0 %1507
  %1509 = vrot.lane.b32.xlu0 %v1504, 32
  %v1510 = vpop.permute.xlu0 %1509
  %v1513 = vadd.f32 %v1493, %v1508
  %v1514 = vadd.f32 %v1494, %v1510
  %v1515 = vtanh.pop %v1513
  %v1516 = vtanh.pop %v1514
  %1519 = vrot.lane.b32.xlu0 %v1515, 64
  %v1520 = vpop.permute.xlu0 %1519
  %1521 = vrot.lane.b32.xlu0 %v1516, 64
  %v1522 = vpop.permute.xlu0 %1521
  %v1525 = vmul.f32 %v1466, %v1520
  %v1526 = vmul.f32 %v1481, %v1522
  %v1529 = vrot.slane %v1526, 7
  %vm1530 = vcmask 1047559
  %v1531 = vsel %vm1530, %v1529, %v1525
  %1532 = vrot.lane.b32.xlu0 %v1531, 32
  %v1533 = vpop.permute.xlu0 %1532
  %vm1535 = vcmask 261126
  %1536 = vst.msk [vmem:[#allocation2 - $0x6] sm:$0xc0] %vm1535, %v1533
  %v1539 = vrot.slane %v1514, 7
  %v1540 = vsel %vm1530, %v1539, %v1513
  %1541 = vrot.lane.b32.xlu0 %v1540, 96
  %v1542 = vpop.permute.xlu0 %1541
  %1544 = vst.msk [vmem:[#allocation3 - $0x6] sm:$0xc0] %vm1535, %v1542
  %v1545 = vld [vmem:[%s182] sm:$0x3]
  %v1546 = vld [vmem:[%s184] sm:$0x3]
  %v1548 = vrot.slane %v1545, 2
  %1549 = vrot.lane.b32.xlu0 %v1548, 32
  %v1550 = vpop.permute.xlu0 %1549
  %v1552 = vsel %vm59, %v1533, %v1550
  %v1553 = vpack.c.bf16 %v1552, %v1552
  %v1555 = vrot.slane %v1553, 3
  %v1557 = vsel %vm219, %v1555, 0
  %1559 = vmatpush.bf16.msra.mxu0 0
  %1560 = vmatpush.bf16.msra.mxu0 0
  %1561 = vmatpush.bf16.msra.mxu0 0
  %1562 = vmatpush.bf16.msra.mxu0 0
  %1563 = vmatpush.bf16.msra.mxu0 %v214
  %1564 = vmatpush.bf16.msra.mxu0 %v213
  %1565 = vmatpush.bf16.msra.mxu0 %v212
  %1566 = vmatpush.bf16.msra.mxu0 %v211
  %1567 = vmatmul.bf16.gmra.mxu0 %v1557
  %v1568 = vpop.f32.mrf.mxu0
  %v1569 = vadd.f32 %v193, %v1568
  %v1570 = vpop.f32.mrf.mxu0
  %1571 = vdwg.mxu0
  %v1572 = vxor.u32 %v1569, 2147483648
  %v1573 = vmul.f32 %v1572, 1.442695
  %v1574 = vpow.pop %v1573
  %v1575 = vadd.f32 %v1574, 1.0
  %v1576 = vrcp.pop %v1575
  %v1577 = vmul.f32 %v1575, %v1576
  %v1578 = vsub.f32 1.0, %v1577
  %v1579 = vmul.f32 %v1576, %v1578
  %v1580 = vadd.f32 %v1576, %v1579
  %vm1581 = vweird.f32 %v1575
  %vm1582 = vweird.f32 %v1576
  %vm1583 = vmor %vm1581, %vm1582
  %v1584 = vsel %vm1583, %v1576, %v1580
  %v1585 = vand.u32 2147483647, %v1575
  %vm1586 = vcmp.eq.f32.partialorder %v1585, 8.507059e+37
  %v1587 = vand.u32 %v1575, 2147483648
  %v1588 = vor.u32 1.1754944e-38, %v1587
  %v1589 = vsel %vm1586, %v1588, %v1584
  %v1590 = vmul.f32 1.0, %v1589
  %v1591 = vtanh.pop %v1569
  %1593 = vrot.lane.b32.xlu0 %v1546, 32
  %v1594 = vpop.permute.xlu0 %1593
  %v1596 = vmul.f32 %v1590, %v1594
  %1598 = vrot.lane.b32.xlu0 %v1591, 64
  %v1599 = vpop.permute.xlu0 %1598
  %v1601 = vmul.f32 %v1590, %v1599
  %1603 = vrot.lane.b32.xlu0 %v1601, 32
  %v1604 = vpop.permute.xlu0 %1603
  %v1606 = vadd.f32 %v1596, %v1604
  %v1607 = vtanh.pop %v1606
  %1609 = vrot.lane.b32.xlu0 %v1607, 64
  %v1610 = vpop.permute.xlu0 %1609
  %v1612 = vmul.f32 %v1590, %v1610
  %1614 = vrot.lane.b32.xlu0 %v1612, 32
  %v1615 = vpop.permute.xlu0 %1614
  %1617 = vst.msk [vmem:[%s182] sm:$0x3] %vm172, %v1615
  %1619 = vrot.lane.b32.xlu0 %v1606, 96
  %v1620 = vpop.permute.xlu0 %1619
  %1622 = vst.msk [vmem:[%s184] sm:$0x3] %vm172, %v1620
  %v1623 = vrot.slane %v1612, 1
  %v1624 = vperm.slane %v1612, 0
  %v1625 = vperm.slane %v1623, 0
  %1626 = vrot.lane.b32.xlu0 %v1624, 32
  %v1627 = vpop.permute.xlu0 %1626
  %1628 = vrot.lane.b32.xlu0 %v1625, 32
  %v1629 = vpop.permute.xlu0 %1628
  %1632 = vst.msk [vmem:[%s4 + $0x6] sm:$0x1] %vm296, %v1627
  %1633 = vst.msk [vmem:[%s4 + $0xe] sm:$0x1] %vm296, %v1629
  %v1634 = vld [vmem:[%s0] sm:$0x8]
  %v1635 = vld [vmem:[%s0 + $0x4] sm:$0x8]
  %v1636 = vunpack.c.l.bf16 %v1634
  %v1637 = vunpack.c.l.bf16 %v1635
  %v1638 = vld [vmem:[#allocation2] sm:$0x3]
  %v1639 = vld [vmem:[#allocation3] sm:$0x3]
  %v1640 = vpack.c.bf16 %v1638, %v1638
  %v1642 = vsel %vm59, %v1640, 0
  %1644 = vmatpush.bf16.msra.mxu0 0
  %1645 = vmatpush.bf16.msra.mxu0 0
  %1646 = vmatpush.bf16.msra.mxu0 0
  %1647 = vmatpush.bf16.msra.mxu0 0
  %1648 = vmatpush.bf16.msra.mxu0 0
  %1649 = vmatpush.bf16.msra.mxu0 0
  %1650 = vmatpush.bf16.msra.mxu0 %v56
  %1651 = vmatpush.bf16.msra.mxu0 %v55
  %1652 = vmatmul.bf16.gmra.mxu0 %v1642
  %v1653 = vpop.f32.mrf.mxu0
  %v1654 = vadd.f32 0.0, %v1653
  %v1655 = vpop.f32.mrf.mxu0
  %1656 = vdwg.mxu0
  %v1658 = vrot.slane %v1654, 1
  %v1659 = vrot.slane %v1654, 2
  %v1662 = vadd.f32 %v1636, %v1658
  %v1663 = vadd.f32 %v1637, %v1659
  %v1664 = vxor.u32 %v1662, 2147483648
  %v1665 = vxor.u32 %v1663, 2147483648
  %v1666 = vmul.f32 %v1664, 1.442695
  %v1667 = vpow.pop %v1666
  %v1668 = vmul.f32 %v1665, 1.442695
  %v1669 = vpow.pop %v1668
  %v1670 = vadd.f32 %v1667, 1.0
  %v1671 = vadd.f32 %v1669, 1.0
  %v1672 = vrcp.pop %v1670
  %v1673 = vmul.f32 %v1670, %v1672
  %v1674 = vsub.f32 1.0, %v1673
  %v1675 = vmul.f32 %v1672, %v1674
  %v1676 = vadd.f32 %v1672, %v1675
  %vm1677 = vweird.f32 %v1670
  %vm1678 = vweird.f32 %v1672
  %vm1679 = vmor %vm1677, %vm1678
  %v1680 = vsel %vm1679, %v1672, %v1676
  %v1681 = vand.u32 2147483647, %v1670
  %vm1682 = vcmp.eq.f32.partialorder %v1681, 8.507059e+37
  %v1683 = vand.u32 %v1670, 2147483648
  %v1684 = vor.u32 1.1754944e-38, %v1683
  %v1685 = vsel %vm1682, %v1684, %v1680
  %v1686 = vmul.f32 1.0, %v1685
  %v1687 = vrcp.pop %v1671
  %v1688 = vmul.f32 %v1671, %v1687
  %v1689 = vsub.f32 1.0, %v1688
  %v1690 = vmul.f32 %v1687, %v1689
  %v1691 = vadd.f32 %v1687, %v1690
  %vm1692 = vweird.f32 %v1671
  %vm1693 = vweird.f32 %v1687
  %vm1694 = vmor %vm1692, %vm1693
  %v1695 = vsel %vm1694, %v1687, %v1691
  %v1696 = vand.u32 2147483647, %v1671
  %vm1697 = vcmp.eq.f32.partialorder %v1696, 8.507059e+37
  %v1698 = vand.u32 %v1671, 2147483648
  %v1699 = vor.u32 1.1754944e-38, %v1698
  %v1700 = vsel %vm1697, %v1699, %v1695
  %v1701 = vmul.f32 1.0, %v1700
  %v1702 = vtanh.pop %v1662
  %v1703 = vtanh.pop %v1663
  %v1705 = vrot.slane %v1639, 1
  %v1706 = vrot.slane %v1639, 2
  %1707 = vrot.lane.b32.xlu0 %v1705, 32
  %v1708 = vpop.permute.xlu0 %1707
  %1709 = vrot.lane.b32.xlu0 %v1706, 32
  %v1710 = vpop.permute.xlu0 %1709
  %v1713 = vmul.f32 %v1686, %v1708
  %v1714 = vmul.f32 %v1701, %v1710
  %1717 = vrot.lane.b32.xlu0 %v1702, 64
  %v1718 = vpop.permute.xlu0 %1717
  %1719 = vrot.lane.b32.xlu0 %v1703, 64
  %v1720 = vpop.permute.xlu0 %1719
  %v1723 = vmul.f32 %v1686, %v1718
  %v1724 = vmul.f32 %v1701, %v1720
  %1727 = vrot.lane.b32.xlu0 %v1723, 32
  %v1728 = vpop.permute.xlu0 %1727
  %1729 = vrot.lane.b32.xlu0 %v1724, 32
  %v1730 = vpop.permute.xlu0 %1729
  %v1733 = vadd.f32 %v1713, %v1728
  %v1734 = vadd.f32 %v1714, %v1730
  %v1735 = vtanh.pop %v1733
  %v1736 = vtanh.pop %v1734
  %1739 = vrot.lane.b32.xlu0 %v1735, 64
  %v1740 = vpop.permute.xlu0 %1739
  %1741 = vrot.lane.b32.xlu0 %v1736, 64
  %v1742 = vpop.permute.xlu0 %1741
  %v1745 = vmul.f32 %v1686, %v1740
  %v1746 = vmul.f32 %v1701, %v1742
  %v1749 = vrot.slane %v1746, 7
  %1750 = vrot.lane.b32.xlu0 %v1745, 32
  %v1751 = vpop.permute.xlu0 %1750
  %1752 = vrot.lane.b32.xlu0 %v1749, 32
  %v1753 = vpop.permute.xlu0 %1752
  %vm1756 = vcmask 261127
  %1757 = vst.msk [vmem:[#allocation2 - $0x7] sm:$0x80] %vm1756, %v1751
  %1758 = vst.msk [vmem:[#allocation2 + $0x1] sm:$0x1] %vm296, %v1753
  %v1761 = vrot.slane %v1734, 7
  %1762 = vrot.lane.b32.xlu0 %v1733, 96
  %v1763 = vpop.permute.xlu0 %1762
  %1764 = vrot.lane.b32.xlu0 %v1761, 96
  %v1765 = vpop.permute.xlu0 %1764
  %1768 = vst.msk [vmem:[#allocation3 - $0x7] sm:$0x80] %vm1756, %v1763
  %1769 = vst.msk [vmem:[#allocation3 + $0x1] sm:$0x1] %vm296, %v1765
  %v1770 = vld [vmem:[%s182] sm:$0x3]
  %v1771 = vld [vmem:[%s184] sm:$0x3]
  %v1773 = vrot.slane %v1770, 1
  %1774 = vrot.lane.b32.xlu0 %v1773, 32
  %v1775 = vpop.permute.xlu0 %1774
  %v1777 = vsel %vm59, %v1751, %v1775
  %v1778 = vsel %vm59, %v1753, %v1775
  %v1779 = vpack.c.bf16 %v1778, %v1777
  %v1781 = vshrl.u32 %v1779, 16
  %v1783 = vrot.slane %v1781, 3
  %v1784 = vshll.u32 %v1779, 16
  %v1786 = vrot.slane %v1784, 4
  %v1787 = vor.u32 %v1783, %v1786
  %v1789 = vsel %vm219, %v1787, 0
  %1791 = vmatpush.bf16.msra.mxu0 0
  %1792 = vmatpush.bf16.msra.mxu0 0
  %1793 = vmatpush.bf16.msra.mxu0 0
  %1794 = vmatpush.bf16.msra.mxu0 0
  %1795 = vmatpush.bf16.msra.mxu0 %v214
  %1796 = vmatpush.bf16.msra.mxu0 %v213
  %1797 = vmatpush.bf16.msra.mxu0 %v212
  %1798 = vmatpush.bf16.msra.mxu0 %v211
  %1799 = vmatmul.bf16.gmra.mxu0 %v1789
  %v1800 = vpop.f32.mrf.mxu0
  %v1801 = vadd.f32 %v193, %v1800
  %v1802 = vpop.f32.mrf.mxu0
  %1803 = vdwg.mxu0
  %v1804 = vxor.u32 %v1801, 2147483648
  %v1805 = vmul.f32 %v1804, 1.442695
  %v1806 = vpow.pop %v1805
  %v1807 = vadd.f32 %v1806, 1.0
  %v1808 = vrcp.pop %v1807
  %v1809 = vmul.f32 %v1807, %v1808
  %v1810 = vsub.f32 1.0, %v1809
  %v1811 = vmul.f32 %v1808, %v1810
  %v1812 = vadd.f32 %v1808, %v1811
  %vm1813 = vweird.f32 %v1807
  %vm1814 = vweird.f32 %v1808
  %vm1815 = vmor %vm1813, %vm1814
  %v1816 = vsel %vm1815, %v1808, %v1812
  %v1817 = vand.u32 2147483647, %v1807
  %vm1818 = vcmp.eq.f32.partialorder %v1817, 8.507059e+37
  %v1819 = vand.u32 %v1807, 2147483648
  %v1820 = vor.u32 1.1754944e-38, %v1819
  %v1821 = vsel %vm1818, %v1820, %v1816
  %v1822 = vmul.f32 1.0, %v1821
  %v1823 = vtanh.pop %v1801
  %1825 = vrot.lane.b32.xlu0 %v1771, 32
  %v1826 = vpop.permute.xlu0 %1825
  %v1828 = vmul.f32 %v1822, %v1826
  %1830 = vrot.lane.b32.xlu0 %v1823, 64
  %v1831 = vpop.permute.xlu0 %1830
  %v1833 = vmul.f32 %v1822, %v1831
  %1835 = vrot.lane.b32.xlu0 %v1833, 32
  %v1836 = vpop.permute.xlu0 %1835
  %v1838 = vadd.f32 %v1828, %v1836
  %v1839 = vtanh.pop %v1838
  %1841 = vrot.lane.b32.xlu0 %v1839, 64
  %v1842 = vpop.permute.xlu0 %1841
  %v1844 = vmul.f32 %v1822, %v1842
  %1846 = vrot.lane.b32.xlu0 %v1844, 32
  %v1847 = vpop.permute.xlu0 %1846
  %1849 = vst.msk [vmem:[%s182] sm:$0x3] %vm172, %v1847
  %1851 = vrot.lane.b32.xlu0 %v1838, 96
  %v1852 = vpop.permute.xlu0 %1851
  %1854 = vst.msk [vmem:[%s184] sm:$0x3] %vm172, %v1852
  %v1855 = vrot.slane %v1844, 1
  %v1856 = vperm.slane %v1844, 0
  %v1857 = vperm.slane %v1855, 0
  %1858 = vrot.lane.b32.xlu0 %v1856, 32
  %v1859 = vpop.permute.xlu0 %1858
  %1860 = vrot.lane.b32.xlu0 %v1857, 32
  %v1861 = vpop.permute.xlu0 %1860
  %1864 = vst.msk [vmem:[%s4 + $0x7] sm:$0x1] %vm296, %v1859
  %1865 = vst.msk [vmem:[%s4 + $0xf] sm:$0x1] %vm296, %v1861
  // Predicated region
  $region22: #{lstmattn_forward.4} parent=0 // pred_check
    _
  $region23: #{lstmattn_forward.4} parent=0 // pred_check_branch
    %1867 = sbr.rel (0) target = $region25
  $region24: #{lstmattn_forward.4} parent=0 // pred_region
    _
  $region25: #{lstmattn_forward.4} parent=0 // pred_fallthru
    _
  // Predicated region
  $region26: #{lstmattn_forward.4} parent=0 // pred_check
    _
  $region27: #{lstmattn_forward.4} parent=0 // pred_check_branch
    %1869 = sbr.rel (0) target = $region29
  $region28: #{lstmattn_forward.4} parent=0 // pred_region
    _
  $region29: #{lstmattn_forward.4} parent=0 // pred_fallthru
    _

</llo_original>
